<compile_context>
chip_gen: v7x
topology: tpu7x:2x2x1
jax: 0.10.0
libtpu: 0.0.40
codegen_flags: <defaults>
</compile_context>

<pallas_src>
import math
import functools

import jax
import jax.numpy as jnp
from jax import lax
from jax.experimental import pallas as pl
from jax.experimental.pallas import tpu as pltpu


# ------------------------------ fused kernel ------------------------------- #

def _layernorm(x, g, b, eps=1e-5):
    # single-pass: mean and mean-of-squares are independent lane reductions
    mu = jnp.mean(x, axis=-1, keepdims=True)
    ms = jnp.mean(x * x, axis=-1, keepdims=True)
    var = jnp.maximum(ms - mu * mu, 0.0)
    return (x - mu) * lax.rsqrt(var + eps) * g + b


def _fused_forward_kernel(x_ref, enc_w_ref, enc_b_ref, pe_ref,
                          wqkv_ref, bqkv_ref, wo_ref, bo_ref,
                          ln1g_ref, ln1b_ref, w1_ref, b1_ref,
                          w2_ref, b2_ref, ln2g_ref, ln2b_ref,
                          dec_w_ref, dec_b_ref, dcls_w_ref, dcls_b_ref,
                          o_ref, *, num_layers, num_heads, s_prime):
    # ---- encoder linear (sqrt(N_LEADS) pre-folded) + positional encoding ----
    x = x_ref[...]                                              # (M, C) bf16
    h = jnp.dot(x, enc_w_ref[...], preferred_element_type=jnp.float32)
    h = h + enc_b_ref[...] + pe_ref[...]                        # (M, E) f32

    M, E = h.shape
    S = s_prime
    B_blk = M // S
    H = num_heads
    Dh = E // H

    # ---- transformer encoder layers (post-norm, ReLU, zero 'flipping' mask) ----
    for l in range(num_layers):
        # fused QKV projection for the whole (B_blk*S, E) slab
        qkv = jnp.dot(h.astype(jnp.bfloat16), wqkv_ref[l],
                      preferred_element_type=jnp.float32) + bqkv_ref[l]   # (M, 3E)
        qkv_b = qkv.astype(jnp.bfloat16)

        # scores for every (batch, head) pair; 1/sqrt(Dh) is pre-folded into Wq/bq
        scores = []
        for b in range(B_blk):
            r0 = b * S
            for hd in range(H):
                c0 = hd * Dh
                q = qkv_b[r0:r0 + S, c0:c0 + Dh]                          # (S, Dh)
                k = qkv_b[r0:r0 + S, E + c0:E + c0 + Dh]                  # (S, Dh)
                scores.append(lax.dot_general(
                    q, k, (((1,), (1,)), ((), ())),
                    preferred_element_type=jnp.float32))                  # (S, S)

        # one batched softmax over all B_blk*H score tiles (sublane-stacked)
        s_all = scores[0] if len(scores) == 1 else jnp.concatenate(scores, axis=0)
        s_all = s_all - jnp.max(s_all, axis=-1, keepdims=True)
        p_all = jnp.exp(s_all)
        p_all = p_all * pl.reciprocal(jnp.sum(p_all, axis=-1, keepdims=True),
                                      approx=True)
        p_all = p_all.astype(jnp.bfloat16)                                # (B*H*S, S)

        # attention output accumulated through per-head Wo blocks (no lane concat)
        wo_l = wo_ref[l]                                                  # (H, Dh, E)
        attn = jnp.zeros((M, E), jnp.float32)
        for hd in range(H):
            c0 = 2 * E + hd * Dh
            rows = []
            for b in range(B_blk):
                p = p_all[(b * H + hd) * S:(b * H + hd + 1) * S, :]       # (S, S)
                v = qkv_b[b * S:(b + 1) * S, c0:c0 + Dh]                  # (S, Dh)
                rows.append(jnp.dot(p, v, preferred_element_type=jnp.float32))
            head = rows[0] if B_blk == 1 else jnp.concatenate(rows, axis=0)
            attn = attn + jnp.dot(head.astype(jnp.bfloat16), wo_l[hd],
                                  preferred_element_type=jnp.float32)     # (M, E)
        attn = attn + bo_ref[l]
        h = _layernorm(h + attn, ln1g_ref[l], ln1b_ref[l])

        # feed-forward
        ff = jnp.dot(h.astype(jnp.bfloat16), w1_ref[l],
                     preferred_element_type=jnp.float32) + b1_ref[l]
        ff = jnp.maximum(ff, 0.0)
        ff = jnp.dot(ff.astype(jnp.bfloat16), w2_ref[l],
                     preferred_element_type=jnp.float32) + b2_ref[l]
        h = _layernorm(h + ff, ln2g_ref[l], ln2b_ref[l])

    # ---- decoder (M, E) -> (M, N_LEADS), then decoder_class over the seq axis ----
    dec = jnp.dot(h.astype(jnp.bfloat16), dec_w_ref[...],
                  preferred_element_type=jnp.float32) + dec_b_ref[...]
    dec16 = dec.astype(jnp.bfloat16)
    for b in range(B_blk):
        out_b = lax.dot_general(dec16[b * S:(b + 1) * S, :], dcls_w_ref[...],
                                (((0,), (0,)), ((), ())),
                                preferred_element_type=jnp.float32) + dcls_b_ref[...]
        o_ref[b] = out_b                                                  # (N_LEADS, 4)


# --------------------------- parameter creation ----------------------------- #

def _linear_params(key, fan_in, fan_out):
    """Torch-like uniform(-1/sqrt(fan_in), 1/sqrt(fan_in)); weight stored (in, out)."""
    k1, k2 = jax.random.split(key)
    bound = 1.0 / math.sqrt(fan_in)
    w = jax.random.uniform(k1, (fan_in, fan_out), jnp.float32, -bound, bound)
    b = jax.random.uniform(k2, (fan_out,), jnp.float32, -bound, bound)
    return w, b


def make_positional_encoding(max_len, d_model):
    position = jnp.arange(max_len, dtype=jnp.float32)[:, None]
    div_term = jnp.exp(jnp.arange(0, d_model, 2, dtype=jnp.float32)
                       * (-math.log(10000.0) / d_model))
    ang = position * div_term                                  # (max_len, d_model/2)
    pe = jnp.stack([jnp.sin(ang), jnp.cos(ang)], axis=-1).reshape(max_len, d_model)
    return pe


def init_params(key, *, dim_concat, dim_model, num_heads, dim_inner,
                num_layers, n_leads, s_prime, max_len=10000):
    E = dim_model
    H = num_heads
    Dh = E // H
    keys = jax.random.split(key, 3 + num_layers)
    enc_w, enc_b = _linear_params(keys[0], dim_concat, E)
    dec_w, dec_b = _linear_params(keys[1], E, n_leads)
    dcls_w, dcls_b = _linear_params(keys[2], s_prime, 4)

    # fold sqrt(N_LEADS) into the encoder linear: (xW + b)*s == x(Ws) + b*s
    sn = math.sqrt(n_leads)
    enc_w = enc_w * sn
    enc_b = enc_b * sn

    q_scale = 1.0 / math.sqrt(Dh)

    wqkv, bqkv, wo, bo, w1, b1, w2, b2 = ([] for _ in range(8))
    for li in range(num_layers):
        lk = jax.random.split(keys[3 + li], 4)
        a, ab = _linear_params(lk[0], E, 3 * E)
        # fold 1/sqrt(Dh) into the Q third of the in-projection (weights + bias)
        a = a.at[:, :E].multiply(q_scale)
        ab = ab.at[:E].multiply(q_scale)
        o, ob = _linear_params(lk[1], E, E)
        f1, f1b = _linear_params(lk[2], E, dim_inner)
        f2, f2b = _linear_params(lk[3], dim_inner, E)
        wqkv.append(a); bqkv.append(ab.reshape(1, -1))
        # out-proj stored per head: (H, Dh, E) so heads never need a lane concat
        wo.append(o.reshape(H, Dh, E)); bo.append(ob.reshape(1, -1))
        w1.append(f1); b1.append(f1b.reshape(1, -1))
        w2.append(f2); b2.append(f2b.reshape(1, -1))

    stack_bf16 = lambda xs: jnp.stack(xs).astype(jnp.bfloat16)
    stack_f32 = lambda xs: jnp.stack(xs).astype(jnp.float32)
    L = num_layers

    return dict(
        enc_w=enc_w.astype(jnp.bfloat16), enc_b=enc_b.reshape(1, E),
        pe=make_positional_encoding(max_len, E),
        wqkv=stack_bf16(wqkv), bqkv=stack_f32(bqkv),
        wo=stack_bf16(wo), bo=stack_f32(bo),
        ln1_g=jnp.ones((L, 1, E), jnp.float32), ln1_b=jnp.zeros((L, 1, E), jnp.float32),
        w1=stack_bf16(w1), b1=stack_f32(b1),
        w2=stack_bf16(w2), b2=stack_f32(b2),
        ln2_g=jnp.ones((L, 1, E), jnp.float32), ln2_b=jnp.zeros((L, 1, E), jnp.float32),
        dec_w=dec_w.astype(jnp.bfloat16), dec_b=dec_b.reshape(1, n_leads),
        dcls_w=dcls_w.astype(jnp.bfloat16), dcls_b=dcls_b.reshape(1, 4),
    )


# ------------------------------ forward pass -------------------------------- #

def _default_grid_steps(batch):
    """2 parallel steps on v7x (2 TensorCores/chip), 1 step on v5e/v6e."""
    try:
        kind = jax.devices()[0].device_kind.lower()
    except Exception:
        kind = ""
    if batch >= 2 and batch % 2 == 0 and ("v7" in kind or "7x" in kind):
        return 2
    return 1


def my_transformer_forward(params, src, dummyvar, *, steps_concat, num_heads,
                           n_leads=12, num_grid_steps=None):
    """src: (batch, n_feature=12, seq_len).  Returns (output, [])."""
    del dummyvar
    B, n_feature, seq_len = src.shape
    s_prime = seq_len // steps_concat
    dim_concat = n_feature * steps_concat
    num_layers = params["wqkv"].shape[0]

    if num_grid_steps is None:
        num_grid_steps = _default_grid_steps(B)
    if B % num_grid_steps != 0:
        num_grid_steps = 1
    B_blk = B // num_grid_steps
    M = B_blk * s_prime                                        # matmul M per grid step

    # src.transpose(2,1).reshape(-1, S', dim_concat), further flattened to
    # (B*S', dim_concat) so the batch rides in the matmul M dimension.
    x = jnp.transpose(src, (0, 2, 1)).reshape(B * s_prime, dim_concat).astype(jnp.bfloat16)
    # positional encoding tiled once per call to match the folded-batch slab
    pe = jnp.tile(params["pe"][:s_prime], (B_blk, 1))          # (M, E) f32

    def replicated(arr):
        nd = arr.ndim
        return pl.BlockSpec(arr.shape, lambda i, _nd=nd: (0,) * _nd)

    operands = (x, params["enc_w"], params["enc_b"], pe,
                params["wqkv"], params["bqkv"], params["wo"], params["bo"],
                params["ln1_g"], params["ln1_b"], params["w1"], params["b1"],
                params["w2"], params["b2"], params["ln2_g"], params["ln2_b"],
                params["dec_w"], params["dec_b"], params["dcls_w"], params["dcls_b"])

    in_specs = ([pl.BlockSpec((M, dim_concat), lambda i: (i, 0))]
                + [replicated(a) for a in operands[1:]])

    out = pl.pallas_call(
        functools.partial(_fused_forward_kernel,
                          num_layers=num_layers,
                          num_heads=num_heads,
                          s_prime=s_prime),
        grid=(num_grid_steps,),
        in_specs=in_specs,
        out_specs=pl.BlockSpec((B_blk, n_leads, 4), lambda i: (i, 0, 0)),
        out_shape=jax.ShapeDtypeStruct((B, n_leads, 4), jnp.float32),
        compiler_params=pltpu.CompilerParams(
            dimension_semantics=("parallel",),
            vmem_limit_bytes=32 * 1024 * 1024),
    )(*operands)

    return out.reshape(B * n_leads, 4), []


# ---------------------------------- main ------------------------------------ #

if __name__ == "__main__":
    args = dict(
        seq_length=16,
        steps_concat=2,
        dim_model=32,
        num_heads=4,
        dim_inner=64,
        num_trans_layers=2,
    )
    N_LEADS = 12
    batch = 2
    s_prime = args["seq_length"] // args["steps_concat"]
    dim_concat = N_LEADS * args["steps_concat"]

    key = jax.random.PRNGKey(0)
    k_param, k_data = jax.random.split(key)

    params = init_params(
        k_param,
        dim_concat=dim_concat,
        dim_model=args["dim_model"],
        num_heads=args["num_heads"],
        dim_inner=args["dim_inner"],
        num_layers=args["num_trans_layers"],
        n_leads=N_LEADS,
        s_prime=s_prime,
        max_len=64,   # only the first S'=8 positions are used
    )

    src = jax.random.normal(k_data, (batch, N_LEADS, args["seq_length"]), jnp.float32)
    dummyvar = jnp.zeros((), jnp.float32)

    fwd = jax.jit(functools.partial(
        my_transformer_forward,
        steps_concat=args["steps_concat"],
        num_heads=args["num_heads"],
        n_leads=N_LEADS,
    ))

    output, aux = fwd(params, src, dummyvar)
    output = jax.block_until_ready(output)
    assert output.shape == (batch * N_LEADS, 4), output.shape
    assert aux == []
    print("KERNEL_OK")
</pallas_src>

<mosaic_0001>
module attributes {stable_mosaic.version = 11 : i64} {
  func.func @_fused_forward_kernel(%arg0: i32, %arg1: memref<16x24xbf16, #tpu.memory_space<vmem>>, %arg2: memref<24x32xbf16, #tpu.memory_space<vmem>>, %arg3: memref<1x32xf32, #tpu.memory_space<vmem>>, %arg4: memref<16x32xf32, #tpu.memory_space<vmem>>, %arg5: memref<2x32x96xbf16, #tpu.memory_space<vmem>>, %arg6: memref<2x1x96xf32, #tpu.memory_space<vmem>>, %arg7: memref<2x4x8x32xbf16, #tpu.memory_space<vmem>>, %arg8: memref<2x1x32xf32, #tpu.memory_space<vmem>>, %arg9: memref<2x1x32xf32, #tpu.memory_space<vmem>>, %arg10: memref<2x1x32xf32, #tpu.memory_space<vmem>>, %arg11: memref<2x32x64xbf16, #tpu.memory_space<vmem>>, %arg12: memref<2x1x64xf32, #tpu.memory_space<vmem>>, %arg13: memref<2x64x32xbf16, #tpu.memory_space<vmem>>, %arg14: memref<2x1x32xf32, #tpu.memory_space<vmem>>, %arg15: memref<2x1x32xf32, #tpu.memory_space<vmem>>, %arg16: memref<2x1x32xf32, #tpu.memory_space<vmem>>, %arg17: memref<32x12xbf16, #tpu.memory_space<vmem>>, %arg18: memref<1x12xf32, #tpu.memory_space<vmem>>, %arg19: memref<8x4xbf16, #tpu.memory_space<vmem>>, %arg20: memref<1x4xf32, #tpu.memory_space<vmem>>, %arg21: memref<2x12x4xf32, #tpu.memory_space<vmem>>) attributes {dimension_semantics = [#tpu.dimension_semantics<parallel>], iteration_bounds = array<i64: 1>, scalar_prefetch = 0 : i64, scratch_operands = 0 : i64, tpu.core_type = #tpu.core_type<tc>, window_params = [{transform_indices = @transform_0, window_bounds = array<i64: 16, 24>}, {pipeline_mode = #tpu.pipeline_mode<synchronous>, transform_indices = @transform_1, window_bounds = array<i64: 24, 32>}, {pipeline_mode = #tpu.pipeline_mode<synchronous>, transform_indices = @transform_2, window_bounds = array<i64: 1, 32>}, {pipeline_mode = #tpu.pipeline_mode<synchronous>, transform_indices = @transform_3, window_bounds = array<i64: 16, 32>}, {pipeline_mode = #tpu.pipeline_mode<synchronous>, transform_indices = @transform_4, window_bounds = array<i64: 2, 32, 96>}, {pipeline_mode = #tpu.pipeline_mode<synchronous>, transform_indices = @transform_5, window_bounds = array<i64: 2, 1, 96>}, {pipeline_mode = #tpu.pipeline_mode<synchronous>, transform_indices = @transform_6, window_bounds = array<i64: 2, 4, 8, 32>}, {pipeline_mode = #tpu.pipeline_mode<synchronous>, transform_indices = @transform_7, window_bounds = array<i64: 2, 1, 32>}, {pipeline_mode = #tpu.pipeline_mode<synchronous>, transform_indices = @transform_8, window_bounds = array<i64: 2, 1, 32>}, {pipeline_mode = #tpu.pipeline_mode<synchronous>, transform_indices = @transform_9, window_bounds = array<i64: 2, 1, 32>}, {pipeline_mode = #tpu.pipeline_mode<synchronous>, transform_indices = @transform_10, window_bounds = array<i64: 2, 32, 64>}, {pipeline_mode = #tpu.pipeline_mode<synchronous>, transform_indices = @transform_11, window_bounds = array<i64: 2, 1, 64>}, {pipeline_mode = #tpu.pipeline_mode<synchronous>, transform_indices = @transform_12, window_bounds = array<i64: 2, 64, 32>}, {pipeline_mode = #tpu.pipeline_mode<synchronous>, transform_indices = @transform_13, window_bounds = array<i64: 2, 1, 32>}, {pipeline_mode = #tpu.pipeline_mode<synchronous>, transform_indices = @transform_14, window_bounds = array<i64: 2, 1, 32>}, {pipeline_mode = #tpu.pipeline_mode<synchronous>, transform_indices = @transform_15, window_bounds = array<i64: 2, 1, 32>}, {pipeline_mode = #tpu.pipeline_mode<synchronous>, transform_indices = @transform_16, window_bounds = array<i64: 32, 12>}, {pipeline_mode = #tpu.pipeline_mode<synchronous>, transform_indices = @transform_17, window_bounds = array<i64: 1, 12>}, {pipeline_mode = #tpu.pipeline_mode<synchronous>, transform_indices = @transform_18, window_bounds = array<i64: 8, 4>}, {pipeline_mode = #tpu.pipeline_mode<synchronous>, transform_indices = @transform_19, window_bounds = array<i64: 1, 4>}, {transform_indices = @transform_20, window_bounds = array<i64: 2, 12, 4>}]} {
    %c0 = arith.constant 0 : index
    %c0_0 = arith.constant 0 : index
    %0 = vector.load %arg1[%c0, %c0_0] : memref<16x24xbf16, #tpu.memory_space<vmem>>, vector<16x24xbf16>
    %c0_1 = arith.constant 0 : index
    %c0_2 = arith.constant 0 : index
    %1 = vector.load %arg2[%c0_1, %c0_2] : memref<24x32xbf16, #tpu.memory_space<vmem>>, vector<24x32xbf16>
    %cst = arith.constant dense<0.000000e+00> : vector<16x32xf32>
    %2 = tpu.matmul %0, %1, %cst {dimension_numbers = #tpu.dot_dimension_numbers<[1], [0], [0], [1], [0, 0, 1, 1], [], []>} : vector<16x24xbf16>, vector<24x32xbf16>, vector<16x32xf32> -> vector<16x32xf32>
    %c0_3 = arith.constant 0 : index
    %c0_4 = arith.constant 0 : index
    %3 = vector.load %arg3[%c0_3, %c0_4] : memref<1x32xf32, #tpu.memory_space<vmem>>, vector<1x32xf32>
    %4 = vector.broadcast %3 : vector<1x32xf32> to vector<16x32xf32>
    %5 = arith.addf %2, %4 : vector<16x32xf32>
    %c0_5 = arith.constant 0 : index
    %c0_6 = arith.constant 0 : index
    %6 = vector.load %arg4[%c0_5, %c0_6] : memref<16x32xf32, #tpu.memory_space<vmem>>, vector<16x32xf32>
    %7 = arith.addf %5, %6 : vector<16x32xf32>
    %8 = arith.truncf %7 : vector<16x32xf32> to vector<16x32xbf16>
    %c0_7 = arith.constant 0 : index
    %c0_8 = arith.constant 0 : index
    %c0_9 = arith.constant 0 : index
    %9 = vector.load %arg5[%c0_7, %c0_8, %c0_9] : memref<2x32x96xbf16, #tpu.memory_space<vmem>>, vector<1x32x96xbf16>
    %10 = vector.shape_cast %9 : vector<1x32x96xbf16> to vector<32x96xbf16>
    %cst_10 = arith.constant dense<0.000000e+00> : vector<16x96xf32>
    %11 = tpu.matmul %8, %10, %cst_10 {dimension_numbers = #tpu.dot_dimension_numbers<[1], [0], [0], [1], [0, 0, 1, 1], [], []>} : vector<16x32xbf16>, vector<32x96xbf16>, vector<16x96xf32> -> vector<16x96xf32>
    %c0_11 = arith.constant 0 : index
    %c0_12 = arith.constant 0 : index
    %c0_13 = arith.constant 0 : index
    %12 = vector.load %arg6[%c0_11, %c0_12, %c0_13] : memref<2x1x96xf32, #tpu.memory_space<vmem>>, vector<1x1x96xf32>
    %13 = vector.shape_cast %12 : vector<1x1x96xf32> to vector<1x96xf32>
    %14 = vector.broadcast %13 : vector<1x96xf32> to vector<16x96xf32>
    %15 = arith.addf %11, %14 : vector<16x96xf32>
    %16 = arith.truncf %15 : vector<16x96xf32> to vector<16x96xbf16>
    %17 = vector.extract_strided_slice %16 {offsets = [0, 0], sizes = [8, 8], strides = [1, 1]} : vector<16x96xbf16> to vector<8x8xbf16>
    %18 = vector.extract_strided_slice %16 {offsets = [0, 32], sizes = [8, 8], strides = [1, 1]} : vector<16x96xbf16> to vector<8x8xbf16>
    %cst_14 = arith.constant dense<0.000000e+00> : vector<8x8xf32>
    %19 = tpu.matmul %17, %18, %cst_14 {dimension_numbers = #tpu.dot_dimension_numbers<[1], [1], [0], [0], [0, 0, 1, 0], [], []>} : vector<8x8xbf16>, vector<8x8xbf16>, vector<8x8xf32> -> vector<8x8xf32>
    %20 = vector.extract_strided_slice %16 {offsets = [0, 8], sizes = [8, 8], strides = [1, 1]} : vector<16x96xbf16> to vector<8x8xbf16>
    %21 = vector.extract_strided_slice %16 {offsets = [0, 40], sizes = [8, 8], strides = [1, 1]} : vector<16x96xbf16> to vector<8x8xbf16>
    %cst_15 = arith.constant dense<0.000000e+00> : vector<8x8xf32>
    %22 = tpu.matmul %20, %21, %cst_15 {dimension_numbers = #tpu.dot_dimension_numbers<[1], [1], [0], [0], [0, 0, 1, 0], [], []>} : vector<8x8xbf16>, vector<8x8xbf16>, vector<8x8xf32> -> vector<8x8xf32>
    %23 = vector.extract_strided_slice %16 {offsets = [0, 16], sizes = [8, 8], strides = [1, 1]} : vector<16x96xbf16> to vector<8x8xbf16>
    %24 = vector.extract_strided_slice %16 {offsets = [0, 48], sizes = [8, 8], strides = [1, 1]} : vector<16x96xbf16> to vector<8x8xbf16>
    %cst_16 = arith.constant dense<0.000000e+00> : vector<8x8xf32>
    %25 = tpu.matmul %23, %24, %cst_16 {dimension_numbers = #tpu.dot_dimension_numbers<[1], [1], [0], [0], [0, 0, 1, 0], [], []>} : vector<8x8xbf16>, vector<8x8xbf16>, vector<8x8xf32> -> vector<8x8xf32>
    %26 = vector.extract_strided_slice %16 {offsets = [0, 24], sizes = [8, 8], strides = [1, 1]} : vector<16x96xbf16> to vector<8x8xbf16>
    %27 = vector.extract_strided_slice %16 {offsets = [0, 56], sizes = [8, 8], strides = [1, 1]} : vector<16x96xbf16> to vector<8x8xbf16>
    %cst_17 = arith.constant dense<0.000000e+00> : vector<8x8xf32>
    %28 = tpu.matmul %26, %27, %cst_17 {dimension_numbers = #tpu.dot_dimension_numbers<[1], [1], [0], [0], [0, 0, 1, 0], [], []>} : vector<8x8xbf16>, vector<8x8xbf16>, vector<8x8xf32> -> vector<8x8xf32>
    %29 = vector.extract_strided_slice %16 {offsets = [8, 0], sizes = [8, 8], strides = [1, 1]} : vector<16x96xbf16> to vector<8x8xbf16>
    %30 = vector.extract_strided_slice %16 {offsets = [8, 32], sizes = [8, 8], strides = [1, 1]} : vector<16x96xbf16> to vector<8x8xbf16>
    %cst_18 = arith.constant dense<0.000000e+00> : vector<8x8xf32>
    %31 = tpu.matmul %29, %30, %cst_18 {dimension_numbers = #tpu.dot_dimension_numbers<[1], [1], [0], [0], [0, 0, 1, 0], [], []>} : vector<8x8xbf16>, vector<8x8xbf16>, vector<8x8xf32> -> vector<8x8xf32>
    %32 = vector.extract_strided_slice %16 {offsets = [8, 8], sizes = [8, 8], strides = [1, 1]} : vector<16x96xbf16> to vector<8x8xbf16>
    %33 = vector.extract_strided_slice %16 {offsets = [8, 40], sizes = [8, 8], strides = [1, 1]} : vector<16x96xbf16> to vector<8x8xbf16>
    %cst_19 = arith.constant dense<0.000000e+00> : vector<8x8xf32>
    %34 = tpu.matmul %32, %33, %cst_19 {dimension_numbers = #tpu.dot_dimension_numbers<[1], [1], [0], [0], [0, 0, 1, 0], [], []>} : vector<8x8xbf16>, vector<8x8xbf16>, vector<8x8xf32> -> vector<8x8xf32>
    %35 = vector.extract_strided_slice %16 {offsets = [8, 16], sizes = [8, 8], strides = [1, 1]} : vector<16x96xbf16> to vector<8x8xbf16>
    %36 = vector.extract_strided_slice %16 {offsets = [8, 48], sizes = [8, 8], strides = [1, 1]} : vector<16x96xbf16> to vector<8x8xbf16>
    %cst_20 = arith.constant dense<0.000000e+00> : vector<8x8xf32>
    %37 = tpu.matmul %35, %36, %cst_20 {dimension_numbers = #tpu.dot_dimension_numbers<[1], [1], [0], [0], [0, 0, 1, 0], [], []>} : vector<8x8xbf16>, vector<8x8xbf16>, vector<8x8xf32> -> vector<8x8xf32>
    %38 = vector.extract_strided_slice %16 {offsets = [8, 24], sizes = [8, 8], strides = [1, 1]} : vector<16x96xbf16> to vector<8x8xbf16>
    %39 = vector.extract_strided_slice %16 {offsets = [8, 56], sizes = [8, 8], strides = [1, 1]} : vector<16x96xbf16> to vector<8x8xbf16>
    %cst_21 = arith.constant dense<0.000000e+00> : vector<8x8xf32>
    %40 = tpu.matmul %38, %39, %cst_21 {dimension_numbers = #tpu.dot_dimension_numbers<[1], [1], [0], [0], [0, 0, 1, 0], [], []>} : vector<8x8xbf16>, vector<8x8xbf16>, vector<8x8xf32> -> vector<8x8xf32>
    %41 = tpu.concatenate %19, %22, %25, %28, %31, %34, %37, %40 in 0 : vector<8x8xf32>, vector<8x8xf32>, vector<8x8xf32>, vector<8x8xf32>, vector<8x8xf32>, vector<8x8xf32>, vector<8x8xf32>, vector<8x8xf32> -> vector<64x8xf32>
    %cst_22 = arith.constant dense<0xFF800000> : vector<64xf32>
    %42 = vector.multi_reduction <maximumf>, %41, %cst_22 [1] : vector<64x8xf32> to vector<64xf32>
    %43 = vector.shape_cast %42 : vector<64xf32> to vector<64x1xf32>
    %44 = vector.broadcast %43 : vector<64x1xf32> to vector<64x8xf32>
    %45 = arith.subf %41, %44 : vector<64x8xf32>
    %46 = math.exp %45 : vector<64x8xf32>
    %cst_23 = arith.constant dense<0.000000e+00> : vector<64xf32>
    %47 = vector.multi_reduction <add>, %46, %cst_23 [1] : vector<64x8xf32> to vector<64xf32>
    %48 = vector.shape_cast %47 : vector<64xf32> to vector<64x1xf32>
    %49 = tpu.reciprocal %48 {approx = true} : vector<64x1xf32> -> vector<64x1xf32>
    %50 = vector.broadcast %49 : vector<64x1xf32> to vector<64x8xf32>
    %51 = arith.mulf %46, %50 : vector<64x8xf32>
    %52 = arith.truncf %51 : vector<64x8xf32> to vector<64x8xbf16>
    %c0_24 = arith.constant 0 : index
    %c0_25 = arith.constant 0 : index
    %c0_26 = arith.constant 0 : index
    %c0_27 = arith.constant 0 : index
    %53 = vector.load %arg7[%c0_24, %c0_25, %c0_26, %c0_27] : memref<2x4x8x32xbf16, #tpu.memory_space<vmem>>, vector<1x4x8x32xbf16>
    %54 = vector.shape_cast %53 : vector<1x4x8x32xbf16> to vector<4x8x32xbf16>
    %cst_28 = arith.constant 0.000000e+00 : f32
    %55 = vector.broadcast %cst_28 : f32 to vector<16x32xf32>
    %56 = vector.extract_strided_slice %52 {offsets = [0, 0], sizes = [8, 8], strides = [1, 1]} : vector<64x8xbf16> to vector<8x8xbf16>
    %57 = vector.extract_strided_slice %16 {offsets = [0, 64], sizes = [8, 8], strides = [1, 1]} : vector<16x96xbf16> to vector<8x8xbf16>
    %cst_29 = arith.constant dense<0.000000e+00> : vector<8x8xf32>
    %58 = tpu.matmul %56, %57, %cst_29 {dimension_numbers = #tpu.dot_dimension_numbers<[1], [0], [0], [1], [0, 0, 1, 1], [], []>} : vector<8x8xbf16>, vector<8x8xbf16>, vector<8x8xf32> -> vector<8x8xf32>
    %59 = vector.extract_strided_slice %52 {offsets = [32, 0], sizes = [8, 8], strides = [1, 1]} : vector<64x8xbf16> to vector<8x8xbf16>
    %60 = vector.extract_strided_slice %16 {offsets = [8, 64], sizes = [8, 8], strides = [1, 1]} : vector<16x96xbf16> to vector<8x8xbf16>
    %cst_30 = arith.constant dense<0.000000e+00> : vector<8x8xf32>
    %61 = tpu.matmul %59, %60, %cst_30 {dimension_numbers = #tpu.dot_dimension_numbers<[1], [0], [0], [1], [0, 0, 1, 1], [], []>} : vector<8x8xbf16>, vector<8x8xbf16>, vector<8x8xf32> -> vector<8x8xf32>
    %62 = tpu.concatenate %58, %61 in 0 : vector<8x8xf32>, vector<8x8xf32> -> vector<16x8xf32>
    %63 = arith.truncf %62 : vector<16x8xf32> to vector<16x8xbf16>
    %64 = vector.extract_strided_slice %54 {offsets = [0, 0, 0], sizes = [1, 8, 32], strides = [1, 1, 1]} : vector<4x8x32xbf16> to vector<1x8x32xbf16>
    %65 = vector.shape_cast %64 : vector<1x8x32xbf16> to vector<8x32xbf16>
    %cst_31 = arith.constant dense<0.000000e+00> : vector<16x32xf32>
    %66 = tpu.matmul %63, %65, %cst_31 {dimension_numbers = #tpu.dot_dimension_numbers<[1], [0], [0], [1], [0, 0, 1, 1], [], []>} : vector<16x8xbf16>, vector<8x32xbf16>, vector<16x32xf32> -> vector<16x32xf32>
    %67 = arith.addf %55, %66 : vector<16x32xf32>
    %68 = vector.extract_strided_slice %52 {offsets = [8, 0], sizes = [8, 8], strides = [1, 1]} : vector<64x8xbf16> to vector<8x8xbf16>
    %69 = vector.extract_strided_slice %16 {offsets = [0, 72], sizes = [8, 8], strides = [1, 1]} : vector<16x96xbf16> to vector<8x8xbf16>
    %cst_32 = arith.constant dense<0.000000e+00> : vector<8x8xf32>
    %70 = tpu.matmul %68, %69, %cst_32 {dimension_numbers = #tpu.dot_dimension_numbers<[1], [0], [0], [1], [0, 0, 1, 1], [], []>} : vector<8x8xbf16>, vector<8x8xbf16>, vector<8x8xf32> -> vector<8x8xf32>
    %71 = vector.extract_strided_slice %52 {offsets = [40, 0], sizes = [8, 8], strides = [1, 1]} : vector<64x8xbf16> to vector<8x8xbf16>
    %72 = vector.extract_strided_slice %16 {offsets = [8, 72], sizes = [8, 8], strides = [1, 1]} : vector<16x96xbf16> to vector<8x8xbf16>
    %cst_33 = arith.constant dense<0.000000e+00> : vector<8x8xf32>
    %73 = tpu.matmul %71, %72, %cst_33 {dimension_numbers = #tpu.dot_dimension_numbers<[1], [0], [0], [1], [0, 0, 1, 1], [], []>} : vector<8x8xbf16>, vector<8x8xbf16>, vector<8x8xf32> -> vector<8x8xf32>
    %74 = tpu.concatenate %70, %73 in 0 : vector<8x8xf32>, vector<8x8xf32> -> vector<16x8xf32>
    %75 = arith.truncf %74 : vector<16x8xf32> to vector<16x8xbf16>
    %76 = vector.extract_strided_slice %54 {offsets = [1, 0, 0], sizes = [1, 8, 32], strides = [1, 1, 1]} : vector<4x8x32xbf16> to vector<1x8x32xbf16>
    %77 = vector.shape_cast %76 : vector<1x8x32xbf16> to vector<8x32xbf16>
    %cst_34 = arith.constant dense<0.000000e+00> : vector<16x32xf32>
    %78 = tpu.matmul %75, %77, %cst_34 {dimension_numbers = #tpu.dot_dimension_numbers<[1], [0], [0], [1], [0, 0, 1, 1], [], []>} : vector<16x8xbf16>, vector<8x32xbf16>, vector<16x32xf32> -> vector<16x32xf32>
    %79 = arith.addf %67, %78 : vector<16x32xf32>
    %80 = vector.extract_strided_slice %52 {offsets = [16, 0], sizes = [8, 8], strides = [1, 1]} : vector<64x8xbf16> to vector<8x8xbf16>
    %81 = vector.extract_strided_slice %16 {offsets = [0, 80], sizes = [8, 8], strides = [1, 1]} : vector<16x96xbf16> to vector<8x8xbf16>
    %cst_35 = arith.constant dense<0.000000e+00> : vector<8x8xf32>
    %82 = tpu.matmul %80, %81, %cst_35 {dimension_numbers = #tpu.dot_dimension_numbers<[1], [0], [0], [1], [0, 0, 1, 1], [], []>} : vector<8x8xbf16>, vector<8x8xbf16>, vector<8x8xf32> -> vector<8x8xf32>
    %83 = vector.extract_strided_slice %52 {offsets = [48, 0], sizes = [8, 8], strides = [1, 1]} : vector<64x8xbf16> to vector<8x8xbf16>
    %84 = vector.extract_strided_slice %16 {offsets = [8, 80], sizes = [8, 8], strides = [1, 1]} : vector<16x96xbf16> to vector<8x8xbf16>
    %cst_36 = arith.constant dense<0.000000e+00> : vector<8x8xf32>
    %85 = tpu.matmul %83, %84, %cst_36 {dimension_numbers = #tpu.dot_dimension_numbers<[1], [0], [0], [1], [0, 0, 1, 1], [], []>} : vector<8x8xbf16>, vector<8x8xbf16>, vector<8x8xf32> -> vector<8x8xf32>
    %86 = tpu.concatenate %82, %85 in 0 : vector<8x8xf32>, vector<8x8xf32> -> vector<16x8xf32>
    %87 = arith.truncf %86 : vector<16x8xf32> to vector<16x8xbf16>
    %88 = vector.extract_strided_slice %54 {offsets = [2, 0, 0], sizes = [1, 8, 32], strides = [1, 1, 1]} : vector<4x8x32xbf16> to vector<1x8x32xbf16>
    %89 = vector.shape_cast %88 : vector<1x8x32xbf16> to vector<8x32xbf16>
    %cst_37 = arith.constant dense<0.000000e+00> : vector<16x32xf32>
    %90 = tpu.matmul %87, %89, %cst_37 {dimension_numbers = #tpu.dot_dimension_numbers<[1], [0], [0], [1], [0, 0, 1, 1], [], []>} : vector<16x8xbf16>, vector<8x32xbf16>, vector<16x32xf32> -> vector<16x32xf32>
    %91 = arith.addf %79, %90 : vector<16x32xf32>
    %92 = vector.extract_strided_slice %52 {offsets = [24, 0], sizes = [8, 8], strides = [1, 1]} : vector<64x8xbf16> to vector<8x8xbf16>
    %93 = vector.extract_strided_slice %16 {offsets = [0, 88], sizes = [8, 8], strides = [1, 1]} : vector<16x96xbf16> to vector<8x8xbf16>
    %cst_38 = arith.constant dense<0.000000e+00> : vector<8x8xf32>
    %94 = tpu.matmul %92, %93, %cst_38 {dimension_numbers = #tpu.dot_dimension_numbers<[1], [0], [0], [1], [0, 0, 1, 1], [], []>} : vector<8x8xbf16>, vector<8x8xbf16>, vector<8x8xf32> -> vector<8x8xf32>
    %95 = vector.extract_strided_slice %52 {offsets = [56, 0], sizes = [8, 8], strides = [1, 1]} : vector<64x8xbf16> to vector<8x8xbf16>
    %96 = vector.extract_strided_slice %16 {offsets = [8, 88], sizes = [8, 8], strides = [1, 1]} : vector<16x96xbf16> to vector<8x8xbf16>
    %cst_39 = arith.constant dense<0.000000e+00> : vector<8x8xf32>
    %97 = tpu.matmul %95, %96, %cst_39 {dimension_numbers = #tpu.dot_dimension_numbers<[1], [0], [0], [1], [0, 0, 1, 1], [], []>} : vector<8x8xbf16>, vector<8x8xbf16>, vector<8x8xf32> -> vector<8x8xf32>
    %98 = tpu.concatenate %94, %97 in 0 : vector<8x8xf32>, vector<8x8xf32> -> vector<16x8xf32>
    %99 = arith.truncf %98 : vector<16x8xf32> to vector<16x8xbf16>
    %100 = vector.extract_strided_slice %54 {offsets = [3, 0, 0], sizes = [1, 8, 32], strides = [1, 1, 1]} : vector<4x8x32xbf16> to vector<1x8x32xbf16>
    %101 = vector.shape_cast %100 : vector<1x8x32xbf16> to vector<8x32xbf16>
    %cst_40 = arith.constant dense<0.000000e+00> : vector<16x32xf32>
    %102 = tpu.matmul %99, %101, %cst_40 {dimension_numbers = #tpu.dot_dimension_numbers<[1], [0], [0], [1], [0, 0, 1, 1], [], []>} : vector<16x8xbf16>, vector<8x32xbf16>, vector<16x32xf32> -> vector<16x32xf32>
    %103 = arith.addf %91, %102 : vector<16x32xf32>
    %c0_41 = arith.constant 0 : index
    %c0_42 = arith.constant 0 : index
    %c0_43 = arith.constant 0 : index
    %104 = vector.load %arg8[%c0_41, %c0_42, %c0_43] : memref<2x1x32xf32, #tpu.memory_space<vmem>>, vector<1x1x32xf32>
    %105 = vector.shape_cast %104 : vector<1x1x32xf32> to vector<1x32xf32>
    %106 = vector.broadcast %105 : vector<1x32xf32> to vector<16x32xf32>
    %107 = arith.addf %103, %106 : vector<16x32xf32>
    %108 = arith.addf %7, %107 : vector<16x32xf32>
    %c0_44 = arith.constant 0 : index
    %c0_45 = arith.constant 0 : index
    %c0_46 = arith.constant 0 : index
    %109 = vector.load %arg9[%c0_44, %c0_45, %c0_46] : memref<2x1x32xf32, #tpu.memory_space<vmem>>, vector<1x1x32xf32>
    %110 = vector.shape_cast %109 : vector<1x1x32xf32> to vector<1x32xf32>
    %c0_47 = arith.constant 0 : index
    %c0_48 = arith.constant 0 : index
    %c0_49 = arith.constant 0 : index
    %111 = vector.load %arg10[%c0_47, %c0_48, %c0_49] : memref<2x1x32xf32, #tpu.memory_space<vmem>>, vector<1x1x32xf32>
    %112 = vector.shape_cast %111 : vector<1x1x32xf32> to vector<1x32xf32>
    %cst_50 = arith.constant dense<0.000000e+00> : vector<16xf32>
    %113 = vector.multi_reduction <add>, %108, %cst_50 [1] : vector<16x32xf32> to vector<16xf32>
    %114 = vector.shape_cast %113 : vector<16xf32> to vector<16x1xf32>
    %cst_51 = arith.constant 3.200000e+01 : f32
    %115 = vector.broadcast %cst_51 : f32 to vector<16x1xf32>
    %116 = arith.divf %114, %115 : vector<16x1xf32>
    %117 = arith.mulf %108, %108 : vector<16x32xf32>
    %cst_52 = arith.constant dense<0.000000e+00> : vector<16xf32>
    %118 = vector.multi_reduction <add>, %117, %cst_52 [1] : vector<16x32xf32> to vector<16xf32>
    %119 = vector.shape_cast %118 : vector<16xf32> to vector<16x1xf32>
    %cst_53 = arith.constant 3.200000e+01 : f32
    %120 = vector.broadcast %cst_53 : f32 to vector<16x1xf32>
    %121 = arith.divf %119, %120 : vector<16x1xf32>
    %122 = arith.mulf %116, %116 : vector<16x1xf32>
    %123 = arith.subf %121, %122 : vector<16x1xf32>
    %cst_54 = arith.constant 0.000000e+00 : f32
    %124 = vector.broadcast %cst_54 : f32 to vector<16x1xf32>
    %125 = arith.maximumf %123, %124 : vector<16x1xf32>
    %126 = vector.broadcast %116 : vector<16x1xf32> to vector<16x32xf32>
    %127 = arith.subf %108, %126 : vector<16x32xf32>
    %cst_55 = arith.constant 9.99999974E-6 : f32
    %128 = vector.broadcast %cst_55 : f32 to vector<16x1xf32>
    %129 = arith.addf %125, %128 : vector<16x1xf32>
    %130 = math.rsqrt %129 : vector<16x1xf32>
    %131 = vector.broadcast %130 : vector<16x1xf32> to vector<16x32xf32>
    %132 = arith.mulf %127, %131 : vector<16x32xf32>
    %133 = vector.broadcast %110 : vector<1x32xf32> to vector<16x32xf32>
    %134 = arith.mulf %132, %133 : vector<16x32xf32>
    %135 = vector.broadcast %112 : vector<1x32xf32> to vector<16x32xf32>
    %136 = arith.addf %134, %135 : vector<16x32xf32>
    %137 = arith.truncf %136 : vector<16x32xf32> to vector<16x32xbf16>
    %c0_56 = arith.constant 0 : index
    %c0_57 = arith.constant 0 : index
    %c0_58 = arith.constant 0 : index
    %138 = vector.load %arg11[%c0_56, %c0_57, %c0_58] : memref<2x32x64xbf16, #tpu.memory_space<vmem>>, vector<1x32x64xbf16>
    %139 = vector.shape_cast %138 : vector<1x32x64xbf16> to vector<32x64xbf16>
    %cst_59 = arith.constant dense<0.000000e+00> : vector<16x64xf32>
    %140 = tpu.matmul %137, %139, %cst_59 {dimension_numbers = #tpu.dot_dimension_numbers<[1], [0], [0], [1], [0, 0, 1, 1], [], []>} : vector<16x32xbf16>, vector<32x64xbf16>, vector<16x64xf32> -> vector<16x64xf32>
    %c0_60 = arith.constant 0 : index
    %c0_61 = arith.constant 0 : index
    %c0_62 = arith.constant 0 : index
    %141 = vector.load %arg12[%c0_60, %c0_61, %c0_62] : memref<2x1x64xf32, #tpu.memory_space<vmem>>, vector<1x1x64xf32>
    %142 = vector.shape_cast %141 : vector<1x1x64xf32> to vector<1x64xf32>
    %143 = vector.broadcast %142 : vector<1x64xf32> to vector<16x64xf32>
    %144 = arith.addf %140, %143 : vector<16x64xf32>
    %cst_63 = arith.constant 0.000000e+00 : f32
    %145 = vector.broadcast %cst_63 : f32 to vector<16x64xf32>
    %146 = arith.maximumf %144, %145 : vector<16x64xf32>
    %147 = arith.truncf %146 : vector<16x64xf32> to vector<16x64xbf16>
    %c0_64 = arith.constant 0 : index
    %c0_65 = arith.constant 0 : index
    %c0_66 = arith.constant 0 : index
    %148 = vector.load %arg13[%c0_64, %c0_65, %c0_66] : memref<2x64x32xbf16, #tpu.memory_space<vmem>>, vector<1x64x32xbf16>
    %149 = vector.shape_cast %148 : vector<1x64x32xbf16> to vector<64x32xbf16>
    %cst_67 = arith.constant dense<0.000000e+00> : vector<16x32xf32>
    %150 = tpu.matmul %147, %149, %cst_67 {dimension_numbers = #tpu.dot_dimension_numbers<[1], [0], [0], [1], [0, 0, 1, 1], [], []>} : vector<16x64xbf16>, vector<64x32xbf16>, vector<16x32xf32> -> vector<16x32xf32>
    %c0_68 = arith.constant 0 : index
    %c0_69 = arith.constant 0 : index
    %c0_70 = arith.constant 0 : index
    %151 = vector.load %arg14[%c0_68, %c0_69, %c0_70] : memref<2x1x32xf32, #tpu.memory_space<vmem>>, vector<1x1x32xf32>
    %152 = vector.shape_cast %151 : vector<1x1x32xf32> to vector<1x32xf32>
    %153 = vector.broadcast %152 : vector<1x32xf32> to vector<16x32xf32>
    %154 = arith.addf %150, %153 : vector<16x32xf32>
    %155 = arith.addf %136, %154 : vector<16x32xf32>
    %c0_71 = arith.constant 0 : index
    %c0_72 = arith.constant 0 : index
    %c0_73 = arith.constant 0 : index
    %156 = vector.load %arg15[%c0_71, %c0_72, %c0_73] : memref<2x1x32xf32, #tpu.memory_space<vmem>>, vector<1x1x32xf32>
    %157 = vector.shape_cast %156 : vector<1x1x32xf32> to vector<1x32xf32>
    %c0_74 = arith.constant 0 : index
    %c0_75 = arith.constant 0 : index
    %c0_76 = arith.constant 0 : index
    %158 = vector.load %arg16[%c0_74, %c0_75, %c0_76] : memref<2x1x32xf32, #tpu.memory_space<vmem>>, vector<1x1x32xf32>
    %159 = vector.shape_cast %158 : vector<1x1x32xf32> to vector<1x32xf32>
    %cst_77 = arith.constant dense<0.000000e+00> : vector<16xf32>
    %160 = vector.multi_reduction <add>, %155, %cst_77 [1] : vector<16x32xf32> to vector<16xf32>
    %161 = vector.shape_cast %160 : vector<16xf32> to vector<16x1xf32>
    %cst_78 = arith.constant 3.200000e+01 : f32
    %162 = vector.broadcast %cst_78 : f32 to vector<16x1xf32>
    %163 = arith.divf %161, %162 : vector<16x1xf32>
    %164 = arith.mulf %155, %155 : vector<16x32xf32>
    %cst_79 = arith.constant dense<0.000000e+00> : vector<16xf32>
    %165 = vector.multi_reduction <add>, %164, %cst_79 [1] : vector<16x32xf32> to vector<16xf32>
    %166 = vector.shape_cast %165 : vector<16xf32> to vector<16x1xf32>
    %cst_80 = arith.constant 3.200000e+01 : f32
    %167 = vector.broadcast %cst_80 : f32 to vector<16x1xf32>
    %168 = arith.divf %166, %167 : vector<16x1xf32>
    %169 = arith.mulf %163, %163 : vector<16x1xf32>
    %170 = arith.subf %168, %169 : vector<16x1xf32>
    %cst_81 = arith.constant 0.000000e+00 : f32
    %171 = vector.broadcast %cst_81 : f32 to vector<16x1xf32>
    %172 = arith.maximumf %170, %171 : vector<16x1xf32>
    %173 = vector.broadcast %163 : vector<16x1xf32> to vector<16x32xf32>
    %174 = arith.subf %155, %173 : vector<16x32xf32>
    %cst_82 = arith.constant 9.99999974E-6 : f32
    %175 = vector.broadcast %cst_82 : f32 to vector<16x1xf32>
    %176 = arith.addf %172, %175 : vector<16x1xf32>
    %177 = math.rsqrt %176 : vector<16x1xf32>
    %178 = vector.broadcast %177 : vector<16x1xf32> to vector<16x32xf32>
    %179 = arith.mulf %174, %178 : vector<16x32xf32>
    %180 = vector.broadcast %157 : vector<1x32xf32> to vector<16x32xf32>
    %181 = arith.mulf %179, %180 : vector<16x32xf32>
    %182 = vector.broadcast %159 : vector<1x32xf32> to vector<16x32xf32>
    %183 = arith.addf %181, %182 : vector<16x32xf32>
    %184 = arith.truncf %183 : vector<16x32xf32> to vector<16x32xbf16>
    %c1 = arith.constant 1 : index
    %c0_83 = arith.constant 0 : index
    %c0_84 = arith.constant 0 : index
    %185 = vector.load %arg5[%c1, %c0_83, %c0_84] : memref<2x32x96xbf16, #tpu.memory_space<vmem>>, vector<1x32x96xbf16>
    %186 = vector.shape_cast %185 : vector<1x32x96xbf16> to vector<32x96xbf16>
    %cst_85 = arith.constant dense<0.000000e+00> : vector<16x96xf32>
    %187 = tpu.matmul %184, %186, %cst_85 {dimension_numbers = #tpu.dot_dimension_numbers<[1], [0], [0], [1], [0, 0, 1, 1], [], []>} : vector<16x32xbf16>, vector<32x96xbf16>, vector<16x96xf32> -> vector<16x96xf32>
    %c1_86 = arith.constant 1 : index
    %c0_87 = arith.constant 0 : index
    %c0_88 = arith.constant 0 : index
    %188 = vector.load %arg6[%c1_86, %c0_87, %c0_88] : memref<2x1x96xf32, #tpu.memory_space<vmem>>, vector<1x1x96xf32>
    %189 = vector.shape_cast %188 : vector<1x1x96xf32> to vector<1x96xf32>
    %190 = vector.broadcast %189 : vector<1x96xf32> to vector<16x96xf32>
    %191 = arith.addf %187, %190 : vector<16x96xf32>
    %192 = arith.truncf %191 : vector<16x96xf32> to vector<16x96xbf16>
    %193 = vector.extract_strided_slice %192 {offsets = [0, 0], sizes = [8, 8], strides = [1, 1]} : vector<16x96xbf16> to vector<8x8xbf16>
    %194 = vector.extract_strided_slice %192 {offsets = [0, 32], sizes = [8, 8], strides = [1, 1]} : vector<16x96xbf16> to vector<8x8xbf16>
    %cst_89 = arith.constant dense<0.000000e+00> : vector<8x8xf32>
    %195 = tpu.matmul %193, %194, %cst_89 {dimension_numbers = #tpu.dot_dimension_numbers<[1], [1], [0], [0], [0, 0, 1, 0], [], []>} : vector<8x8xbf16>, vector<8x8xbf16>, vector<8x8xf32> -> vector<8x8xf32>
    %196 = vector.extract_strided_slice %192 {offsets = [0, 8], sizes = [8, 8], strides = [1, 1]} : vector<16x96xbf16> to vector<8x8xbf16>
    %197 = vector.extract_strided_slice %192 {offsets = [0, 40], sizes = [8, 8], strides = [1, 1]} : vector<16x96xbf16> to vector<8x8xbf16>
    %cst_90 = arith.constant dense<0.000000e+00> : vector<8x8xf32>
    %198 = tpu.matmul %196, %197, %cst_90 {dimension_numbers = #tpu.dot_dimension_numbers<[1], [1], [0], [0], [0, 0, 1, 0], [], []>} : vector<8x8xbf16>, vector<8x8xbf16>, vector<8x8xf32> -> vector<8x8xf32>
    %199 = vector.extract_strided_slice %192 {offsets = [0, 16], sizes = [8, 8], strides = [1, 1]} : vector<16x96xbf16> to vector<8x8xbf16>
    %200 = vector.extract_strided_slice %192 {offsets = [0, 48], sizes = [8, 8], strides = [1, 1]} : vector<16x96xbf16> to vector<8x8xbf16>
    %cst_91 = arith.constant dense<0.000000e+00> : vector<8x8xf32>
    %201 = tpu.matmul %199, %200, %cst_91 {dimension_numbers = #tpu.dot_dimension_numbers<[1], [1], [0], [0], [0, 0, 1, 0], [], []>} : vector<8x8xbf16>, vector<8x8xbf16>, vector<8x8xf32> -> vector<8x8xf32>
    %202 = vector.extract_strided_slice %192 {offsets = [0, 24], sizes = [8, 8], strides = [1, 1]} : vector<16x96xbf16> to vector<8x8xbf16>
    %203 = vector.extract_strided_slice %192 {offsets = [0, 56], sizes = [8, 8], strides = [1, 1]} : vector<16x96xbf16> to vector<8x8xbf16>
    %cst_92 = arith.constant dense<0.000000e+00> : vector<8x8xf32>
    %204 = tpu.matmul %202, %203, %cst_92 {dimension_numbers = #tpu.dot_dimension_numbers<[1], [1], [0], [0], [0, 0, 1, 0], [], []>} : vector<8x8xbf16>, vector<8x8xbf16>, vector<8x8xf32> -> vector<8x8xf32>
    %205 = vector.extract_strided_slice %192 {offsets = [8, 0], sizes = [8, 8], strides = [1, 1]} : vector<16x96xbf16> to vector<8x8xbf16>
    %206 = vector.extract_strided_slice %192 {offsets = [8, 32], sizes = [8, 8], strides = [1, 1]} : vector<16x96xbf16> to vector<8x8xbf16>
    %cst_93 = arith.constant dense<0.000000e+00> : vector<8x8xf32>
    %207 = tpu.matmul %205, %206, %cst_93 {dimension_numbers = #tpu.dot_dimension_numbers<[1], [1], [0], [0], [0, 0, 1, 0], [], []>} : vector<8x8xbf16>, vector<8x8xbf16>, vector<8x8xf32> -> vector<8x8xf32>
    %208 = vector.extract_strided_slice %192 {offsets = [8, 8], sizes = [8, 8], strides = [1, 1]} : vector<16x96xbf16> to vector<8x8xbf16>
    %209 = vector.extract_strided_slice %192 {offsets = [8, 40], sizes = [8, 8], strides = [1, 1]} : vector<16x96xbf16> to vector<8x8xbf16>
    %cst_94 = arith.constant dense<0.000000e+00> : vector<8x8xf32>
    %210 = tpu.matmul %208, %209, %cst_94 {dimension_numbers = #tpu.dot_dimension_numbers<[1], [1], [0], [0], [0, 0, 1, 0], [], []>} : vector<8x8xbf16>, vector<8x8xbf16>, vector<8x8xf32> -> vector<8x8xf32>
    %211 = vector.extract_strided_slice %192 {offsets = [8, 16], sizes = [8, 8], strides = [1, 1]} : vector<16x96xbf16> to vector<8x8xbf16>
    %212 = vector.extract_strided_slice %192 {offsets = [8, 48], sizes = [8, 8], strides = [1, 1]} : vector<16x96xbf16> to vector<8x8xbf16>
    %cst_95 = arith.constant dense<0.000000e+00> : vector<8x8xf32>
    %213 = tpu.matmul %211, %212, %cst_95 {dimension_numbers = #tpu.dot_dimension_numbers<[1], [1], [0], [0], [0, 0, 1, 0], [], []>} : vector<8x8xbf16>, vector<8x8xbf16>, vector<8x8xf32> -> vector<8x8xf32>
    %214 = vector.extract_strided_slice %192 {offsets = [8, 24], sizes = [8, 8], strides = [1, 1]} : vector<16x96xbf16> to vector<8x8xbf16>
    %215 = vector.extract_strided_slice %192 {offsets = [8, 56], sizes = [8, 8], strides = [1, 1]} : vector<16x96xbf16> to vector<8x8xbf16>
    %cst_96 = arith.constant dense<0.000000e+00> : vector<8x8xf32>
    %216 = tpu.matmul %214, %215, %cst_96 {dimension_numbers = #tpu.dot_dimension_numbers<[1], [1], [0], [0], [0, 0, 1, 0], [], []>} : vector<8x8xbf16>, vector<8x8xbf16>, vector<8x8xf32> -> vector<8x8xf32>
    %217 = tpu.concatenate %195, %198, %201, %204, %207, %210, %213, %216 in 0 : vector<8x8xf32>, vector<8x8xf32>, vector<8x8xf32>, vector<8x8xf32>, vector<8x8xf32>, vector<8x8xf32>, vector<8x8xf32>, vector<8x8xf32> -> vector<64x8xf32>
    %cst_97 = arith.constant dense<0xFF800000> : vector<64xf32>
    %218 = vector.multi_reduction <maximumf>, %217, %cst_97 [1] : vector<64x8xf32> to vector<64xf32>
    %219 = vector.shape_cast %218 : vector<64xf32> to vector<64x1xf32>
    %220 = vector.broadcast %219 : vector<64x1xf32> to vector<64x8xf32>
    %221 = arith.subf %217, %220 : vector<64x8xf32>
    %222 = math.exp %221 : vector<64x8xf32>
    %cst_98 = arith.constant dense<0.000000e+00> : vector<64xf32>
    %223 = vector.multi_reduction <add>, %222, %cst_98 [1] : vector<64x8xf32> to vector<64xf32>
    %224 = vector.shape_cast %223 : vector<64xf32> to vector<64x1xf32>
    %225 = tpu.reciprocal %224 {approx = true} : vector<64x1xf32> -> vector<64x1xf32>
    %226 = vector.broadcast %225 : vector<64x1xf32> to vector<64x8xf32>
    %227 = arith.mulf %222, %226 : vector<64x8xf32>
    %228 = arith.truncf %227 : vector<64x8xf32> to vector<64x8xbf16>
    %c1_99 = arith.constant 1 : index
    %c0_100 = arith.constant 0 : index
    %c0_101 = arith.constant 0 : index
    %c0_102 = arith.constant 0 : index
    %229 = vector.load %arg7[%c1_99, %c0_100, %c0_101, %c0_102] : memref<2x4x8x32xbf16, #tpu.memory_space<vmem>>, vector<1x4x8x32xbf16>
    %230 = vector.shape_cast %229 : vector<1x4x8x32xbf16> to vector<4x8x32xbf16>
    %cst_103 = arith.constant 0.000000e+00 : f32
    %231 = vector.broadcast %cst_103 : f32 to vector<16x32xf32>
    %232 = vector.extract_strided_slice %228 {offsets = [0, 0], sizes = [8, 8], strides = [1, 1]} : vector<64x8xbf16> to vector<8x8xbf16>
    %233 = vector.extract_strided_slice %192 {offsets = [0, 64], sizes = [8, 8], strides = [1, 1]} : vector<16x96xbf16> to vector<8x8xbf16>
    %cst_104 = arith.constant dense<0.000000e+00> : vector<8x8xf32>
    %234 = tpu.matmul %232, %233, %cst_104 {dimension_numbers = #tpu.dot_dimension_numbers<[1], [0], [0], [1], [0, 0, 1, 1], [], []>} : vector<8x8xbf16>, vector<8x8xbf16>, vector<8x8xf32> -> vector<8x8xf32>
    %235 = vector.extract_strided_slice %228 {offsets = [32, 0], sizes = [8, 8], strides = [1, 1]} : vector<64x8xbf16> to vector<8x8xbf16>
    %236 = vector.extract_strided_slice %192 {offsets = [8, 64], sizes = [8, 8], strides = [1, 1]} : vector<16x96xbf16> to vector<8x8xbf16>
    %cst_105 = arith.constant dense<0.000000e+00> : vector<8x8xf32>
    %237 = tpu.matmul %235, %236, %cst_105 {dimension_numbers = #tpu.dot_dimension_numbers<[1], [0], [0], [1], [0, 0, 1, 1], [], []>} : vector<8x8xbf16>, vector<8x8xbf16>, vector<8x8xf32> -> vector<8x8xf32>
    %238 = tpu.concatenate %234, %237 in 0 : vector<8x8xf32>, vector<8x8xf32> -> vector<16x8xf32>
    %239 = arith.truncf %238 : vector<16x8xf32> to vector<16x8xbf16>
    %240 = vector.extract_strided_slice %230 {offsets = [0, 0, 0], sizes = [1, 8, 32], strides = [1, 1, 1]} : vector<4x8x32xbf16> to vector<1x8x32xbf16>
    %241 = vector.shape_cast %240 : vector<1x8x32xbf16> to vector<8x32xbf16>
    %cst_106 = arith.constant dense<0.000000e+00> : vector<16x32xf32>
    %242 = tpu.matmul %239, %241, %cst_106 {dimension_numbers = #tpu.dot_dimension_numbers<[1], [0], [0], [1], [0, 0, 1, 1], [], []>} : vector<16x8xbf16>, vector<8x32xbf16>, vector<16x32xf32> -> vector<16x32xf32>
    %243 = arith.addf %231, %242 : vector<16x32xf32>
    %244 = vector.extract_strided_slice %228 {offsets = [8, 0], sizes = [8, 8], strides = [1, 1]} : vector<64x8xbf16> to vector<8x8xbf16>
    %245 = vector.extract_strided_slice %192 {offsets = [0, 72], sizes = [8, 8], strides = [1, 1]} : vector<16x96xbf16> to vector<8x8xbf16>
    %cst_107 = arith.constant dense<0.000000e+00> : vector<8x8xf32>
    %246 = tpu.matmul %244, %245, %cst_107 {dimension_numbers = #tpu.dot_dimension_numbers<[1], [0], [0], [1], [0, 0, 1, 1], [], []>} : vector<8x8xbf16>, vector<8x8xbf16>, vector<8x8xf32> -> vector<8x8xf32>
    %247 = vector.extract_strided_slice %228 {offsets = [40, 0], sizes = [8, 8], strides = [1, 1]} : vector<64x8xbf16> to vector<8x8xbf16>
    %248 = vector.extract_strided_slice %192 {offsets = [8, 72], sizes = [8, 8], strides = [1, 1]} : vector<16x96xbf16> to vector<8x8xbf16>
    %cst_108 = arith.constant dense<0.000000e+00> : vector<8x8xf32>
    %249 = tpu.matmul %247, %248, %cst_108 {dimension_numbers = #tpu.dot_dimension_numbers<[1], [0], [0], [1], [0, 0, 1, 1], [], []>} : vector<8x8xbf16>, vector<8x8xbf16>, vector<8x8xf32> -> vector<8x8xf32>
    %250 = tpu.concatenate %246, %249 in 0 : vector<8x8xf32>, vector<8x8xf32> -> vector<16x8xf32>
    %251 = arith.truncf %250 : vector<16x8xf32> to vector<16x8xbf16>
    %252 = vector.extract_strided_slice %230 {offsets = [1, 0, 0], sizes = [1, 8, 32], strides = [1, 1, 1]} : vector<4x8x32xbf16> to vector<1x8x32xbf16>
    %253 = vector.shape_cast %252 : vector<1x8x32xbf16> to vector<8x32xbf16>
    %cst_109 = arith.constant dense<0.000000e+00> : vector<16x32xf32>
    %254 = tpu.matmul %251, %253, %cst_109 {dimension_numbers = #tpu.dot_dimension_numbers<[1], [0], [0], [1], [0, 0, 1, 1], [], []>} : vector<16x8xbf16>, vector<8x32xbf16>, vector<16x32xf32> -> vector<16x32xf32>
    %255 = arith.addf %243, %254 : vector<16x32xf32>
    %256 = vector.extract_strided_slice %228 {offsets = [16, 0], sizes = [8, 8], strides = [1, 1]} : vector<64x8xbf16> to vector<8x8xbf16>
    %257 = vector.extract_strided_slice %192 {offsets = [0, 80], sizes = [8, 8], strides = [1, 1]} : vector<16x96xbf16> to vector<8x8xbf16>
    %cst_110 = arith.constant dense<0.000000e+00> : vector<8x8xf32>
    %258 = tpu.matmul %256, %257, %cst_110 {dimension_numbers = #tpu.dot_dimension_numbers<[1], [0], [0], [1], [0, 0, 1, 1], [], []>} : vector<8x8xbf16>, vector<8x8xbf16>, vector<8x8xf32> -> vector<8x8xf32>
    %259 = vector.extract_strided_slice %228 {offsets = [48, 0], sizes = [8, 8], strides = [1, 1]} : vector<64x8xbf16> to vector<8x8xbf16>
    %260 = vector.extract_strided_slice %192 {offsets = [8, 80], sizes = [8, 8], strides = [1, 1]} : vector<16x96xbf16> to vector<8x8xbf16>
    %cst_111 = arith.constant dense<0.000000e+00> : vector<8x8xf32>
    %261 = tpu.matmul %259, %260, %cst_111 {dimension_numbers = #tpu.dot_dimension_numbers<[1], [0], [0], [1], [0, 0, 1, 1], [], []>} : vector<8x8xbf16>, vector<8x8xbf16>, vector<8x8xf32> -> vector<8x8xf32>
    %262 = tpu.concatenate %258, %261 in 0 : vector<8x8xf32>, vector<8x8xf32> -> vector<16x8xf32>
    %263 = arith.truncf %262 : vector<16x8xf32> to vector<16x8xbf16>
    %264 = vector.extract_strided_slice %230 {offsets = [2, 0, 0], sizes = [1, 8, 32], strides = [1, 1, 1]} : vector<4x8x32xbf16> to vector<1x8x32xbf16>
    %265 = vector.shape_cast %264 : vector<1x8x32xbf16> to vector<8x32xbf16>
    %cst_112 = arith.constant dense<0.000000e+00> : vector<16x32xf32>
    %266 = tpu.matmul %263, %265, %cst_112 {dimension_numbers = #tpu.dot_dimension_numbers<[1], [0], [0], [1], [0, 0, 1, 1], [], []>} : vector<16x8xbf16>, vector<8x32xbf16>, vector<16x32xf32> -> vector<16x32xf32>
    %267 = arith.addf %255, %266 : vector<16x32xf32>
    %268 = vector.extract_strided_slice %228 {offsets = [24, 0], sizes = [8, 8], strides = [1, 1]} : vector<64x8xbf16> to vector<8x8xbf16>
    %269 = vector.extract_strided_slice %192 {offsets = [0, 88], sizes = [8, 8], strides = [1, 1]} : vector<16x96xbf16> to vector<8x8xbf16>
    %cst_113 = arith.constant dense<0.000000e+00> : vector<8x8xf32>
    %270 = tpu.matmul %268, %269, %cst_113 {dimension_numbers = #tpu.dot_dimension_numbers<[1], [0], [0], [1], [0, 0, 1, 1], [], []>} : vector<8x8xbf16>, vector<8x8xbf16>, vector<8x8xf32> -> vector<8x8xf32>
    %271 = vector.extract_strided_slice %228 {offsets = [56, 0], sizes = [8, 8], strides = [1, 1]} : vector<64x8xbf16> to vector<8x8xbf16>
    %272 = vector.extract_strided_slice %192 {offsets = [8, 88], sizes = [8, 8], strides = [1, 1]} : vector<16x96xbf16> to vector<8x8xbf16>
    %cst_114 = arith.constant dense<0.000000e+00> : vector<8x8xf32>
    %273 = tpu.matmul %271, %272, %cst_114 {dimension_numbers = #tpu.dot_dimension_numbers<[1], [0], [0], [1], [0, 0, 1, 1], [], []>} : vector<8x8xbf16>, vector<8x8xbf16>, vector<8x8xf32> -> vector<8x8xf32>
    %274 = tpu.concatenate %270, %273 in 0 : vector<8x8xf32>, vector<8x8xf32> -> vector<16x8xf32>
    %275 = arith.truncf %274 : vector<16x8xf32> to vector<16x8xbf16>
    %276 = vector.extract_strided_slice %230 {offsets = [3, 0, 0], sizes = [1, 8, 32], strides = [1, 1, 1]} : vector<4x8x32xbf16> to vector<1x8x32xbf16>
    %277 = vector.shape_cast %276 : vector<1x8x32xbf16> to vector<8x32xbf16>
    %cst_115 = arith.constant dense<0.000000e+00> : vector<16x32xf32>
    %278 = tpu.matmul %275, %277, %cst_115 {dimension_numbers = #tpu.dot_dimension_numbers<[1], [0], [0], [1], [0, 0, 1, 1], [], []>} : vector<16x8xbf16>, vector<8x32xbf16>, vector<16x32xf32> -> vector<16x32xf32>
    %279 = arith.addf %267, %278 : vector<16x32xf32>
    %c1_116 = arith.constant 1 : index
    %c0_117 = arith.constant 0 : index
    %c0_118 = arith.constant 0 : index
    %280 = vector.load %arg8[%c1_116, %c0_117, %c0_118] : memref<2x1x32xf32, #tpu.memory_space<vmem>>, vector<1x1x32xf32>
    %281 = vector.shape_cast %280 : vector<1x1x32xf32> to vector<1x32xf32>
    %282 = vector.broadcast %281 : vector<1x32xf32> to vector<16x32xf32>
    %283 = arith.addf %279, %282 : vector<16x32xf32>
    %284 = arith.addf %183, %283 : vector<16x32xf32>
    %c1_119 = arith.constant 1 : index
    %c0_120 = arith.constant 0 : index
    %c0_121 = arith.constant 0 : index
    %285 = vector.load %arg9[%c1_119, %c0_120, %c0_121] : memref<2x1x32xf32, #tpu.memory_space<vmem>>, vector<1x1x32xf32>
    %286 = vector.shape_cast %285 : vector<1x1x32xf32> to vector<1x32xf32>
    %c1_122 = arith.constant 1 : index
    %c0_123 = arith.constant 0 : index
    %c0_124 = arith.constant 0 : index
    %287 = vector.load %arg10[%c1_122, %c0_123, %c0_124] : memref<2x1x32xf32, #tpu.memory_space<vmem>>, vector<1x1x32xf32>
    %288 = vector.shape_cast %287 : vector<1x1x32xf32> to vector<1x32xf32>
    %cst_125 = arith.constant dense<0.000000e+00> : vector<16xf32>
    %289 = vector.multi_reduction <add>, %284, %cst_125 [1] : vector<16x32xf32> to vector<16xf32>
    %290 = vector.shape_cast %289 : vector<16xf32> to vector<16x1xf32>
    %cst_126 = arith.constant 3.200000e+01 : f32
    %291 = vector.broadcast %cst_126 : f32 to vector<16x1xf32>
    %292 = arith.divf %290, %291 : vector<16x1xf32>
    %293 = arith.mulf %284, %284 : vector<16x32xf32>
    %cst_127 = arith.constant dense<0.000000e+00> : vector<16xf32>
    %294 = vector.multi_reduction <add>, %293, %cst_127 [1] : vector<16x32xf32> to vector<16xf32>
    %295 = vector.shape_cast %294 : vector<16xf32> to vector<16x1xf32>
    %cst_128 = arith.constant 3.200000e+01 : f32
    %296 = vector.broadcast %cst_128 : f32 to vector<16x1xf32>
    %297 = arith.divf %295, %296 : vector<16x1xf32>
    %298 = arith.mulf %292, %292 : vector<16x1xf32>
    %299 = arith.subf %297, %298 : vector<16x1xf32>
    %cst_129 = arith.constant 0.000000e+00 : f32
    %300 = vector.broadcast %cst_129 : f32 to vector<16x1xf32>
    %301 = arith.maximumf %299, %300 : vector<16x1xf32>
    %302 = vector.broadcast %292 : vector<16x1xf32> to vector<16x32xf32>
    %303 = arith.subf %284, %302 : vector<16x32xf32>
    %cst_130 = arith.constant 9.99999974E-6 : f32
    %304 = vector.broadcast %cst_130 : f32 to vector<16x1xf32>
    %305 = arith.addf %301, %304 : vector<16x1xf32>
    %306 = math.rsqrt %305 : vector<16x1xf32>
    %307 = vector.broadcast %306 : vector<16x1xf32> to vector<16x32xf32>
    %308 = arith.mulf %303, %307 : vector<16x32xf32>
    %309 = vector.broadcast %286 : vector<1x32xf32> to vector<16x32xf32>
    %310 = arith.mulf %308, %309 : vector<16x32xf32>
    %311 = vector.broadcast %288 : vector<1x32xf32> to vector<16x32xf32>
    %312 = arith.addf %310, %311 : vector<16x32xf32>
    %313 = arith.truncf %312 : vector<16x32xf32> to vector<16x32xbf16>
    %c1_131 = arith.constant 1 : index
    %c0_132 = arith.constant 0 : index
    %c0_133 = arith.constant 0 : index
    %314 = vector.load %arg11[%c1_131, %c0_132, %c0_133] : memref<2x32x64xbf16, #tpu.memory_space<vmem>>, vector<1x32x64xbf16>
    %315 = vector.shape_cast %314 : vector<1x32x64xbf16> to vector<32x64xbf16>
    %cst_134 = arith.constant dense<0.000000e+00> : vector<16x64xf32>
    %316 = tpu.matmul %313, %315, %cst_134 {dimension_numbers = #tpu.dot_dimension_numbers<[1], [0], [0], [1], [0, 0, 1, 1], [], []>} : vector<16x32xbf16>, vector<32x64xbf16>, vector<16x64xf32> -> vector<16x64xf32>
    %c1_135 = arith.constant 1 : index
    %c0_136 = arith.constant 0 : index
    %c0_137 = arith.constant 0 : index
    %317 = vector.load %arg12[%c1_135, %c0_136, %c0_137] : memref<2x1x64xf32, #tpu.memory_space<vmem>>, vector<1x1x64xf32>
    %318 = vector.shape_cast %317 : vector<1x1x64xf32> to vector<1x64xf32>
    %319 = vector.broadcast %318 : vector<1x64xf32> to vector<16x64xf32>
    %320 = arith.addf %316, %319 : vector<16x64xf32>
    %cst_138 = arith.constant 0.000000e+00 : f32
    %321 = vector.broadcast %cst_138 : f32 to vector<16x64xf32>
    %322 = arith.maximumf %320, %321 : vector<16x64xf32>
    %323 = arith.truncf %322 : vector<16x64xf32> to vector<16x64xbf16>
    %c1_139 = arith.constant 1 : index
    %c0_140 = arith.constant 0 : index
    %c0_141 = arith.constant 0 : index
    %324 = vector.load %arg13[%c1_139, %c0_140, %c0_141] : memref<2x64x32xbf16, #tpu.memory_space<vmem>>, vector<1x64x32xbf16>
    %325 = vector.shape_cast %324 : vector<1x64x32xbf16> to vector<64x32xbf16>
    %cst_142 = arith.constant dense<0.000000e+00> : vector<16x32xf32>
    %326 = tpu.matmul %323, %325, %cst_142 {dimension_numbers = #tpu.dot_dimension_numbers<[1], [0], [0], [1], [0, 0, 1, 1], [], []>} : vector<16x64xbf16>, vector<64x32xbf16>, vector<16x32xf32> -> vector<16x32xf32>
    %c1_143 = arith.constant 1 : index
    %c0_144 = arith.constant 0 : index
    %c0_145 = arith.constant 0 : index
    %327 = vector.load %arg14[%c1_143, %c0_144, %c0_145] : memref<2x1x32xf32, #tpu.memory_space<vmem>>, vector<1x1x32xf32>
    %328 = vector.shape_cast %327 : vector<1x1x32xf32> to vector<1x32xf32>
    %329 = vector.broadcast %328 : vector<1x32xf32> to vector<16x32xf32>
    %330 = arith.addf %326, %329 : vector<16x32xf32>
    %331 = arith.addf %312, %330 : vector<16x32xf32>
    %c1_146 = arith.constant 1 : index
    %c0_147 = arith.constant 0 : index
    %c0_148 = arith.constant 0 : index
    %332 = vector.load %arg15[%c1_146, %c0_147, %c0_148] : memref<2x1x32xf32, #tpu.memory_space<vmem>>, vector<1x1x32xf32>
    %333 = vector.shape_cast %332 : vector<1x1x32xf32> to vector<1x32xf32>
    %c1_149 = arith.constant 1 : index
    %c0_150 = arith.constant 0 : index
    %c0_151 = arith.constant 0 : index
    %334 = vector.load %arg16[%c1_149, %c0_150, %c0_151] : memref<2x1x32xf32, #tpu.memory_space<vmem>>, vector<1x1x32xf32>
    %335 = vector.shape_cast %334 : vector<1x1x32xf32> to vector<1x32xf32>
    %cst_152 = arith.constant dense<0.000000e+00> : vector<16xf32>
    %336 = vector.multi_reduction <add>, %331, %cst_152 [1] : vector<16x32xf32> to vector<16xf32>
    %337 = vector.shape_cast %336 : vector<16xf32> to vector<16x1xf32>
    %cst_153 = arith.constant 3.200000e+01 : f32
    %338 = vector.broadcast %cst_153 : f32 to vector<16x1xf32>
    %339 = arith.divf %337, %338 : vector<16x1xf32>
    %340 = arith.mulf %331, %331 : vector<16x32xf32>
    %cst_154 = arith.constant dense<0.000000e+00> : vector<16xf32>
    %341 = vector.multi_reduction <add>, %340, %cst_154 [1] : vector<16x32xf32> to vector<16xf32>
    %342 = vector.shape_cast %341 : vector<16xf32> to vector<16x1xf32>
    %cst_155 = arith.constant 3.200000e+01 : f32
    %343 = vector.broadcast %cst_155 : f32 to vector<16x1xf32>
    %344 = arith.divf %342, %343 : vector<16x1xf32>
    %345 = arith.mulf %339, %339 : vector<16x1xf32>
    %346 = arith.subf %344, %345 : vector<16x1xf32>
    %cst_156 = arith.constant 0.000000e+00 : f32
    %347 = vector.broadcast %cst_156 : f32 to vector<16x1xf32>
    %348 = arith.maximumf %346, %347 : vector<16x1xf32>
    %349 = vector.broadcast %339 : vector<16x1xf32> to vector<16x32xf32>
    %350 = arith.subf %331, %349 : vector<16x32xf32>
    %cst_157 = arith.constant 9.99999974E-6 : f32
    %351 = vector.broadcast %cst_157 : f32 to vector<16x1xf32>
    %352 = arith.addf %348, %351 : vector<16x1xf32>
    %353 = math.rsqrt %352 : vector<16x1xf32>
    %354 = vector.broadcast %353 : vector<16x1xf32> to vector<16x32xf32>
    %355 = arith.mulf %350, %354 : vector<16x32xf32>
    %356 = vector.broadcast %333 : vector<1x32xf32> to vector<16x32xf32>
    %357 = arith.mulf %355, %356 : vector<16x32xf32>
    %358 = vector.broadcast %335 : vector<1x32xf32> to vector<16x32xf32>
    %359 = arith.addf %357, %358 : vector<16x32xf32>
    %360 = arith.truncf %359 : vector<16x32xf32> to vector<16x32xbf16>
    %c0_158 = arith.constant 0 : index
    %c0_159 = arith.constant 0 : index
    %361 = vector.load %arg17[%c0_158, %c0_159] : memref<32x12xbf16, #tpu.memory_space<vmem>>, vector<32x12xbf16>
    %cst_160 = arith.constant dense<0.000000e+00> : vector<16x12xf32>
    %362 = tpu.matmul %360, %361, %cst_160 {dimension_numbers = #tpu.dot_dimension_numbers<[1], [0], [0], [1], [0, 0, 1, 1], [], []>} : vector<16x32xbf16>, vector<32x12xbf16>, vector<16x12xf32> -> vector<16x12xf32>
    %c0_161 = arith.constant 0 : index
    %c0_162 = arith.constant 0 : index
    %363 = vector.load %arg18[%c0_161, %c0_162] : memref<1x12xf32, #tpu.memory_space<vmem>>, vector<1x12xf32>
    %364 = vector.broadcast %363 : vector<1x12xf32> to vector<16x12xf32>
    %365 = arith.addf %362, %364 : vector<16x12xf32>
    %366 = arith.truncf %365 : vector<16x12xf32> to vector<16x12xbf16>
    %367 = vector.extract_strided_slice %366 {offsets = [0, 0], sizes = [8, 12], strides = [1, 1]} : vector<16x12xbf16> to vector<8x12xbf16>
    %c0_163 = arith.constant 0 : index
    %c0_164 = arith.constant 0 : index
    %368 = vector.load %arg19[%c0_163, %c0_164] : memref<8x4xbf16, #tpu.memory_space<vmem>>, vector<8x4xbf16>
    %cst_165 = arith.constant dense<0.000000e+00> : vector<12x4xf32>
    %369 = tpu.matmul %367, %368, %cst_165 {dimension_numbers = #tpu.dot_dimension_numbers<[0], [0], [1], [1], [0, 1, 1, 1], [], []>} : vector<8x12xbf16>, vector<8x4xbf16>, vector<12x4xf32> -> vector<12x4xf32>
    %c0_166 = arith.constant 0 : index
    %c0_167 = arith.constant 0 : index
    %370 = vector.load %arg20[%c0_166, %c0_167] : memref<1x4xf32, #tpu.memory_space<vmem>>, vector<1x4xf32>
    %371 = vector.broadcast %370 : vector<1x4xf32> to vector<12x4xf32>
    %372 = arith.addf %369, %371 : vector<12x4xf32>
    %c0_168 = arith.constant 0 : index
    %c0_169 = arith.constant 0 : index
    %c0_170 = arith.constant 0 : index
    %373 = vector.load %arg21[%c0_168, %c0_169, %c0_170] : memref<2x12x4xf32, #tpu.memory_space<vmem>>, vector<1x12x4xf32>
    %374 = vector.shape_cast %373 : vector<1x12x4xf32> to vector<12x4xf32>
    %375 = vector.shape_cast %372 : vector<12x4xf32> to vector<1x12x4xf32>
    tpu.vector_store %arg21[%c0_168, %c0_169, %c0_170], %375 {strides = array<i32>} : memref<2x12x4xf32, #tpu.memory_space<vmem>>, vector<1x12x4xf32>,
    %376 = vector.extract_strided_slice %366 {offsets = [8, 0], sizes = [8, 12], strides = [1, 1]} : vector<16x12xbf16> to vector<8x12xbf16>
    %c0_171 = arith.constant 0 : index
    %c0_172 = arith.constant 0 : index
    %377 = vector.load %arg19[%c0_171, %c0_172] : memref<8x4xbf16, #tpu.memory_space<vmem>>, vector<8x4xbf16>
    %cst_173 = arith.constant dense<0.000000e+00> : vector<12x4xf32>
    %378 = tpu.matmul %376, %377, %cst_173 {dimension_numbers = #tpu.dot_dimension_numbers<[0], [0], [1], [1], [0, 1, 1, 1], [], []>} : vector<8x12xbf16>, vector<8x4xbf16>, vector<12x4xf32> -> vector<12x4xf32>
    %c0_174 = arith.constant 0 : index
    %c0_175 = arith.constant 0 : index
    %379 = vector.load %arg20[%c0_174, %c0_175] : memref<1x4xf32, #tpu.memory_space<vmem>>, vector<1x4xf32>
    %380 = vector.broadcast %379 : vector<1x4xf32> to vector<12x4xf32>
    %381 = arith.addf %378, %380 : vector<12x4xf32>
    %c1_176 = arith.constant 1 : index
    %c0_177 = arith.constant 0 : index
    %c0_178 = arith.constant 0 : index
    %382 = vector.load %arg21[%c1_176, %c0_177, %c0_178] : memref<2x12x4xf32, #tpu.memory_space<vmem>>, vector<1x12x4xf32>
    %383 = vector.shape_cast %382 : vector<1x12x4xf32> to vector<12x4xf32>
    %384 = vector.shape_cast %381 : vector<12x4xf32> to vector<1x12x4xf32>
    tpu.vector_store %arg21[%c1_176, %c0_177, %c0_178], %384 {strides = array<i32>} : memref<2x12x4xf32, #tpu.memory_space<vmem>>, vector<1x12x4xf32>,
    return
  }
  func.func @transform_0(%arg0: i32) -> (i32, i32) {
    %c0_i32 = arith.constant 0 : i32
    %c0_i32_0 = arith.constant 0 : i32
    return %arg0, %c0_i32 : i32, i32
  }
  func.func @transform_1(%arg0: i32) -> (i32, i32) {
    %c0_i32 = arith.constant 0 : i32
    %c0_i32_0 = arith.constant 0 : i32
    %c0_i32_1 = arith.constant 0 : i32
    return %c0_i32, %c0_i32_0 : i32, i32
  }
  func.func @transform_2(%arg0: i32) -> (i32, i32) {
    %c0_i32 = arith.constant 0 : i32
    %c0_i32_0 = arith.constant 0 : i32
    %c0_i32_1 = arith.constant 0 : i32
    return %c0_i32, %c0_i32_0 : i32, i32
  }
  func.func @transform_3(%arg0: i32) -> (i32, i32) {
    %c0_i32 = arith.constant 0 : i32
    %c0_i32_0 = arith.constant 0 : i32
    %c0_i32_1 = arith.constant 0 : i32
    return %c0_i32, %c0_i32_0 : i32, i32
  }
  func.func @transform_4(%arg0: i32) -> (i32, i32, i32) {
    %c0_i32 = arith.constant 0 : i32
    %c0_i32_0 = arith.constant 0 : i32
    %c0_i32_1 = arith.constant 0 : i32
    %c0_i32_2 = arith.constant 0 : i32
    return %c0_i32, %c0_i32_0, %c0_i32_1 : i32, i32, i32
  }
  func.func @transform_5(%arg0: i32) -> (i32, i32, i32) {
    %c0_i32 = arith.constant 0 : i32
    %c0_i32_0 = arith.constant 0 : i32
    %c0_i32_1 = arith.constant 0 : i32
    %c0_i32_2 = arith.constant 0 : i32
    return %c0_i32, %c0_i32_0, %c0_i32_1 : i32, i32, i32
  }
  func.func @transform_6(%arg0: i32) -> (i32, i32, i32, i32) {
    %c0_i32 = arith.constant 0 : i32
    %c0_i32_0 = arith.constant 0 : i32
    %c0_i32_1 = arith.constant 0 : i32
    %c0_i32_2 = arith.constant 0 : i32
    %c0_i32_3 = arith.constant 0 : i32
    return %c0_i32, %c0_i32_0, %c0_i32_1, %c0_i32_2 : i32, i32, i32, i32
  }
  func.func @transform_7(%arg0: i32) -> (i32, i32, i32) {
    %c0_i32 = arith.constant 0 : i32
    %c0_i32_0 = arith.constant 0 : i32
    %c0_i32_1 = arith.constant 0 : i32
    %c0_i32_2 = arith.constant 0 : i32
    return %c0_i32, %c0_i32_0, %c0_i32_1 : i32, i32, i32
  }
  func.func @transform_8(%arg0: i32) -> (i32, i32, i32) {
    %c0_i32 = arith.constant 0 : i32
    %c0_i32_0 = arith.constant 0 : i32
    %c0_i32_1 = arith.constant 0 : i32
    %c0_i32_2 = arith.constant 0 : i32
    return %c0_i32, %c0_i32_0, %c0_i32_1 : i32, i32, i32
  }
  func.func @transform_9(%arg0: i32) -> (i32, i32, i32) {
    %c0_i32 = arith.constant 0 : i32
    %c0_i32_0 = arith.constant 0 : i32
    %c0_i32_1 = arith.constant 0 : i32
    %c0_i32_2 = arith.constant 0 : i32
    return %c0_i32, %c0_i32_0, %c0_i32_1 : i32, i32, i32
  }
  func.func @transform_10(%arg0: i32) -> (i32, i32, i32) {
    %c0_i32 = arith.constant 0 : i32
    %c0_i32_0 = arith.constant 0 : i32
    %c0_i32_1 = arith.constant 0 : i32
    %c0_i32_2 = arith.constant 0 : i32
    return %c0_i32, %c0_i32_0, %c0_i32_1 : i32, i32, i32
  }
  func.func @transform_11(%arg0: i32) -> (i32, i32, i32) {
    %c0_i32 = arith.constant 0 : i32
    %c0_i32_0 = arith.constant 0 : i32
    %c0_i32_1 = arith.constant 0 : i32
    %c0_i32_2 = arith.constant 0 : i32
    return %c0_i32, %c0_i32_0, %c0_i32_1 : i32, i32, i32
  }
  func.func @transform_12(%arg0: i32) -> (i32, i32, i32) {
    %c0_i32 = arith.constant 0 : i32
    %c0_i32_0 = arith.constant 0 : i32
    %c0_i32_1 = arith.constant 0 : i32
    %c0_i32_2 = arith.constant 0 : i32
    return %c0_i32, %c0_i32_0, %c0_i32_1 : i32, i32, i32
  }
  func.func @transform_13(%arg0: i32) -> (i32, i32, i32) {
    %c0_i32 = arith.constant 0 : i32
    %c0_i32_0 = arith.constant 0 : i32
    %c0_i32_1 = arith.constant 0 : i32
    %c0_i32_2 = arith.constant 0 : i32
    return %c0_i32, %c0_i32_0, %c0_i32_1 : i32, i32, i32
  }
  func.func @transform_14(%arg0: i32) -> (i32, i32, i32) {
    %c0_i32 = arith.constant 0 : i32
    %c0_i32_0 = arith.constant 0 : i32
    %c0_i32_1 = arith.constant 0 : i32
    %c0_i32_2 = arith.constant 0 : i32
    return %c0_i32, %c0_i32_0, %c0_i32_1 : i32, i32, i32
  }
  func.func @transform_15(%arg0: i32) -> (i32, i32, i32) {
    %c0_i32 = arith.constant 0 : i32
    %c0_i32_0 = arith.constant 0 : i32
    %c0_i32_1 = arith.constant 0 : i32
    %c0_i32_2 = arith.constant 0 : i32
    return %c0_i32, %c0_i32_0, %c0_i32_1 : i32, i32, i32
  }
  func.func @transform_16(%arg0: i32) -> (i32, i32) {
    %c0_i32 = arith.constant 0 : i32
    %c0_i32_0 = arith.constant 0 : i32
    %c0_i32_1 = arith.constant 0 : i32
    return %c0_i32, %c0_i32_0 : i32, i32
  }
  func.func @transform_17(%arg0: i32) -> (i32, i32) {
    %c0_i32 = arith.constant 0 : i32
    %c0_i32_0 = arith.constant 0 : i32
    %c0_i32_1 = arith.constant 0 : i32
    return %c0_i32, %c0_i32_0 : i32, i32
  }
  func.func @transform_18(%arg0: i32) -> (i32, i32) {
    %c0_i32 = arith.constant 0 : i32
    %c0_i32_0 = arith.constant 0 : i32
    %c0_i32_1 = arith.constant 0 : i32
    return %c0_i32, %c0_i32_0 : i32, i32
  }
  func.func @transform_19(%arg0: i32) -> (i32, i32) {
    %c0_i32 = arith.constant 0 : i32
    %c0_i32_0 = arith.constant 0 : i32
    %c0_i32_1 = arith.constant 0 : i32
    return %c0_i32, %c0_i32_0 : i32, i32
  }
  func.func @transform_20(%arg0: i32) -> (i32, i32, i32) {
    %c0_i32 = arith.constant 0 : i32
    %c0_i32_0 = arith.constant 0 : i32
    %c0_i32_1 = arith.constant 0 : i32
    return %arg0, %c0_i32, %c0_i32_0 : i32, i32, i32
  }
}

</mosaic_0001>

<llo_original>
// kernel: my_transformer_forward.1
$region0: #{my_transformer_forward.1}
  #allocation0 [shape = 'u32[]', space=smem, size = 0x4, offset = 0x4, fixed_abs, tag = 'smem constant byte address 0x4 - core index']
  #allocation1 [shape = 'u32[144,128]{1,0:T(1,128)}', space=vmem, size = 0x12000, scoped, tag = 'internal scratch']
  %s0 = inlined_call_operand.vmem [shape: bf16[16,24], index: 0, kind: input, shape index: {}]
  %s1 = inlined_call_operand.vmem [shape: bf16[24,32], index: 1, kind: input, shape index: {}]
  %s2 = inlined_call_operand.vmem [shape: f32[1,32], index: 2, kind: input, shape index: {}]
  %s3 = inlined_call_operand.vmem [shape: f32[16,32], index: 3, kind: input, shape index: {}]
  %s4 = inlined_call_operand.vmem [shape: bf16[2,32,96], index: 4, kind: input, shape index: {}]
  %s5 = inlined_call_operand.vmem [shape: f32[2,1,96], index: 5, kind: input, shape index: {}]
  %s6 = inlined_call_operand.vmem [shape: bf16[2,4,8,32], index: 6, kind: input, shape index: {}]
  %s7 = inlined_call_operand.vmem [shape: f32[2,1,32], index: 7, kind: input, shape index: {}]
  %s8 = inlined_call_operand.vmem [shape: f32[2,1,32], index: 8, kind: input, shape index: {}]
  %s9 = inlined_call_operand.vmem [shape: f32[2,1,32], index: 9, kind: input, shape index: {}]
  %s10 = inlined_call_operand.vmem [shape: bf16[2,32,64], index: 10, kind: input, shape index: {}]
  %s11 = inlined_call_operand.vmem [shape: f32[2,1,64], index: 11, kind: input, shape index: {}]
  %s12 = inlined_call_operand.vmem [shape: bf16[2,64,32], index: 12, kind: input, shape index: {}]
  %s13 = inlined_call_operand.vmem [shape: f32[2,1,32], index: 13, kind: input, shape index: {}]
  %s14 = inlined_call_operand.vmem [shape: f32[2,1,32], index: 14, kind: input, shape index: {}]
  %s15 = inlined_call_operand.vmem [shape: f32[2,1,32], index: 15, kind: input, shape index: {}]
  %s16 = inlined_call_operand.vmem [shape: bf16[32,12], index: 16, kind: input, shape index: {}]
  %s17 = inlined_call_operand.vmem [shape: f32[1,12], index: 17, kind: input, shape index: {}]
  %s18 = inlined_call_operand.vmem [shape: bf16[8,4], index: 18, kind: input, shape index: {}]
  %s19 = inlined_call_operand.vmem [shape: f32[1,4], index: 19, kind: input, shape index: {}]
  %s20 = inlined_call_operand.vmem [shape: f32[2,12,4], index: 20, kind: output, shape index: {}]
  %s21 = sld [smem:[#allocation0]]
  $region90: #{my_transformer_forward.1} parent=0
    _
  %s23 = ssub.s32 1, %s21
  %s24 = scalar_select 0, %s23, %s21
  // Predicated region
  $region2: #{my_transformer_forward.1} parent=0 // pred_check
    _
  $region3: #{my_transformer_forward.1} parent=0 // pred_check_branch
    %26 = sbr.rel (0) target = $region5
  $region4: #{my_transformer_forward.1} parent=0 // pred_region
    _
  $region5: #{my_transformer_forward.1} parent=0 // pred_fallthru
    _
  // Predicated region
  $region6: #{my_transformer_forward.1} parent=0 // pred_check
    _
  $region7: #{my_transformer_forward.1} parent=0 // pred_check_branch
    %28 = sbr.rel (0) target = $region9
  $region8: #{my_transformer_forward.1} parent=0 // pred_region
    _
  $region9: #{my_transformer_forward.1} parent=0 // pred_fallthru
    _
  // Predicated region
  $region10: #{my_transformer_forward.1} parent=0 // pred_check
    _
  $region11: #{my_transformer_forward.1} parent=0 // pred_check_branch
    %30 = sbr.rel (0) target = $region13
  $region12: #{my_transformer_forward.1} parent=0 // pred_region
    _
  $region13: #{my_transformer_forward.1} parent=0 // pred_fallthru
    _
  // Predicated region
  $region14: #{my_transformer_forward.1} parent=0 // pred_check
    _
  $region15: #{my_transformer_forward.1} parent=0 // pred_check_branch
    %32 = sbr.rel (0) target = $region17
  $region16: #{my_transformer_forward.1} parent=0 // pred_region
    _
  $region17: #{my_transformer_forward.1} parent=0 // pred_fallthru
    _
  // Predicated region
  $region18: #{my_transformer_forward.1} parent=0 // pred_check
    _
  $region19: #{my_transformer_forward.1} parent=0 // pred_check_branch
    %34 = sbr.rel (0) target = $region21
  $region20: #{my_transformer_forward.1} parent=0 // pred_region
    _
  $region21: #{my_transformer_forward.1} parent=0 // pred_fallthru
    _
  // Predicated region
  $region22: #{my_transformer_forward.1} parent=0 // pred_check
    _
  $region23: #{my_transformer_forward.1} parent=0 // pred_check_branch
    %36 = sbr.rel (0) target = $region25
  $region24: #{my_transformer_forward.1} parent=0 // pred_region
    _
  $region25: #{my_transformer_forward.1} parent=0 // pred_fallthru
    _
  // Predicated region
  $region26: #{my_transformer_forward.1} parent=0 // pred_check
    _
  $region27: #{my_transformer_forward.1} parent=0 // pred_check_branch
    %38 = sbr.rel (0) target = $region29
  $region28: #{my_transformer_forward.1} parent=0 // pred_region
    _
  $region29: #{my_transformer_forward.1} parent=0 // pred_fallthru
    _
  // Predicated region
  $region30: #{my_transformer_forward.1} parent=0 // pred_check
    _
  $region31: #{my_transformer_forward.1} parent=0 // pred_check_branch
    %40 = sbr.rel (0) target = $region33
  $region32: #{my_transformer_forward.1} parent=0 // pred_region
    _
  $region33: #{my_transformer_forward.1} parent=0 // pred_fallthru
    _
  // Predicated region
  $region34: #{my_transformer_forward.1} parent=0 // pred_check
    _
  $region35: #{my_transformer_forward.1} parent=0 // pred_check_branch
    %42 = sbr.rel (0) target = $region37
  $region36: #{my_transformer_forward.1} parent=0 // pred_region
    _
  $region37: #{my_transformer_forward.1} parent=0 // pred_fallthru
    _
  // Predicated region
  $region38: #{my_transformer_forward.1} parent=0 // pred_check
    _
  $region39: #{my_transformer_forward.1} parent=0 // pred_check_branch
    %44 = sbr.rel (0) target = $region41
  $region40: #{my_transformer_forward.1} parent=0 // pred_region
    _
  $region41: #{my_transformer_forward.1} parent=0 // pred_fallthru
    _
  // Predicated region
  $region42: #{my_transformer_forward.1} parent=0 // pred_check
    _
  $region43: #{my_transformer_forward.1} parent=0 // pred_check_branch
    %46 = sbr.rel (0) target = $region45
  $region44: #{my_transformer_forward.1} parent=0 // pred_region
    _
  $region45: #{my_transformer_forward.1} parent=0 // pred_fallthru
    _
  // Predicated region
  $region46: #{my_transformer_forward.1} parent=0 // pred_check
    _
  $region47: #{my_transformer_forward.1} parent=0 // pred_check_branch
    %48 = sbr.rel (0) target = $region49
  $region48: #{my_transformer_forward.1} parent=0 // pred_region
    _
  $region49: #{my_transformer_forward.1} parent=0 // pred_fallthru
    _
  // Predicated region
  $region50: #{my_transformer_forward.1} parent=0 // pred_check
    _
  $region51: #{my_transformer_forward.1} parent=0 // pred_check_branch
    %50 = sbr.rel (0) target = $region53
  $region52: #{my_transformer_forward.1} parent=0 // pred_region
    _
  $region53: #{my_transformer_forward.1} parent=0 // pred_fallthru
    _
  // Predicated region
  $region54: #{my_transformer_forward.1} parent=0 // pred_check
    _
  $region55: #{my_transformer_forward.1} parent=0 // pred_check_branch
    %52 = sbr.rel (0) target = $region57
  $region56: #{my_transformer_forward.1} parent=0 // pred_region
    _
  $region57: #{my_transformer_forward.1} parent=0 // pred_fallthru
    _
  // Predicated region
  $region58: #{my_transformer_forward.1} parent=0 // pred_check
    _
  $region59: #{my_transformer_forward.1} parent=0 // pred_check_branch
    %54 = sbr.rel (0) target = $region61
  $region60: #{my_transformer_forward.1} parent=0 // pred_region
    _
  $region61: #{my_transformer_forward.1} parent=0 // pred_fallthru
    _
  // Predicated region
  $region62: #{my_transformer_forward.1} parent=0 // pred_check
    _
  $region63: #{my_transformer_forward.1} parent=0 // pred_check_branch
    %56 = sbr.rel (0) target = $region65
  $region64: #{my_transformer_forward.1} parent=0 // pred_region
    _
  $region65: #{my_transformer_forward.1} parent=0 // pred_fallthru
    _
  // Predicated region
  $region66: #{my_transformer_forward.1} parent=0 // pred_check
    _
  $region67: #{my_transformer_forward.1} parent=0 // pred_check_branch
    %58 = sbr.rel (0) target = $region69
  $region68: #{my_transformer_forward.1} parent=0 // pred_region
    _
  $region69: #{my_transformer_forward.1} parent=0 // pred_fallthru
    _
  // Predicated region
  $region70: #{my_transformer_forward.1} parent=0 // pred_check
    _
  $region71: #{my_transformer_forward.1} parent=0 // pred_check_branch
    %60 = sbr.rel (0) target = $region73
  $region72: #{my_transformer_forward.1} parent=0 // pred_region
    _
  $region73: #{my_transformer_forward.1} parent=0 // pred_fallthru
    _
  // Predicated region
  $region74: #{my_transformer_forward.1} parent=0 // pred_check
    _
  $region75: #{my_transformer_forward.1} parent=0 // pred_check_branch
    %62 = sbr.rel (0) target = $region77
  $region76: #{my_transformer_forward.1} parent=0 // pred_region
    _
  $region77: #{my_transformer_forward.1} parent=0 // pred_fallthru
    _
  // Predicated region
  $region78: #{my_transformer_forward.1} parent=0 // pred_check
    _
  $region79: #{my_transformer_forward.1} parent=0 // pred_check_branch
    %64 = sbr.rel (0) target = $region81
  $region80: #{my_transformer_forward.1} parent=0 // pred_region
    _
  $region81: #{my_transformer_forward.1} parent=0 // pred_fallthru
    _
  %v66 = vld [vmem:[%s0] sm:$0xf]
  %v67 = vld [vmem:[%s0 + $0x4] sm:$0xf]
  %v68 = vld [vmem:[%s1] sm:$0xf]
  %v69 = vld [vmem:[%s1 + $0x4] sm:$0xf]
  %v70 = vld [vmem:[%s1 + $0x8] sm:$0xf]
  %v71 = vld [vmem:[%s2] sm:$0x1]
  %v73 = vlaneseq
  %v74 = vshrl.u32 %v73, 7
  %v75 = vsub.s32 0, %v74
  %v76 = vrot.slane %v71, %v75
  %v80 = vunpack.c.l.b16 %v66
  %v81 = vunpack.c.l.b16 %v67
  %v82 = vpack.c.b16 %v81, %v80
  %v86 = vunpack.c.l.b16 %v68
  %v87 = vunpack.c.l.b16 %v69
  %v88 = vunpack.c.l.b16 %v70
  %v89 = vpack.c.b16 %v87, %v86
  %v90 = vpack.c.b16 %v88, %v88
  %vm92 = vcmask 195584
  %v94 = vsel %vm92, %v82, 0
  %vm96 = vcmask 1043456
  %v98 = vsel %vm96, %v90, 0
  %100 = vmatprep.subr.bf16.mxu0 0
  %101 = vmatpush1.bf16.msra.mxu0 %v89
  %102 = vmatprep.subr.bf16.mxu0 0
  %103 = vmatpush1.bf16.msra.mxu0 %v98
  %104 = vmatprep.subr.bf16.mxu0 0
  %105 = vmatpush1.bf16.msra.mxu0 0
  %106 = vmatprep.subr.bf16.mxu0 0
  %107 = vmatpush1.bf16.msra.mxu0 0
  %108 = vmatprep.subr.bf16.mxu0 0
  %109 = vmatpush1.bf16.msra.mxu0 0
  %110 = vmatprep.subr.bf16.mxu0 0
  %111 = vmatpush1.bf16.msra.mxu0 0
  %112 = vmatprep.subr.bf16.mxu0 0
  %113 = vmatpush1.bf16.msra.mxu0 0
  %114 = vmatprep.subr.bf16.mxu0 0
  %115 = vmatpush1.bf16.msra.mxu0 0
  %116 = vmatprep.subr.bf16.mxu0 0
  %117 = vmatpush1.bf16.msra.mxu0 0
  %118 = vmatprep.subr.bf16.mxu0 0
  %119 = vmatpush1.bf16.msra.mxu0 0
  %120 = vmatprep.subr.bf16.mxu0 0
  %121 = vmatpush1.bf16.msra.mxu0 0
  %122 = vmatprep.subr.bf16.mxu0 0
  %123 = vmatpush1.bf16.msra.mxu0 0
  %124 = vmatprep.subr.bf16.mxu0 0
  %125 = vmatpush1.bf16.msra.mxu0 0
  %126 = vmatprep.subr.bf16.mxu0 0
  %127 = vmatpush1.bf16.msra.mxu0 0
  %128 = vmatprep.subr.bf16.mxu0 0
  %129 = vmatpush1.bf16.msra.mxu0 0
  %130 = vmatprep.subr.bf16.mxu0 0
  %131 = vmatpush1.bf16.msra.mxu0 0
  %132 = vmatprep.mubr.bf16.mxu0 0
  %133 = vmatmul.mubr.bf16.gmra.mrb[0].mxu0 %v94
  %v134 = vpop.f32.mrb[0].mxu0
  %v135 = vadd.f32 %v76, %v134
  %v136 = vpop.f32.mrb[0].mxu0
  %v137 = vpop.f32.mrb[0].mxu0
  %v138 = vadd.f32 %v76, %v137
  %v139 = vpop.f32.mrb[0].mxu0
  %140 = vdwg.mxu0
  %v141 = vld [vmem:[%s3] sm:$0xff]
  %v142 = vld [vmem:[%s3 + $0x8] sm:$0xff]
  %v143 = vadd.f32 %v135, %v141
  %v144 = vadd.f32 %v138, %v142
  %v145 = vpack.c.bf16 %v144, %v143
  %v146 = vld [vmem:[%s4] sm:$0xf]
  %v147 = vld [vmem:[%s4 + $0x4] sm:$0xf]
  %v148 = vld [vmem:[%s4 + $0x8] sm:$0xf]
  %v149 = vld [vmem:[%s4 + $0xc] sm:$0xf]
  %v150 = vld [vmem:[%s5] sm:$0x1]
  %v152 = vlaneseq
  %v153 = vshrl.u32 %v152, 7
  %v154 = vsub.s32 0, %v153
  %v155 = vrot.slane %v150, %v154
  %v161 = vunpack.c.l.b16 %v146
  %v162 = vunpack.c.l.b16 %v147
  %v163 = vunpack.c.l.b16 %v148
  %v164 = vunpack.c.l.b16 %v149
  %v165 = vpack.c.b16 %v162, %v161
  %v166 = vpack.c.b16 %v164, %v163
  %vm169 = vcmask 261120
  %v171 = vsel %vm169, %v145, 0
  %173 = vmatprep.subr.bf16.mxu0 0
  %174 = vmatpush1.bf16.msra.mxu0 %v165
  %175 = vmatprep.subr.bf16.mxu0 0
  %176 = vmatpush1.bf16.msra.mxu0 %v166
  %177 = vmatprep.subr.bf16.mxu0 0
  %178 = vmatpush1.bf16.msra.mxu0 0
  %179 = vmatprep.subr.bf16.mxu0 0
  %180 = vmatpush1.bf16.msra.mxu0 0
  %181 = vmatprep.subr.bf16.mxu0 0
  %182 = vmatpush1.bf16.msra.mxu0 0
  %183 = vmatprep.subr.bf16.mxu0 0
  %184 = vmatpush1.bf16.msra.mxu0 0
  %185 = vmatprep.subr.bf16.mxu0 0
  %186 = vmatpush1.bf16.msra.mxu0 0
  %187 = vmatprep.subr.bf16.mxu0 0
  %188 = vmatpush1.bf16.msra.mxu0 0
  %189 = vmatprep.subr.bf16.mxu0 0
  %190 = vmatpush1.bf16.msra.mxu0 0
  %191 = vmatprep.subr.bf16.mxu0 0
  %192 = vmatpush1.bf16.msra.mxu0 0
  %193 = vmatprep.subr.bf16.mxu0 0
  %194 = vmatpush1.bf16.msra.mxu0 0
  %195 = vmatprep.subr.bf16.mxu0 0
  %196 = vmatpush1.bf16.msra.mxu0 0
  %197 = vmatprep.subr.bf16.mxu0 0
  %198 = vmatpush1.bf16.msra.mxu0 0
  %199 = vmatprep.subr.bf16.mxu0 0
  %200 = vmatpush1.bf16.msra.mxu0 0
  %201 = vmatprep.subr.bf16.mxu0 0
  %202 = vmatpush1.bf16.msra.mxu0 0
  %203 = vmatprep.subr.bf16.mxu0 0
  %204 = vmatpush1.bf16.msra.mxu0 0
  %205 = vmatprep.mubr.bf16.mxu0 0
  %206 = vmatmul.mubr.bf16.gmra.mrb[0].mxu0 %v171
  %v207 = vpop.f32.mrb[0].mxu0
  %v208 = vadd.f32 %v155, %v207
  %v209 = vpop.f32.mrb[0].mxu0
  %v210 = vpop.f32.mrb[0].mxu0
  %v211 = vadd.f32 %v155, %v210
  %v212 = vpop.f32.mrb[0].mxu0
  %213 = vdwg.mxu0
  %v214 = vpack.c.bf16 %v211, %v208
  %216 = vrot.lane.b32.xlu0 %v214, 96
  %v217 = vpop.permute.xlu0 %216
  %vm218 = vcmask 64512
  %v220 = vsel %vm218, %v214, 0
  %v223 = vsel %vm218, %v217, 0
  %225 = vmatprep.subr.bf16.mxu0 0
  %226 = vmatpush1.bf16.xpose.msra.mxu0 %v223
  %227 = vmatprep.subr.bf16.mxu0 0
  %228 = vmatpush1.bf16.xpose.msra.mxu0 0
  %229 = vmatprep.subr.bf16.mxu0 0
  %230 = vmatpush1.bf16.xpose.msra.mxu0 0
  %231 = vmatprep.subr.bf16.mxu0 0
  %232 = vmatpush1.bf16.xpose.msra.mxu0 0
  %233 = vmatprep.subr.bf16.mxu0 0
  %234 = vmatpush1.bf16.xpose.msra.mxu0 0
  %235 = vmatprep.subr.bf16.mxu0 0
  %236 = vmatpush1.bf16.xpose.msra.mxu0 0
  %237 = vmatprep.subr.bf16.mxu0 0
  %238 = vmatpush1.bf16.xpose.msra.mxu0 0
  %239 = vmatprep.subr.bf16.mxu0 0
  %240 = vmatpush1.bf16.xpose.msra.mxu0 0
  %241 = vmatprep.subr.bf16.mxu0 0
  %242 = vmatpush1.bf16.xpose.msra.mxu0 0
  %243 = vmatprep.subr.bf16.mxu0 0
  %244 = vmatpush1.bf16.xpose.msra.mxu0 0
  %245 = vmatprep.subr.bf16.mxu0 0
  %246 = vmatpush1.bf16.xpose.msra.mxu0 0
  %247 = vmatprep.subr.bf16.mxu0 0
  %248 = vmatpush1.bf16.xpose.msra.mxu0 0
  %249 = vmatprep.subr.bf16.mxu0 0
  %250 = vmatpush1.bf16.xpose.msra.mxu0 0
  %251 = vmatprep.subr.bf16.mxu0 0
  %252 = vmatpush1.bf16.xpose.msra.mxu0 0
  %253 = vmatprep.subr.bf16.mxu0 0
  %254 = vmatpush1.bf16.xpose.msra.mxu0 0
  %255 = vmatprep.subr.bf16.mxu0 0
  %256 = vmatpush1.bf16.xpose.msra.mxu0 0
  %257 = vmatprep.mubr.bf16.mxu0 0
  %258 = vmatmul.mubr.bf16.gmra.mrb[0].mxu0 %v220
  %v259 = vpop.f32.mrb[0].mxu0
  %v260 = vadd.f32 0.0, %v259
  %v261 = vpop.f32.mrb[0].mxu0
  %v262 = vpop.f32.mrb[0].mxu0
  %v263 = vpop.f32.mrb[0].mxu0
  %264 = vdwg.mxu0
  %265 = vrot.lane.b32.xlu0 %v214, 120
  %v266 = vpop.permute.xlu0 %265
  %267 = vrot.lane.b32.xlu0 %v214, 88
  %v268 = vpop.permute.xlu0 %267
  %v270 = vsel %vm218, %v266, 0
  %v273 = vsel %vm218, %v268, 0
  %275 = vmatprep.subr.bf16.mxu0 0
  %276 = vmatpush1.bf16.xpose.msra.mxu0 %v273
  %277 = vmatprep.subr.bf16.mxu0 0
  %278 = vmatpush1.bf16.xpose.msra.mxu0 0
  %279 = vmatprep.subr.bf16.mxu0 0
  %280 = vmatpush1.bf16.xpose.msra.mxu0 0
  %281 = vmatprep.subr.bf16.mxu0 0
  %282 = vmatpush1.bf16.xpose.msra.mxu0 0
  %283 = vmatprep.subr.bf16.mxu0 0
  %284 = vmatpush1.bf16.xpose.msra.mxu0 0
  %285 = vmatprep.subr.bf16.mxu0 0
  %286 = vmatpush1.bf16.xpose.msra.mxu0 0
  %287 = vmatprep.subr.bf16.mxu0 0
  %288 = vmatpush1.bf16.xpose.msra.mxu0 0
  %289 = vmatprep.subr.bf16.mxu0 0
  %290 = vmatpush1.bf16.xpose.msra.mxu0 0
  %291 = vmatprep.subr.bf16.mxu0 0
  %292 = vmatpush1.bf16.xpose.msra.mxu0 0
  %293 = vmatprep.subr.bf16.mxu0 0
  %294 = vmatpush1.bf16.xpose.msra.mxu0 0
  %295 = vmatprep.subr.bf16.mxu0 0
  %296 = vmatpush1.bf16.xpose.msra.mxu0 0
  %297 = vmatprep.subr.bf16.mxu0 0
  %298 = vmatpush1.bf16.xpose.msra.mxu0 0
  %299 = vmatprep.subr.bf16.mxu0 0
  %300 = vmatpush1.bf16.xpose.msra.mxu0 0
  %301 = vmatprep.subr.bf16.mxu0 0
  %302 = vmatpush1.bf16.xpose.msra.mxu0 0
  %303 = vmatprep.subr.bf16.mxu0 0
  %304 = vmatpush1.bf16.xpose.msra.mxu0 0
  %305 = vmatprep.subr.bf16.mxu0 0
  %306 = vmatpush1.bf16.xpose.msra.mxu0 0
  %307 = vmatprep.mubr.bf16.mxu0 0
  %308 = vmatmul.mubr.bf16.gmra.mrb[0].mxu0 %v270
  %v309 = vpop.f32.mrb[0].mxu0
  %v310 = vadd.f32 0.0, %v309
  %v311 = vpop.f32.mrb[0].mxu0
  %v312 = vpop.f32.mrb[0].mxu0
  %v313 = vpop.f32.mrb[0].mxu0
  %314 = vdwg.mxu0
  %315 = vrot.lane.b32.xlu0 %v214, 112
  %v316 = vpop.permute.xlu0 %315
  %317 = vrot.lane.b32.xlu0 %v214, 80
  %v318 = vpop.permute.xlu0 %317
  %v320 = vsel %vm218, %v316, 0
  %v323 = vsel %vm218, %v318, 0
  %325 = vmatprep.subr.bf16.mxu0 0
  %326 = vmatpush1.bf16.xpose.msra.mxu0 %v323
  %327 = vmatprep.subr.bf16.mxu0 0
  %328 = vmatpush1.bf16.xpose.msra.mxu0 0
  %329 = vmatprep.subr.bf16.mxu0 0
  %330 = vmatpush1.bf16.xpose.msra.mxu0 0
  %331 = vmatprep.subr.bf16.mxu0 0
  %332 = vmatpush1.bf16.xpose.msra.mxu0 0
  %333 = vmatprep.subr.bf16.mxu0 0
  %334 = vmatpush1.bf16.xpose.msra.mxu0 0
  %335 = vmatprep.subr.bf16.mxu0 0
  %336 = vmatpush1.bf16.xpose.msra.mxu0 0
  %337 = vmatprep.subr.bf16.mxu0 0
  %338 = vmatpush1.bf16.xpose.msra.mxu0 0
  %339 = vmatprep.subr.bf16.mxu0 0
  %340 = vmatpush1.bf16.xpose.msra.mxu0 0
  %341 = vmatprep.subr.bf16.mxu0 0
  %342 = vmatpush1.bf16.xpose.msra.mxu0 0
  %343 = vmatprep.subr.bf16.mxu0 0
  %344 = vmatpush1.bf16.xpose.msra.mxu0 0
  %345 = vmatprep.subr.bf16.mxu0 0
  %346 = vmatpush1.bf16.xpose.msra.mxu0 0
  %347 = vmatprep.subr.bf16.mxu0 0
  %348 = vmatpush1.bf16.xpose.msra.mxu0 0
  %349 = vmatprep.subr.bf16.mxu0 0
  %350 = vmatpush1.bf16.xpose.msra.mxu0 0
  %351 = vmatprep.subr.bf16.mxu0 0
  %352 = vmatpush1.bf16.xpose.msra.mxu0 0
  %353 = vmatprep.subr.bf16.mxu0 0
  %354 = vmatpush1.bf16.xpose.msra.mxu0 0
  %355 = vmatprep.subr.bf16.mxu0 0
  %356 = vmatpush1.bf16.xpose.msra.mxu0 0
  %357 = vmatprep.mubr.bf16.mxu0 0
  %358 = vmatmul.mubr.bf16.gmra.mrb[0].mxu0 %v320
  %v359 = vpop.f32.mrb[0].mxu0
  %v360 = vadd.f32 0.0, %v359
  %v361 = vpop.f32.mrb[0].mxu0
  %v362 = vpop.f32.mrb[0].mxu0
  %v363 = vpop.f32.mrb[0].mxu0
  %364 = vdwg.mxu0
  %365 = vrot.lane.b32.xlu0 %v214, 104
  %v366 = vpop.permute.xlu0 %365
  %367 = vrot.lane.b32.xlu0 %v214, 72
  %v368 = vpop.permute.xlu0 %367
  %v370 = vsel %vm218, %v366, 0
  %v373 = vsel %vm218, %v368, 0
  %375 = vmatprep.subr.bf16.mxu0 0
  %376 = vmatpush1.bf16.xpose.msra.mxu0 %v373
  %377 = vmatprep.subr.bf16.mxu0 0
  %378 = vmatpush1.bf16.xpose.msra.mxu0 0
  %379 = vmatprep.subr.bf16.mxu0 0
  %380 = vmatpush1.bf16.xpose.msra.mxu0 0
  %381 = vmatprep.subr.bf16.mxu0 0
  %382 = vmatpush1.bf16.xpose.msra.mxu0 0
  %383 = vmatprep.subr.bf16.mxu0 0
  %384 = vmatpush1.bf16.xpose.msra.mxu0 0
  %385 = vmatprep.subr.bf16.mxu0 0
  %386 = vmatpush1.bf16.xpose.msra.mxu0 0
  %387 = vmatprep.subr.bf16.mxu0 0
  %388 = vmatpush1.bf16.xpose.msra.mxu0 0
  %389 = vmatprep.subr.bf16.mxu0 0
  %390 = vmatpush1.bf16.xpose.msra.mxu0 0
  %391 = vmatprep.subr.bf16.mxu0 0
  %392 = vmatpush1.bf16.xpose.msra.mxu0 0
  %393 = vmatprep.subr.bf16.mxu0 0
  %394 = vmatpush1.bf16.xpose.msra.mxu0 0
  %395 = vmatprep.subr.bf16.mxu0 0
  %396 = vmatpush1.bf16.xpose.msra.mxu0 0
  %397 = vmatprep.subr.bf16.mxu0 0
  %398 = vmatpush1.bf16.xpose.msra.mxu0 0
  %399 = vmatprep.subr.bf16.mxu0 0
  %400 = vmatpush1.bf16.xpose.msra.mxu0 0
  %401 = vmatprep.subr.bf16.mxu0 0
  %402 = vmatpush1.bf16.xpose.msra.mxu0 0
  %403 = vmatprep.subr.bf16.mxu0 0
  %404 = vmatpush1.bf16.xpose.msra.mxu0 0
  %405 = vmatprep.subr.bf16.mxu0 0
  %406 = vmatpush1.bf16.xpose.msra.mxu0 0
  %407 = vmatprep.mubr.bf16.mxu0 0
  %408 = vmatmul.mubr.bf16.gmra.mrb[0].mxu0 %v370
  %v409 = vpop.f32.mrb[0].mxu0
  %v410 = vadd.f32 0.0, %v409
  %v411 = vpop.f32.mrb[0].mxu0
  %v412 = vpop.f32.mrb[0].mxu0
  %v413 = vpop.f32.mrb[0].mxu0
  %414 = vdwg.mxu0
  %v415 = vrot.slane %v214, 4
  %416 = vrot.lane.b32.xlu0 %v415, 96
  %v417 = vpop.permute.xlu0 %416
  %v419 = vsel %vm218, %v415, 0
  %v422 = vsel %vm218, %v417, 0
  %424 = vmatprep.subr.bf16.mxu0 0
  %425 = vmatpush1.bf16.xpose.msra.mxu0 %v422
  %426 = vmatprep.subr.bf16.mxu0 0
  %427 = vmatpush1.bf16.xpose.msra.mxu0 0
  %428 = vmatprep.subr.bf16.mxu0 0
  %429 = vmatpush1.bf16.xpose.msra.mxu0 0
  %430 = vmatprep.subr.bf16.mxu0 0
  %431 = vmatpush1.bf16.xpose.msra.mxu0 0
  %432 = vmatprep.subr.bf16.mxu0 0
  %433 = vmatpush1.bf16.xpose.msra.mxu0 0
  %434 = vmatprep.subr.bf16.mxu0 0
  %435 = vmatpush1.bf16.xpose.msra.mxu0 0
  %436 = vmatprep.subr.bf16.mxu0 0
  %437 = vmatpush1.bf16.xpose.msra.mxu0 0
  %438 = vmatprep.subr.bf16.mxu0 0
  %439 = vmatpush1.bf16.xpose.msra.mxu0 0
  %440 = vmatprep.subr.bf16.mxu0 0
  %441 = vmatpush1.bf16.xpose.msra.mxu0 0
  %442 = vmatprep.subr.bf16.mxu0 0
  %443 = vmatpush1.bf16.xpose.msra.mxu0 0
  %444 = vmatprep.subr.bf16.mxu0 0
  %445 = vmatpush1.bf16.xpose.msra.mxu0 0
  %446 = vmatprep.subr.bf16.mxu0 0
  %447 = vmatpush1.bf16.xpose.msra.mxu0 0
  %448 = vmatprep.subr.bf16.mxu0 0
  %449 = vmatpush1.bf16.xpose.msra.mxu0 0
  %450 = vmatprep.subr.bf16.mxu0 0
  %451 = vmatpush1.bf16.xpose.msra.mxu0 0
  %452 = vmatprep.subr.bf16.mxu0 0
  %453 = vmatpush1.bf16.xpose.msra.mxu0 0
  %454 = vmatprep.subr.bf16.mxu0 0
  %455 = vmatpush1.bf16.xpose.msra.mxu0 0
  %456 = vmatprep.mubr.bf16.mxu0 0
  %457 = vmatmul.mubr.bf16.gmra.mrb[0].mxu0 %v419
  %v458 = vpop.f32.mrb[0].mxu0
  %v459 = vadd.f32 0.0, %v458
  %v460 = vpop.f32.mrb[0].mxu0
  %v461 = vpop.f32.mrb[0].mxu0
  %v462 = vpop.f32.mrb[0].mxu0
  %463 = vdwg.mxu0
  %464 = vrot.lane.b32.xlu0 %v415, 120
  %v465 = vpop.permute.xlu0 %464
  %466 = vrot.lane.b32.xlu0 %v415, 88
  %v467 = vpop.permute.xlu0 %466
  %v469 = vsel %vm218, %v465, 0
  %v472 = vsel %vm218, %v467, 0
  %474 = vmatprep.subr.bf16.mxu0 0
  %475 = vmatpush1.bf16.xpose.msra.mxu0 %v472
  %476 = vmatprep.subr.bf16.mxu0 0
  %477 = vmatpush1.bf16.xpose.msra.mxu0 0
  %478 = vmatprep.subr.bf16.mxu0 0
  %479 = vmatpush1.bf16.xpose.msra.mxu0 0
  %480 = vmatprep.subr.bf16.mxu0 0
  %481 = vmatpush1.bf16.xpose.msra.mxu0 0
  %482 = vmatprep.subr.bf16.mxu0 0
  %483 = vmatpush1.bf16.xpose.msra.mxu0 0
  %484 = vmatprep.subr.bf16.mxu0 0
  %485 = vmatpush1.bf16.xpose.msra.mxu0 0
  %486 = vmatprep.subr.bf16.mxu0 0
  %487 = vmatpush1.bf16.xpose.msra.mxu0 0
  %488 = vmatprep.subr.bf16.mxu0 0
  %489 = vmatpush1.bf16.xpose.msra.mxu0 0
  %490 = vmatprep.subr.bf16.mxu0 0
  %491 = vmatpush1.bf16.xpose.msra.mxu0 0
  %492 = vmatprep.subr.bf16.mxu0 0
  %493 = vmatpush1.bf16.xpose.msra.mxu0 0
  %494 = vmatprep.subr.bf16.mxu0 0
  %495 = vmatpush1.bf16.xpose.msra.mxu0 0
  %496 = vmatprep.subr.bf16.mxu0 0
  %497 = vmatpush1.bf16.xpose.msra.mxu0 0
  %498 = vmatprep.subr.bf16.mxu0 0
  %499 = vmatpush1.bf16.xpose.msra.mxu0 0
  %500 = vmatprep.subr.bf16.mxu0 0
  %501 = vmatpush1.bf16.xpose.msra.mxu0 0
  %502 = vmatprep.subr.bf16.mxu0 0
  %503 = vmatpush1.bf16.xpose.msra.mxu0 0
  %504 = vmatprep.subr.bf16.mxu0 0
  %505 = vmatpush1.bf16.xpose.msra.mxu0 0
  %506 = vmatprep.mubr.bf16.mxu0 0
  %507 = vmatmul.mubr.bf16.gmra.mrb[0].mxu0 %v469
  %v508 = vpop.f32.mrb[0].mxu0
  %v509 = vadd.f32 0.0, %v508
  %v510 = vpop.f32.mrb[0].mxu0
  %v511 = vpop.f32.mrb[0].mxu0
  %v512 = vpop.f32.mrb[0].mxu0
  %513 = vdwg.mxu0
  %514 = vrot.lane.b32.xlu0 %v415, 112
  %v515 = vpop.permute.xlu0 %514
  %516 = vrot.lane.b32.xlu0 %v415, 80
  %v517 = vpop.permute.xlu0 %516
  %v519 = vsel %vm218, %v515, 0
  %v522 = vsel %vm218, %v517, 0
  %524 = vmatprep.subr.bf16.mxu0 0
  %525 = vmatpush1.bf16.xpose.msra.mxu0 %v522
  %526 = vmatprep.subr.bf16.mxu0 0
  %527 = vmatpush1.bf16.xpose.msra.mxu0 0
  %528 = vmatprep.subr.bf16.mxu0 0
  %529 = vmatpush1.bf16.xpose.msra.mxu0 0
  %530 = vmatprep.subr.bf16.mxu0 0
  %531 = vmatpush1.bf16.xpose.msra.mxu0 0
  %532 = vmatprep.subr.bf16.mxu0 0
  %533 = vmatpush1.bf16.xpose.msra.mxu0 0
  %534 = vmatprep.subr.bf16.mxu0 0
  %535 = vmatpush1.bf16.xpose.msra.mxu0 0
  %536 = vmatprep.subr.bf16.mxu0 0
  %537 = vmatpush1.bf16.xpose.msra.mxu0 0
  %538 = vmatprep.subr.bf16.mxu0 0
  %539 = vmatpush1.bf16.xpose.msra.mxu0 0
  %540 = vmatprep.subr.bf16.mxu0 0
  %541 = vmatpush1.bf16.xpose.msra.mxu0 0
  %542 = vmatprep.subr.bf16.mxu0 0
  %543 = vmatpush1.bf16.xpose.msra.mxu0 0
  %544 = vmatprep.subr.bf16.mxu0 0
  %545 = vmatpush1.bf16.xpose.msra.mxu0 0
  %546 = vmatprep.subr.bf16.mxu0 0
  %547 = vmatpush1.bf16.xpose.msra.mxu0 0
  %548 = vmatprep.subr.bf16.mxu0 0
  %549 = vmatpush1.bf16.xpose.msra.mxu0 0
  %550 = vmatprep.subr.bf16.mxu0 0
  %551 = vmatpush1.bf16.xpose.msra.mxu0 0
  %552 = vmatprep.subr.bf16.mxu0 0
  %553 = vmatpush1.bf16.xpose.msra.mxu0 0
  %554 = vmatprep.subr.bf16.mxu0 0
  %555 = vmatpush1.bf16.xpose.msra.mxu0 0
  %556 = vmatprep.mubr.bf16.mxu0 0
  %557 = vmatmul.mubr.bf16.gmra.mrb[0].mxu0 %v519
  %v558 = vpop.f32.mrb[0].mxu0
  %v559 = vadd.f32 0.0, %v558
  %v560 = vpop.f32.mrb[0].mxu0
  %v561 = vpop.f32.mrb[0].mxu0
  %v562 = vpop.f32.mrb[0].mxu0
  %563 = vdwg.mxu0
  %564 = vrot.lane.b32.xlu0 %v415, 104
  %v565 = vpop.permute.xlu0 %564
  %566 = vrot.lane.b32.xlu0 %v415, 72
  %v567 = vpop.permute.xlu0 %566
  %v569 = vsel %vm218, %v565, 0
  %v572 = vsel %vm218, %v567, 0
  %574 = vmatprep.subr.bf16.mxu0 0
  %575 = vmatpush1.bf16.xpose.msra.mxu0 %v572
  %576 = vmatprep.subr.bf16.mxu0 0
  %577 = vmatpush1.bf16.xpose.msra.mxu0 0
  %578 = vmatprep.subr.bf16.mxu0 0
  %579 = vmatpush1.bf16.xpose.msra.mxu0 0
  %580 = vmatprep.subr.bf16.mxu0 0
  %581 = vmatpush1.bf16.xpose.msra.mxu0 0
  %582 = vmatprep.subr.bf16.mxu0 0
  %583 = vmatpush1.bf16.xpose.msra.mxu0 0
  %584 = vmatprep.subr.bf16.mxu0 0
  %585 = vmatpush1.bf16.xpose.msra.mxu0 0
  %586 = vmatprep.subr.bf16.mxu0 0
  %587 = vmatpush1.bf16.xpose.msra.mxu0 0
  %588 = vmatprep.subr.bf16.mxu0 0
  %589 = vmatpush1.bf16.xpose.msra.mxu0 0
  %590 = vmatprep.subr.bf16.mxu0 0
  %591 = vmatpush1.bf16.xpose.msra.mxu0 0
  %592 = vmatprep.subr.bf16.mxu0 0
  %593 = vmatpush1.bf16.xpose.msra.mxu0 0
  %594 = vmatprep.subr.bf16.mxu0 0
  %595 = vmatpush1.bf16.xpose.msra.mxu0 0
  %596 = vmatprep.subr.bf16.mxu0 0
  %597 = vmatpush1.bf16.xpose.msra.mxu0 0
  %598 = vmatprep.subr.bf16.mxu0 0
  %599 = vmatpush1.bf16.xpose.msra.mxu0 0
  %600 = vmatprep.subr.bf16.mxu0 0
  %601 = vmatpush1.bf16.xpose.msra.mxu0 0
  %602 = vmatprep.subr.bf16.mxu0 0
  %603 = vmatpush1.bf16.xpose.msra.mxu0 0
  %604 = vmatprep.subr.bf16.mxu0 0
  %605 = vmatpush1.bf16.xpose.msra.mxu0 0
  %606 = vmatprep.mubr.bf16.mxu0 0
  %607 = vmatmul.mubr.bf16.gmra.mrb[0].mxu0 %v569
  %v608 = vpop.f32.mrb[0].mxu0
  %v609 = vadd.f32 0.0, %v608
  %v610 = vpop.f32.mrb[0].mxu0
  %v611 = vpop.f32.mrb[0].mxu0
  %v612 = vpop.f32.mrb[0].mxu0
  %613 = vdwg.mxu0
  %v614 = vsel %vm218, %v260, -inf
  %615 = vmax.xlane.f32.xlu0 %v614
  %v616 = vpop.xlane.xlu0 %615
  %v617 = vsel %vm218, %v310, -inf
  %618 = vmax.xlane.f32.xlu0 %v617
  %v619 = vpop.xlane.xlu0 %618
  %v620 = vsel %vm218, %v360, -inf
  %621 = vmax.xlane.f32.xlu0 %v620
  %v622 = vpop.xlane.xlu0 %621
  %v623 = vsel %vm218, %v410, -inf
  %624 = vmax.xlane.f32.xlu0 %v623
  %v625 = vpop.xlane.xlu0 %624
  %v626 = vsel %vm218, %v459, -inf
  %627 = vmax.xlane.f32.xlu0 %v626
  %v628 = vpop.xlane.xlu0 %627
  %v629 = vsel %vm218, %v509, -inf
  %630 = vmax.xlane.f32.xlu0 %v629
  %v631 = vpop.xlane.xlu0 %630
  %v632 = vsel %vm218, %v559, -inf
  %633 = vmax.xlane.f32.xlu0 %v632
  %v634 = vpop.xlane.xlu0 %633
  %v635 = vsel %vm218, %v609, -inf
  %636 = vmax.xlane.f32.xlu0 %v635
  %v637 = vpop.xlane.xlu0 %636
  %v638 = vsub.f32 %v260, %v616
  %v639 = vsub.f32 %v310, %v619
  %v640 = vsub.f32 %v360, %v622
  %v641 = vsub.f32 %v410, %v625
  %v642 = vsub.f32 %v459, %v628
  %v643 = vsub.f32 %v509, %v631
  %v644 = vsub.f32 %v559, %v634
  %v645 = vsub.f32 %v609, %v637
  %v646 = vmul.f32 %v638, 1.442695
  %v647 = vpow.pop %v646
  %v648 = vmul.f32 %v639, 1.442695
  %v649 = vpow.pop %v648
  %v650 = vmul.f32 %v640, 1.442695
  %v651 = vpow.pop %v650
  %v652 = vmul.f32 %v641, 1.442695
  %v653 = vpow.pop %v652
  %v654 = vmul.f32 %v642, 1.442695
  %v655 = vpow.pop %v654
  %v656 = vmul.f32 %v643, 1.442695
  %v657 = vpow.pop %v656
  %v658 = vmul.f32 %v644, 1.442695
  %v659 = vpow.pop %v658
  %v660 = vmul.f32 %v645, 1.442695
  %v661 = vpow.pop %v660
  %v662 = vsel %vm218, %v647, 0.0
  %663 = vadd.xlane.f32.xlu0 %v662
  %v664 = vpop.xlane.xlu0 %663
  %v665 = vsel %vm218, %v649, 0.0
  %666 = vadd.xlane.f32.xlu0 %v665
  %v667 = vpop.xlane.xlu0 %666
  %v668 = vsel %vm218, %v651, 0.0
  %669 = vadd.xlane.f32.xlu0 %v668
  %v670 = vpop.xlane.xlu0 %669
  %v671 = vsel %vm218, %v653, 0.0
  %672 = vadd.xlane.f32.xlu0 %v671
  %v673 = vpop.xlane.xlu0 %672
  %v674 = vsel %vm218, %v655, 0.0
  %675 = vadd.xlane.f32.xlu0 %v674
  %v676 = vpop.xlane.xlu0 %675
  %v677 = vsel %vm218, %v657, 0.0
  %678 = vadd.xlane.f32.xlu0 %v677
  %v679 = vpop.xlane.xlu0 %678
  %v680 = vsel %vm218, %v659, 0.0
  %681 = vadd.xlane.f32.xlu0 %v680
  %v682 = vpop.xlane.xlu0 %681
  %v683 = vsel %vm218, %v661, 0.0
  %684 = vadd.xlane.f32.xlu0 %v683
  %v685 = vpop.xlane.xlu0 %684
  %v686 = vrcp.pop %v664
  %v687 = vrcp.pop %v667
  %v688 = vrcp.pop %v670
  %v689 = vrcp.pop %v673
  %v690 = vrcp.pop %v676
  %v691 = vrcp.pop %v679
  %v692 = vrcp.pop %v682
  %v693 = vrcp.pop %v685
  %v694 = vmul.f32 %v647, %v686
  %v695 = vmul.f32 %v649, %v687
  %v696 = vmul.f32 %v651, %v688
  %v697 = vmul.f32 %v653, %v689
  %v698 = vmul.f32 %v655, %v690
  %v699 = vmul.f32 %v657, %v691
  %v700 = vmul.f32 %v659, %v692
  %v701 = vmul.f32 %v661, %v693
  %v702 = vpack.c.bf16 %v695, %v694
  %v703 = vpack.c.bf16 %v697, %v696
  %v704 = vpack.c.bf16 %v699, %v698
  %v705 = vpack.c.bf16 %v701, %v700
  %v706 = vld [vmem:[%s6] sm:$0xf]
  %v707 = vld [vmem:[%s6 + $0x4] sm:$0xf]
  %v708 = vld [vmem:[%s6 + $0x8] sm:$0xf]
  %v709 = vld [vmem:[%s6 + $0xc] sm:$0xf]
  %710 = vrot.lane.b32.xlu0 %v214, 64
  %v711 = vpop.permute.xlu0 %710
  %v713 = vsel %vm218, %v702, 0
  %v716 = vsel %vm96, %v711, 0
  %718 = vmatprep.subr.bf16.mxu0 0
  %719 = vmatpush1.bf16.msra.mxu0 %v716
  %720 = vmatprep.subr.bf16.mxu0 0
  %721 = vmatpush1.bf16.msra.mxu0 0
  %722 = vmatprep.subr.bf16.mxu0 0
  %723 = vmatpush1.bf16.msra.mxu0 0
  %724 = vmatprep.subr.bf16.mxu0 0
  %725 = vmatpush1.bf16.msra.mxu0 0
  %726 = vmatprep.subr.bf16.mxu0 0
  %727 = vmatpush1.bf16.msra.mxu0 0
  %728 = vmatprep.subr.bf16.mxu0 0
  %729 = vmatpush1.bf16.msra.mxu0 0
  %730 = vmatprep.subr.bf16.mxu0 0
  %731 = vmatpush1.bf16.msra.mxu0 0
  %732 = vmatprep.subr.bf16.mxu0 0
  %733 = vmatpush1.bf16.msra.mxu0 0
  %734 = vmatprep.subr.bf16.mxu0 0
  %735 = vmatpush1.bf16.msra.mxu0 0
  %736 = vmatprep.subr.bf16.mxu0 0
  %737 = vmatpush1.bf16.msra.mxu0 0
  %738 = vmatprep.subr.bf16.mxu0 0
  %739 = vmatpush1.bf16.msra.mxu0 0
  %740 = vmatprep.subr.bf16.mxu0 0
  %741 = vmatpush1.bf16.msra.mxu0 0
  %742 = vmatprep.subr.bf16.mxu0 0
  %743 = vmatpush1.bf16.msra.mxu0 0
  %744 = vmatprep.subr.bf16.mxu0 0
  %745 = vmatpush1.bf16.msra.mxu0 0
  %746 = vmatprep.subr.bf16.mxu0 0
  %747 = vmatpush1.bf16.msra.mxu0 0
  %748 = vmatprep.subr.bf16.mxu0 0
  %749 = vmatpush1.bf16.msra.mxu0 0
  %750 = vmatprep.mubr.bf16.mxu0 0
  %751 = vmatmul.mubr.bf16.gmra.mrb[0].mxu0 %v713
  %v752 = vpop.f32.mrb[0].mxu0
  %v753 = vadd.f32 0.0, %v752
  %v754 = vpop.f32.mrb[0].mxu0
  %v755 = vpop.f32.mrb[0].mxu0
  %v756 = vpop.f32.mrb[0].mxu0
  %757 = vdwg.mxu0
  %758 = vrot.lane.b32.xlu0 %v415, 64
  %v759 = vpop.permute.xlu0 %758
  %v761 = vsel %vm218, %v704, 0
  %v764 = vsel %vm96, %v759, 0
  %766 = vmatprep.subr.bf16.mxu0 0
  %767 = vmatpush1.bf16.msra.mxu0 %v764
  %768 = vmatprep.subr.bf16.mxu0 0
  %769 = vmatpush1.bf16.msra.mxu0 0
  %770 = vmatprep.subr.bf16.mxu0 0
  %771 = vmatpush1.bf16.msra.mxu0 0
  %772 = vmatprep.subr.bf16.mxu0 0
  %773 = vmatpush1.bf16.msra.mxu0 0
  %774 = vmatprep.subr.bf16.mxu0 0
  %775 = vmatpush1.bf16.msra.mxu0 0
  %776 = vmatprep.subr.bf16.mxu0 0
  %777 = vmatpush1.bf16.msra.mxu0 0
  %778 = vmatprep.subr.bf16.mxu0 0
  %779 = vmatpush1.bf16.msra.mxu0 0
  %780 = vmatprep.subr.bf16.mxu0 0
  %781 = vmatpush1.bf16.msra.mxu0 0
  %782 = vmatprep.subr.bf16.mxu0 0
  %783 = vmatpush1.bf16.msra.mxu0 0
  %784 = vmatprep.subr.bf16.mxu0 0
  %785 = vmatpush1.bf16.msra.mxu0 0
  %786 = vmatprep.subr.bf16.mxu0 0
  %787 = vmatpush1.bf16.msra.mxu0 0
  %788 = vmatprep.subr.bf16.mxu0 0
  %789 = vmatpush1.bf16.msra.mxu0 0
  %790 = vmatprep.subr.bf16.mxu0 0
  %791 = vmatpush1.bf16.msra.mxu0 0
  %792 = vmatprep.subr.bf16.mxu0 0
  %793 = vmatpush1.bf16.msra.mxu0 0
  %794 = vmatprep.subr.bf16.mxu0 0
  %795 = vmatpush1.bf16.msra.mxu0 0
  %796 = vmatprep.subr.bf16.mxu0 0
  %797 = vmatpush1.bf16.msra.mxu0 0
  %798 = vmatprep.mubr.bf16.mxu0 0
  %799 = vmatmul.mubr.bf16.gmra.mrb[0].mxu0 %v761
  %v800 = vpop.f32.mrb[0].mxu0
  %v801 = vadd.f32 0.0, %v800
  %v802 = vpop.f32.mrb[0].mxu0
  %v803 = vpop.f32.mrb[0].mxu0
  %v804 = vpop.f32.mrb[0].mxu0
  %805 = vdwg.mxu0
  %v806 = vpack.c.bf16 %v801, %v753
  %v808 = vrot.slane %v702, 4
  %809 = vrot.lane.b32.xlu0 %v214, 56
  %v810 = vpop.permute.xlu0 %809
  %v812 = vsel %vm218, %v808, 0
  %v815 = vsel %vm96, %v810, 0
  %817 = vmatprep.subr.bf16.mxu0 0
  %818 = vmatpush1.bf16.msra.mxu0 %v815
  %819 = vmatprep.subr.bf16.mxu0 0
  %820 = vmatpush1.bf16.msra.mxu0 0
  %821 = vmatprep.subr.bf16.mxu0 0
  %822 = vmatpush1.bf16.msra.mxu0 0
  %823 = vmatprep.subr.bf16.mxu0 0
  %824 = vmatpush1.bf16.msra.mxu0 0
  %825 = vmatprep.subr.bf16.mxu0 0
  %826 = vmatpush1.bf16.msra.mxu0 0
  %827 = vmatprep.subr.bf16.mxu0 0
  %828 = vmatpush1.bf16.msra.mxu0 0
  %829 = vmatprep.subr.bf16.mxu0 0
  %830 = vmatpush1.bf16.msra.mxu0 0
  %831 = vmatprep.subr.bf16.mxu0 0
  %832 = vmatpush1.bf16.msra.mxu0 0
  %833 = vmatprep.subr.bf16.mxu0 0
  %834 = vmatpush1.bf16.msra.mxu0 0
  %835 = vmatprep.subr.bf16.mxu0 0
  %836 = vmatpush1.bf16.msra.mxu0 0
  %837 = vmatprep.subr.bf16.mxu0 0
  %838 = vmatpush1.bf16.msra.mxu0 0
  %839 = vmatprep.subr.bf16.mxu0 0
  %840 = vmatpush1.bf16.msra.mxu0 0
  %841 = vmatprep.subr.bf16.mxu0 0
  %842 = vmatpush1.bf16.msra.mxu0 0
  %843 = vmatprep.subr.bf16.mxu0 0
  %844 = vmatpush1.bf16.msra.mxu0 0
  %845 = vmatprep.subr.bf16.mxu0 0
  %846 = vmatpush1.bf16.msra.mxu0 0
  %847 = vmatprep.subr.bf16.mxu0 0
  %848 = vmatpush1.bf16.msra.mxu0 0
  %849 = vmatprep.mubr.bf16.mxu0 0
  %850 = vmatmul.mubr.bf16.gmra.mrb[0].mxu0 %v812
  %v851 = vpop.f32.mrb[0].mxu0
  %v852 = vadd.f32 0.0, %v851
  %v853 = vpop.f32.mrb[0].mxu0
  %v854 = vpop.f32.mrb[0].mxu0
  %v855 = vpop.f32.mrb[0].mxu0
  %856 = vdwg.mxu0
  %v858 = vrot.slane %v704, 4
  %859 = vrot.lane.b32.xlu0 %v415, 56
  %v860 = vpop.permute.xlu0 %859
  %v862 = vsel %vm218, %v858, 0
  %v865 = vsel %vm96, %v860, 0
  %867 = vmatprep.subr.bf16.mxu0 0
  %868 = vmatpush1.bf16.msra.mxu0 %v865
  %869 = vmatprep.subr.bf16.mxu0 0
  %870 = vmatpush1.bf16.msra.mxu0 0
  %871 = vmatprep.subr.bf16.mxu0 0
  %872 = vmatpush1.bf16.msra.mxu0 0
  %873 = vmatprep.subr.bf16.mxu0 0
  %874 = vmatpush1.bf16.msra.mxu0 0
  %875 = vmatprep.subr.bf16.mxu0 0
  %876 = vmatpush1.bf16.msra.mxu0 0
  %877 = vmatprep.subr.bf16.mxu0 0
  %878 = vmatpush1.bf16.msra.mxu0 0
  %879 = vmatprep.subr.bf16.mxu0 0
  %880 = vmatpush1.bf16.msra.mxu0 0
  %881 = vmatprep.subr.bf16.mxu0 0
  %882 = vmatpush1.bf16.msra.mxu0 0
  %883 = vmatprep.subr.bf16.mxu0 0
  %884 = vmatpush1.bf16.msra.mxu0 0
  %885 = vmatprep.subr.bf16.mxu0 0
  %886 = vmatpush1.bf16.msra.mxu0 0
  %887 = vmatprep.subr.bf16.mxu0 0
  %888 = vmatpush1.bf16.msra.mxu0 0
  %889 = vmatprep.subr.bf16.mxu0 0
  %890 = vmatpush1.bf16.msra.mxu0 0
  %891 = vmatprep.subr.bf16.mxu0 0
  %892 = vmatpush1.bf16.msra.mxu0 0
  %893 = vmatprep.subr.bf16.mxu0 0
  %894 = vmatpush1.bf16.msra.mxu0 0
  %895 = vmatprep.subr.bf16.mxu0 0
  %896 = vmatpush1.bf16.msra.mxu0 0
  %897 = vmatprep.subr.bf16.mxu0 0
  %898 = vmatpush1.bf16.msra.mxu0 0
  %899 = vmatprep.mubr.bf16.mxu0 0
  %900 = vmatmul.mubr.bf16.gmra.mrb[0].mxu0 %v862
  %v901 = vpop.f32.mrb[0].mxu0
  %v902 = vadd.f32 0.0, %v901
  %v903 = vpop.f32.mrb[0].mxu0
  %v904 = vpop.f32.mrb[0].mxu0
  %v905 = vpop.f32.mrb[0].mxu0
  %906 = vdwg.mxu0
  %v907 = vpack.c.bf16 %v902, %v852
  %v909 = vsel %vm218, %v907, 0
  %v912 = vsel %vm96, %v707, 0
  %914 = vmatprep.subr.bf16.mxu0 0
  %915 = vmatpush1.bf16.msra.mxu0 %v912
  %916 = vmatprep.subr.bf16.mxu0 0
  %917 = vmatpush1.bf16.msra.mxu0 0
  %918 = vmatprep.subr.bf16.mxu0 0
  %919 = vmatpush1.bf16.msra.mxu0 0
  %920 = vmatprep.subr.bf16.mxu0 0
  %921 = vmatpush1.bf16.msra.mxu0 0
  %922 = vmatprep.subr.bf16.mxu0 0
  %923 = vmatpush1.bf16.msra.mxu0 0
  %924 = vmatprep.subr.bf16.mxu0 0
  %925 = vmatpush1.bf16.msra.mxu0 0
  %926 = vmatprep.subr.bf16.mxu0 0
  %927 = vmatpush1.bf16.msra.mxu0 0
  %928 = vmatprep.subr.bf16.mxu0 0
  %929 = vmatpush1.bf16.msra.mxu0 0
  %930 = vmatprep.subr.bf16.mxu0 0
  %931 = vmatpush1.bf16.msra.mxu0 0
  %932 = vmatprep.subr.bf16.mxu0 0
  %933 = vmatpush1.bf16.msra.mxu0 0
  %934 = vmatprep.subr.bf16.mxu0 0
  %935 = vmatpush1.bf16.msra.mxu0 0
  %936 = vmatprep.subr.bf16.mxu0 0
  %937 = vmatpush1.bf16.msra.mxu0 0
  %938 = vmatprep.subr.bf16.mxu0 0
  %939 = vmatpush1.bf16.msra.mxu0 0
  %940 = vmatprep.subr.bf16.mxu0 0
  %941 = vmatpush1.bf16.msra.mxu0 0
  %942 = vmatprep.subr.bf16.mxu0 0
  %943 = vmatpush1.bf16.msra.mxu0 0
  %944 = vmatprep.subr.bf16.mxu0 0
  %945 = vmatpush1.bf16.msra.mxu0 0
  %946 = vmatprep.mubr.bf16.mxu0 0
  %947 = vmatmul.mubr.bf16.gmra.mrb[0].mxu0 %v909
  %v948 = vpop.f32.mrb[0].mxu0
  %v949 = vadd.f32 0.0, %v948
  %v950 = vpop.f32.mrb[0].mxu0
  %v951 = vpop.f32.mrb[0].mxu0
  %v952 = vadd.f32 0.0, %v951
  %v953 = vpop.f32.mrb[0].mxu0
  %954 = vdwg.mxu0
  %v956 = vsel %vm218, %v806, 0
  %v959 = vsel %vm96, %v706, 0
  %961 = vmatprep.subr.bf16.mxu0 0
  %962 = vmatpush1.bf16.msra.mxu0 %v959
  %963 = vmatprep.subr.bf16.mxu0 0
  %964 = vmatpush1.bf16.msra.mxu0 0
  %965 = vmatprep.subr.bf16.mxu0 0
  %966 = vmatpush1.bf16.msra.mxu0 0
  %967 = vmatprep.subr.bf16.mxu0 0
  %968 = vmatpush1.bf16.msra.mxu0 0
  %969 = vmatprep.subr.bf16.mxu0 0
  %970 = vmatpush1.bf16.msra.mxu0 0
  %971 = vmatprep.subr.bf16.mxu0 0
  %972 = vmatpush1.bf16.msra.mxu0 0
  %973 = vmatprep.subr.bf16.mxu0 0
  %974 = vmatpush1.bf16.msra.mxu0 0
  %975 = vmatprep.subr.bf16.mxu0 0
  %976 = vmatpush1.bf16.msra.mxu0 0
  %977 = vmatprep.subr.bf16.mxu0 0
  %978 = vmatpush1.bf16.msra.mxu0 0
  %979 = vmatprep.subr.bf16.mxu0 0
  %980 = vmatpush1.bf16.msra.mxu0 0
  %981 = vmatprep.subr.bf16.mxu0 0
  %982 = vmatpush1.bf16.msra.mxu0 0
  %983 = vmatprep.subr.bf16.mxu0 0
  %984 = vmatpush1.bf16.msra.mxu0 0
  %985 = vmatprep.subr.bf16.mxu0 0
  %986 = vmatpush1.bf16.msra.mxu0 0
  %987 = vmatprep.subr.bf16.mxu0 0
  %988 = vmatpush1.bf16.msra.mxu0 0
  %989 = vmatprep.subr.bf16.mxu0 0
  %990 = vmatpush1.bf16.msra.mxu0 0
  %991 = vmatprep.subr.bf16.mxu0 0
  %992 = vmatpush1.bf16.msra.mxu0 0
  %993 = vmatprep.mubr.bf16.mxu0 0
  %994 = vmatmul.mubr.bf16.gmra.mrb[0].mxu0 %v956
  %v995 = vpop.f32.mrb[0].mxu0
  %v996 = vadd.f32 %v949, %v995
  %v997 = vpop.f32.mrb[0].mxu0
  %v998 = vpop.f32.mrb[0].mxu0
  %v999 = vadd.f32 %v952, %v998
  %v1000 = vpop.f32.mrb[0].mxu0
  %1001 = vdwg.mxu0
  %1002 = vrot.lane.b32.xlu0 %v214, 48
  %v1003 = vpop.permute.xlu0 %1002
  %v1005 = vsel %vm218, %v703, 0
  %v1008 = vsel %vm96, %v1003, 0
  %1010 = vmatprep.subr.bf16.mxu0 0
  %1011 = vmatpush1.bf16.msra.mxu0 %v1008
  %1012 = vmatprep.subr.bf16.mxu0 0
  %1013 = vmatpush1.bf16.msra.mxu0 0
  %1014 = vmatprep.subr.bf16.mxu0 0
  %1015 = vmatpush1.bf16.msra.mxu0 0
  %1016 = vmatprep.subr.bf16.mxu0 0
  %1017 = vmatpush1.bf16.msra.mxu0 0
  %1018 = vmatprep.subr.bf16.mxu0 0
  %1019 = vmatpush1.bf16.msra.mxu0 0
  %1020 = vmatprep.subr.bf16.mxu0 0
  %1021 = vmatpush1.bf16.msra.mxu0 0
  %1022 = vmatprep.subr.bf16.mxu0 0
  %1023 = vmatpush1.bf16.msra.mxu0 0
  %1024 = vmatprep.subr.bf16.mxu0 0
  %1025 = vmatpush1.bf16.msra.mxu0 0
  %1026 = vmatprep.subr.bf16.mxu0 0
  %1027 = vmatpush1.bf16.msra.mxu0 0
  %1028 = vmatprep.subr.bf16.mxu0 0
  %1029 = vmatpush1.bf16.msra.mxu0 0
  %1030 = vmatprep.subr.bf16.mxu0 0
  %1031 = vmatpush1.bf16.msra.mxu0 0
  %1032 = vmatprep.subr.bf16.mxu0 0
  %1033 = vmatpush1.bf16.msra.mxu0 0
  %1034 = vmatprep.subr.bf16.mxu0 0
  %1035 = vmatpush1.bf16.msra.mxu0 0
  %1036 = vmatprep.subr.bf16.mxu0 0
  %1037 = vmatpush1.bf16.msra.mxu0 0
  %1038 = vmatprep.subr.bf16.mxu0 0
  %1039 = vmatpush1.bf16.msra.mxu0 0
  %1040 = vmatprep.subr.bf16.mxu0 0
  %1041 = vmatpush1.bf16.msra.mxu0 0
  %1042 = vmatprep.mubr.bf16.mxu0 0
  %1043 = vmatmul.mubr.bf16.gmra.mrb[0].mxu0 %v1005
  %v1044 = vpop.f32.mrb[0].mxu0
  %v1045 = vadd.f32 0.0, %v1044
  %v1046 = vpop.f32.mrb[0].mxu0
  %v1047 = vpop.f32.mrb[0].mxu0
  %v1048 = vpop.f32.mrb[0].mxu0
  %1049 = vdwg.mxu0
  %1050 = vrot.lane.b32.xlu0 %v415, 48
  %v1051 = vpop.permute.xlu0 %1050
  %v1053 = vsel %vm218, %v705, 0
  %v1056 = vsel %vm96, %v1051, 0
  %1058 = vmatprep.subr.bf16.mxu0 0
  %1059 = vmatpush1.bf16.msra.mxu0 %v1056
  %1060 = vmatprep.subr.bf16.mxu0 0
  %1061 = vmatpush1.bf16.msra.mxu0 0
  %1062 = vmatprep.subr.bf16.mxu0 0
  %1063 = vmatpush1.bf16.msra.mxu0 0
  %1064 = vmatprep.subr.bf16.mxu0 0
  %1065 = vmatpush1.bf16.msra.mxu0 0
  %1066 = vmatprep.subr.bf16.mxu0 0
  %1067 = vmatpush1.bf16.msra.mxu0 0
  %1068 = vmatprep.subr.bf16.mxu0 0
  %1069 = vmatpush1.bf16.msra.mxu0 0
  %1070 = vmatprep.subr.bf16.mxu0 0
  %1071 = vmatpush1.bf16.msra.mxu0 0
  %1072 = vmatprep.subr.bf16.mxu0 0
  %1073 = vmatpush1.bf16.msra.mxu0 0
  %1074 = vmatprep.subr.bf16.mxu0 0
  %1075 = vmatpush1.bf16.msra.mxu0 0
  %1076 = vmatprep.subr.bf16.mxu0 0
  %1077 = vmatpush1.bf16.msra.mxu0 0
  %1078 = vmatprep.subr.bf16.mxu0 0
  %1079 = vmatpush1.bf16.msra.mxu0 0
  %1080 = vmatprep.subr.bf16.mxu0 0
  %1081 = vmatpush1.bf16.msra.mxu0 0
  %1082 = vmatprep.subr.bf16.mxu0 0
  %1083 = vmatpush1.bf16.msra.mxu0 0
  %1084 = vmatprep.subr.bf16.mxu0 0
  %1085 = vmatpush1.bf16.msra.mxu0 0
  %1086 = vmatprep.subr.bf16.mxu0 0
  %1087 = vmatpush1.bf16.msra.mxu0 0
  %1088 = vmatprep.subr.bf16.mxu0 0
  %1089 = vmatpush1.bf16.msra.mxu0 0
  %1090 = vmatprep.mubr.bf16.mxu0 0
  %1091 = vmatmul.mubr.bf16.gmra.mrb[0].mxu0 %v1053
  %v1092 = vpop.f32.mrb[0].mxu0
  %v1093 = vadd.f32 0.0, %v1092
  %v1094 = vpop.f32.mrb[0].mxu0
  %v1095 = vpop.f32.mrb[0].mxu0
  %v1096 = vpop.f32.mrb[0].mxu0
  %1097 = vdwg.mxu0
  %v1098 = vpack.c.bf16 %v1093, %v1045
  %v1100 = vsel %vm218, %v1098, 0
  %v1103 = vsel %vm96, %v708, 0
  %1105 = vmatprep.subr.bf16.mxu0 0
  %1106 = vmatpush1.bf16.msra.mxu0 %v1103
  %1107 = vmatprep.subr.bf16.mxu0 0
  %1108 = vmatpush1.bf16.msra.mxu0 0
  %1109 = vmatprep.subr.bf16.mxu0 0
  %1110 = vmatpush1.bf16.msra.mxu0 0
  %1111 = vmatprep.subr.bf16.mxu0 0
  %1112 = vmatpush1.bf16.msra.mxu0 0
  %1113 = vmatprep.subr.bf16.mxu0 0
  %1114 = vmatpush1.bf16.msra.mxu0 0
  %1115 = vmatprep.subr.bf16.mxu0 0
  %1116 = vmatpush1.bf16.msra.mxu0 0
  %1117 = vmatprep.subr.bf16.mxu0 0
  %1118 = vmatpush1.bf16.msra.mxu0 0
  %1119 = vmatprep.subr.bf16.mxu0 0
  %1120 = vmatpush1.bf16.msra.mxu0 0
  %1121 = vmatprep.subr.bf16.mxu0 0
  %1122 = vmatpush1.bf16.msra.mxu0 0
  %1123 = vmatprep.subr.bf16.mxu0 0
  %1124 = vmatpush1.bf16.msra.mxu0 0
  %1125 = vmatprep.subr.bf16.mxu0 0
  %1126 = vmatpush1.bf16.msra.mxu0 0
  %1127 = vmatprep.subr.bf16.mxu0 0
  %1128 = vmatpush1.bf16.msra.mxu0 0
  %1129 = vmatprep.subr.bf16.mxu0 0
  %1130 = vmatpush1.bf16.msra.mxu0 0
  %1131 = vmatprep.subr.bf16.mxu0 0
  %1132 = vmatpush1.bf16.msra.mxu0 0
  %1133 = vmatprep.subr.bf16.mxu0 0
  %1134 = vmatpush1.bf16.msra.mxu0 0
  %1135 = vmatprep.subr.bf16.mxu0 0
  %1136 = vmatpush1.bf16.msra.mxu0 0
  %1137 = vmatprep.mubr.bf16.mxu0 0
  %1138 = vmatmul.mubr.bf16.gmra.mrb[0].mxu0 %v1100
  %v1139 = vpop.f32.mrb[0].mxu0
  %v1140 = vadd.f32 0.0, %v1139
  %v1141 = vpop.f32.mrb[0].mxu0
  %v1142 = vpop.f32.mrb[0].mxu0
  %v1143 = vadd.f32 0.0, %v1142
  %v1144 = vpop.f32.mrb[0].mxu0
  %1145 = vdwg.mxu0
  %v1146 = vadd.f32 %v996, %v1140
  %v1147 = vadd.f32 %v999, %v1143
  %v1149 = vrot.slane %v703, 4
  %1150 = vrot.lane.b32.xlu0 %v214, 40
  %v1151 = vpop.permute.xlu0 %1150
  %v1153 = vsel %vm218, %v1149, 0
  %v1156 = vsel %vm96, %v1151, 0
  %1158 = vmatprep.subr.bf16.mxu0 0
  %1159 = vmatpush1.bf16.msra.mxu0 %v1156
  %1160 = vmatprep.subr.bf16.mxu0 0
  %1161 = vmatpush1.bf16.msra.mxu0 0
  %1162 = vmatprep.subr.bf16.mxu0 0
  %1163 = vmatpush1.bf16.msra.mxu0 0
  %1164 = vmatprep.subr.bf16.mxu0 0
  %1165 = vmatpush1.bf16.msra.mxu0 0
  %1166 = vmatprep.subr.bf16.mxu0 0
  %1167 = vmatpush1.bf16.msra.mxu0 0
  %1168 = vmatprep.subr.bf16.mxu0 0
  %1169 = vmatpush1.bf16.msra.mxu0 0
  %1170 = vmatprep.subr.bf16.mxu0 0
  %1171 = vmatpush1.bf16.msra.mxu0 0
  %1172 = vmatprep.subr.bf16.mxu0 0
  %1173 = vmatpush1.bf16.msra.mxu0 0
  %1174 = vmatprep.subr.bf16.mxu0 0
  %1175 = vmatpush1.bf16.msra.mxu0 0
  %1176 = vmatprep.subr.bf16.mxu0 0
  %1177 = vmatpush1.bf16.msra.mxu0 0
  %1178 = vmatprep.subr.bf16.mxu0 0
  %1179 = vmatpush1.bf16.msra.mxu0 0
  %1180 = vmatprep.subr.bf16.mxu0 0
  %1181 = vmatpush1.bf16.msra.mxu0 0
  %1182 = vmatprep.subr.bf16.mxu0 0
  %1183 = vmatpush1.bf16.msra.mxu0 0
  %1184 = vmatprep.subr.bf16.mxu0 0
  %1185 = vmatpush1.bf16.msra.mxu0 0
  %1186 = vmatprep.subr.bf16.mxu0 0
  %1187 = vmatpush1.bf16.msra.mxu0 0
  %1188 = vmatprep.subr.bf16.mxu0 0
  %1189 = vmatpush1.bf16.msra.mxu0 0
  %1190 = vmatprep.mubr.bf16.mxu0 0
  %1191 = vmatmul.mubr.bf16.gmra.mrb[0].mxu0 %v1153
  %v1192 = vpop.f32.mrb[0].mxu0
  %v1193 = vadd.f32 0.0, %v1192
  %v1194 = vpop.f32.mrb[0].mxu0
  %v1195 = vpop.f32.mrb[0].mxu0
  %v1196 = vpop.f32.mrb[0].mxu0
  %1197 = vdwg.mxu0
  %v1199 = vrot.slane %v705, 4
  %1200 = vrot.lane.b32.xlu0 %v415, 40
  %v1201 = vpop.permute.xlu0 %1200
  %v1203 = vsel %vm218, %v1199, 0
  %v1206 = vsel %vm96, %v1201, 0
  %1208 = vmatprep.subr.bf16.mxu0 0
  %1209 = vmatpush1.bf16.msra.mxu0 %v1206
  %1210 = vmatprep.subr.bf16.mxu0 0
  %1211 = vmatpush1.bf16.msra.mxu0 0
  %1212 = vmatprep.subr.bf16.mxu0 0
  %1213 = vmatpush1.bf16.msra.mxu0 0
  %1214 = vmatprep.subr.bf16.mxu0 0
  %1215 = vmatpush1.bf16.msra.mxu0 0
  %1216 = vmatprep.subr.bf16.mxu0 0
  %1217 = vmatpush1.bf16.msra.mxu0 0
  %1218 = vmatprep.subr.bf16.mxu0 0
  %1219 = vmatpush1.bf16.msra.mxu0 0
  %1220 = vmatprep.subr.bf16.mxu0 0
  %1221 = vmatpush1.bf16.msra.mxu0 0
  %1222 = vmatprep.subr.bf16.mxu0 0
  %1223 = vmatpush1.bf16.msra.mxu0 0
  %1224 = vmatprep.subr.bf16.mxu0 0
  %1225 = vmatpush1.bf16.msra.mxu0 0
  %1226 = vmatprep.subr.bf16.mxu0 0
  %1227 = vmatpush1.bf16.msra.mxu0 0
  %1228 = vmatprep.subr.bf16.mxu0 0
  %1229 = vmatpush1.bf16.msra.mxu0 0
  %1230 = vmatprep.subr.bf16.mxu0 0
  %1231 = vmatpush1.bf16.msra.mxu0 0
  %1232 = vmatprep.subr.bf16.mxu0 0
  %1233 = vmatpush1.bf16.msra.mxu0 0
  %1234 = vmatprep.subr.bf16.mxu0 0
  %1235 = vmatpush1.bf16.msra.mxu0 0
  %1236 = vmatprep.subr.bf16.mxu0 0
  %1237 = vmatpush1.bf16.msra.mxu0 0
  %1238 = vmatprep.subr.bf16.mxu0 0
  %1239 = vmatpush1.bf16.msra.mxu0 0
  %1240 = vmatprep.mubr.bf16.mxu0 0
  %1241 = vmatmul.mubr.bf16.gmra.mrb[0].mxu0 %v1203
  %v1242 = vpop.f32.mrb[0].mxu0
  %v1243 = vadd.f32 0.0, %v1242
  %v1244 = vpop.f32.mrb[0].mxu0
  %v1245 = vpop.f32.mrb[0].mxu0
  %v1246 = vpop.f32.mrb[0].mxu0
  %1247 = vdwg.mxu0
  %v1248 = vpack.c.bf16 %v1243, %v1193
  %v1250 = vsel %vm218, %v1248, 0
  %v1253 = vsel %vm96, %v709, 0
  %1255 = vmatprep.subr.bf16.mxu0 0
  %1256 = vmatpush1.bf16.msra.mxu0 %v1253
  %1257 = vmatprep.subr.bf16.mxu0 0
  %1258 = vmatpush1.bf16.msra.mxu0 0
  %1259 = vmatprep.subr.bf16.mxu0 0
  %1260 = vmatpush1.bf16.msra.mxu0 0
  %1261 = vmatprep.subr.bf16.mxu0 0
  %1262 = vmatpush1.bf16.msra.mxu0 0
  %1263 = vmatprep.subr.bf16.mxu0 0
  %1264 = vmatpush1.bf16.msra.mxu0 0
  %1265 = vmatprep.subr.bf16.mxu0 0
  %1266 = vmatpush1.bf16.msra.mxu0 0
  %1267 = vmatprep.subr.bf16.mxu0 0
  %1268 = vmatpush1.bf16.msra.mxu0 0
  %1269 = vmatprep.subr.bf16.mxu0 0
  %1270 = vmatpush1.bf16.msra.mxu0 0
  %1271 = vmatprep.subr.bf16.mxu0 0
  %1272 = vmatpush1.bf16.msra.mxu0 0
  %1273 = vmatprep.subr.bf16.mxu0 0
  %1274 = vmatpush1.bf16.msra.mxu0 0
  %1275 = vmatprep.subr.bf16.mxu0 0
  %1276 = vmatpush1.bf16.msra.mxu0 0
  %1277 = vmatprep.subr.bf16.mxu0 0
  %1278 = vmatpush1.bf16.msra.mxu0 0
  %1279 = vmatprep.subr.bf16.mxu0 0
  %1280 = vmatpush1.bf16.msra.mxu0 0
  %1281 = vmatprep.subr.bf16.mxu0 0
  %1282 = vmatpush1.bf16.msra.mxu0 0
  %1283 = vmatprep.subr.bf16.mxu0 0
  %1284 = vmatpush1.bf16.msra.mxu0 0
  %1285 = vmatprep.subr.bf16.mxu0 0
  %1286 = vmatpush1.bf16.msra.mxu0 0
  %1287 = vmatprep.mubr.bf16.mxu0 0
  %1288 = vmatmul.mubr.bf16.gmra.mrb[0].mxu0 %v1250
  %v1289 = vpop.f32.mrb[0].mxu0
  %v1290 = vadd.f32 0.0, %v1289
  %v1291 = vpop.f32.mrb[0].mxu0
  %v1292 = vpop.f32.mrb[0].mxu0
  %v1293 = vadd.f32 0.0, %v1292
  %v1294 = vpop.f32.mrb[0].mxu0
  %1295 = vdwg.mxu0
  %v1296 = vadd.f32 %v1146, %v1290
  %v1297 = vadd.f32 %v1147, %v1293
  %v1298 = vld [vmem:[%s7] sm:$0x1]
  %v1300 = vlaneseq
  %v1301 = vshrl.u32 %v1300, 7
  %v1302 = vsub.s32 0, %v1301
  %v1303 = vrot.slane %v1298, %v1302
  %v1305 = vadd.f32 %v1296, %v1303
  %v1306 = vadd.f32 %v1297, %v1303
  %v1307 = vadd.f32 %v143, %v1305
  %v1308 = vadd.f32 %v144, %v1306
  %v1309 = vld [vmem:[%s8] sm:$0x1]
  %v1310 = vld [vmem:[%s9] sm:$0x1]
  %v1311 = vsel %vm169, %v1307, 0.0
  %1312 = vadd.xlane.f32.xlu0 %v1311
  %v1313 = vpop.xlane.xlu0 %1312
  %v1314 = vsel %vm169, %v1308, 0.0
  %1315 = vadd.xlane.f32.xlu0 %v1314
  %v1316 = vpop.xlane.xlu0 %1315
  %v1317 = vrcp.pop 32.0
  %v1318 = vmul.f32 %v1313, %v1317
  %v1319 = vmul.f32 %v1316, %v1317
  %v1320 = vmul.f32 %v1307, %v1307
  %v1321 = vmul.f32 %v1308, %v1308
  %v1322 = vsel %vm169, %v1320, 0.0
  %1323 = vadd.xlane.f32.xlu0 %v1322
  %v1324 = vpop.xlane.xlu0 %1323
  %v1325 = vsel %vm169, %v1321, 0.0
  %1326 = vadd.xlane.f32.xlu0 %v1325
  %v1327 = vpop.xlane.xlu0 %1326
  %v1328 = vmul.f32 %v1324, %v1317
  %v1329 = vmul.f32 %v1327, %v1317
  %v1330 = vmul.f32 %v1318, %v1318
  %v1331 = vmul.f32 %v1319, %v1319
  %v1332 = vsub.f32 %v1328, %v1330
  %v1333 = vsub.f32 %v1329, %v1331
  %v1334 = vmax.f32 %v1332, 0.0
  %v1335 = vmax.f32 %v1333, 0.0
  %v1336 = vsub.f32 %v1307, %v1318
  %v1337 = vsub.f32 %v1308, %v1319
  %v1338 = vadd.f32 %v1334, 1e-05
  %v1339 = vadd.f32 %v1335, 1e-05
  %v1340 = vrsqrt.pop %v1338
  %v1341 = vrsqrt.pop %v1339
  %v1342 = vmul.f32 %v1336, %v1340
  %v1343 = vmul.f32 %v1337, %v1341
  %v1345 = vlaneseq
  %v1346 = vshrl.u32 %v1345, 7
  %v1347 = vsub.s32 0, %v1346
  %v1348 = vrot.slane %v1309, %v1347
  %v1350 = vmul.f32 %v1342, %v1348
  %v1351 = vmul.f32 %v1343, %v1348
  %v1353 = vlaneseq
  %v1354 = vshrl.u32 %v1353, 7
  %v1355 = vsub.s32 0, %v1354
  %v1356 = vrot.slane %v1310, %v1355
  %v1358 = vadd.f32 %v1350, %v1356
  %v1359 = vadd.f32 %v1351, %v1356
  %v1360 = vpack.c.bf16 %v1359, %v1358
  %v1361 = vld [vmem:[%s10] sm:$0xf]
  %v1362 = vld [vmem:[%s10 + $0x4] sm:$0xf]
  %v1363 = vld [vmem:[%s10 + $0x8] sm:$0xf]
  %v1364 = vld [vmem:[%s10 + $0xc] sm:$0xf]
  %v1365 = vld [vmem:[%s11] sm:$0x1]
  %v1367 = vlaneseq
  %v1368 = vshrl.u32 %v1367, 7
  %v1369 = vsub.s32 0, %v1368
  %v1370 = vrot.slane %v1365, %v1369
  %v1376 = vunpack.c.l.b16 %v1361
  %v1377 = vunpack.c.l.b16 %v1362
  %v1378 = vunpack.c.l.b16 %v1363
  %v1379 = vunpack.c.l.b16 %v1364
  %v1380 = vpack.c.b16 %v1377, %v1376
  %v1381 = vpack.c.b16 %v1379, %v1378
  %v1385 = vsel %vm169, %v1360, 0
  %1387 = vmatprep.subr.bf16.mxu0 0
  %1388 = vmatpush1.bf16.msra.mxu0 %v1380
  %1389 = vmatprep.subr.bf16.mxu0 0
  %1390 = vmatpush1.bf16.msra.mxu0 %v1381
  %1391 = vmatprep.subr.bf16.mxu0 0
  %1392 = vmatpush1.bf16.msra.mxu0 0
  %1393 = vmatprep.subr.bf16.mxu0 0
  %1394 = vmatpush1.bf16.msra.mxu0 0
  %1395 = vmatprep.subr.bf16.mxu0 0
  %1396 = vmatpush1.bf16.msra.mxu0 0
  %1397 = vmatprep.subr.bf16.mxu0 0
  %1398 = vmatpush1.bf16.msra.mxu0 0
  %1399 = vmatprep.subr.bf16.mxu0 0
  %1400 = vmatpush1.bf16.msra.mxu0 0
  %1401 = vmatprep.subr.bf16.mxu0 0
  %1402 = vmatpush1.bf16.msra.mxu0 0
  %1403 = vmatprep.subr.bf16.mxu0 0
  %1404 = vmatpush1.bf16.msra.mxu0 0
  %1405 = vmatprep.subr.bf16.mxu0 0
  %1406 = vmatpush1.bf16.msra.mxu0 0
  %1407 = vmatprep.subr.bf16.mxu0 0
  %1408 = vmatpush1.bf16.msra.mxu0 0
  %1409 = vmatprep.subr.bf16.mxu0 0
  %1410 = vmatpush1.bf16.msra.mxu0 0
  %1411 = vmatprep.subr.bf16.mxu0 0
  %1412 = vmatpush1.bf16.msra.mxu0 0
  %1413 = vmatprep.subr.bf16.mxu0 0
  %1414 = vmatpush1.bf16.msra.mxu0 0
  %1415 = vmatprep.subr.bf16.mxu0 0
  %1416 = vmatpush1.bf16.msra.mxu0 0
  %1417 = vmatprep.subr.bf16.mxu0 0
  %1418 = vmatpush1.bf16.msra.mxu0 0
  %1419 = vmatprep.mubr.bf16.mxu0 0
  %1420 = vmatmul.mubr.bf16.gmra.mrb[0].mxu0 %v1385
  %v1421 = vpop.f32.mrb[0].mxu0
  %v1422 = vadd.f32 %v1370, %v1421
  %v1423 = vpop.f32.mrb[0].mxu0
  %v1424 = vpop.f32.mrb[0].mxu0
  %v1425 = vadd.f32 %v1370, %v1424
  %v1426 = vpop.f32.mrb[0].mxu0
  %1427 = vdwg.mxu0
  %v1428 = vmax.f32 %v1422, 0.0
  %v1429 = vmax.f32 %v1425, 0.0
  %v1430 = vpack.c.bf16 %v1429, %v1428
  %v1431 = vld [vmem:[%s12] sm:$0xf]
  %v1432 = vld [vmem:[%s12 + $0x4] sm:$0xf]
  %v1433 = vld [vmem:[%s12 + $0x8] sm:$0xf]
  %v1434 = vld [vmem:[%s12 + $0xc] sm:$0xf]
  %v1435 = vld [vmem:[%s12 + $0x10] sm:$0xf]
  %v1436 = vld [vmem:[%s12 + $0x14] sm:$0xf]
  %v1437 = vld [vmem:[%s12 + $0x18] sm:$0xf]
  %v1438 = vld [vmem:[%s12 + $0x1c] sm:$0xf]
  %v1439 = vld [vmem:[%s13] sm:$0x1]
  %v1441 = vlaneseq
  %v1442 = vshrl.u32 %v1441, 7
  %v1443 = vsub.s32 0, %v1442
  %v1444 = vrot.slane %v1439, %v1443
  %v1454 = vunpack.c.l.b16 %v1431
  %v1455 = vunpack.c.l.b16 %v1432
  %v1456 = vunpack.c.l.b16 %v1433
  %v1457 = vunpack.c.l.b16 %v1434
  %v1458 = vunpack.c.l.b16 %v1435
  %v1459 = vunpack.c.l.b16 %v1436
  %v1460 = vunpack.c.l.b16 %v1437
  %v1461 = vunpack.c.l.b16 %v1438
  %v1462 = vpack.c.b16 %v1455, %v1454
  %v1463 = vpack.c.b16 %v1457, %v1456
  %v1464 = vpack.c.b16 %v1459, %v1458
  %v1465 = vpack.c.b16 %v1461, %v1460
  %vm1470 = vcmask 523264
  %v1472 = vsel %vm1470, %v1430, 0
  %1474 = vmatprep.subr.bf16.mxu0 0
  %1475 = vmatpush1.bf16.msra.mxu0 %v1462
  %1476 = vmatprep.subr.bf16.mxu0 0
  %1477 = vmatpush1.bf16.msra.mxu0 %v1463
  %1478 = vmatprep.subr.bf16.mxu0 0
  %1479 = vmatpush1.bf16.msra.mxu0 %v1464
  %1480 = vmatprep.subr.bf16.mxu0 0
  %1481 = vmatpush1.bf16.msra.mxu0 %v1465
  %1482 = vmatprep.subr.bf16.mxu0 0
  %1483 = vmatpush1.bf16.msra.mxu0 0
  %1484 = vmatprep.subr.bf16.mxu0 0
  %1485 = vmatpush1.bf16.msra.mxu0 0
  %1486 = vmatprep.subr.bf16.mxu0 0
  %1487 = vmatpush1.bf16.msra.mxu0 0
  %1488 = vmatprep.subr.bf16.mxu0 0
  %1489 = vmatpush1.bf16.msra.mxu0 0
  %1490 = vmatprep.subr.bf16.mxu0 0
  %1491 = vmatpush1.bf16.msra.mxu0 0
  %1492 = vmatprep.subr.bf16.mxu0 0
  %1493 = vmatpush1.bf16.msra.mxu0 0
  %1494 = vmatprep.subr.bf16.mxu0 0
  %1495 = vmatpush1.bf16.msra.mxu0 0
  %1496 = vmatprep.subr.bf16.mxu0 0
  %1497 = vmatpush1.bf16.msra.mxu0 0
  %1498 = vmatprep.subr.bf16.mxu0 0
  %1499 = vmatpush1.bf16.msra.mxu0 0
  %1500 = vmatprep.subr.bf16.mxu0 0
  %1501 = vmatpush1.bf16.msra.mxu0 0
  %1502 = vmatprep.subr.bf16.mxu0 0
  %1503 = vmatpush1.bf16.msra.mxu0 0
  %1504 = vmatprep.subr.bf16.mxu0 0
  %1505 = vmatpush1.bf16.msra.mxu0 0
  %1506 = vmatprep.mubr.bf16.mxu0 0
  %1507 = vmatmul.mubr.bf16.gmra.mrb[0].mxu0 %v1472
  %v1508 = vpop.f32.mrb[0].mxu0
  %v1509 = vadd.f32 %v1444, %v1508
  %v1510 = vpop.f32.mrb[0].mxu0
  %v1511 = vpop.f32.mrb[0].mxu0
  %v1512 = vadd.f32 %v1444, %v1511
  %v1513 = vpop.f32.mrb[0].mxu0
  %1514 = vdwg.mxu0
  %v1515 = vadd.f32 %v1358, %v1509
  %v1516 = vadd.f32 %v1359, %v1512
  %v1517 = vld [vmem:[%s14] sm:$0x1]
  %v1518 = vld [vmem:[%s15] sm:$0x1]
  %v1519 = vsel %vm169, %v1515, 0.0
  %1520 = vadd.xlane.f32.xlu0 %v1519
  %v1521 = vpop.xlane.xlu0 %1520
  %v1522 = vsel %vm169, %v1516, 0.0
  %1523 = vadd.xlane.f32.xlu0 %v1522
  %v1524 = vpop.xlane.xlu0 %1523
  %v1525 = vmul.f32 %v1521, %v1317
  %v1526 = vmul.f32 %v1524, %v1317
  %v1527 = vmul.f32 %v1515, %v1515
  %v1528 = vmul.f32 %v1516, %v1516
  %v1529 = vsel %vm169, %v1527, 0.0
  %1530 = vadd.xlane.f32.xlu0 %v1529
  %v1531 = vpop.xlane.xlu0 %1530
  %v1532 = vsel %vm169, %v1528, 0.0
  %1533 = vadd.xlane.f32.xlu0 %v1532
  %v1534 = vpop.xlane.xlu0 %1533
  %v1535 = vmul.f32 %v1531, %v1317
  %v1536 = vmul.f32 %v1534, %v1317
  %v1537 = vmul.f32 %v1525, %v1525
  %v1538 = vmul.f32 %v1526, %v1526
  %v1539 = vsub.f32 %v1535, %v1537
  %v1540 = vsub.f32 %v1536, %v1538
  %v1541 = vmax.f32 %v1539, 0.0
  %v1542 = vmax.f32 %v1540, 0.0
  %v1543 = vsub.f32 %v1515, %v1525
  %v1544 = vsub.f32 %v1516, %v1526
  %v1545 = vadd.f32 %v1541, 1e-05
  %v1546 = vadd.f32 %v1542, 1e-05
  %v1547 = vrsqrt.pop %v1545
  %v1548 = vrsqrt.pop %v1546
  %v1549 = vmul.f32 %v1543, %v1547
  %v1550 = vmul.f32 %v1544, %v1548
  %v1552 = vlaneseq
  %v1553 = vshrl.u32 %v1552, 7
  %v1554 = vsub.s32 0, %v1553
  %v1555 = vrot.slane %v1517, %v1554
  %v1557 = vmul.f32 %v1549, %v1555
  %v1558 = vmul.f32 %v1550, %v1555
  %v1560 = vlaneseq
  %v1561 = vshrl.u32 %v1560, 7
  %v1562 = vsub.s32 0, %v1561
  %v1563 = vrot.slane %v1518, %v1562
  %v1565 = vadd.f32 %v1557, %v1563
  %v1566 = vadd.f32 %v1558, %v1563
  %v1567 = vpack.c.bf16 %v1566, %v1565
  %s1568 = scalar_lea.vmem %s4, 16
  %v1569 = vld [vmem:[%s1568] sm:$0xf]
  %v1570 = vld [vmem:[%s1568 + $0x4] sm:$0xf]
  %v1571 = vld [vmem:[%s1568 + $0x8] sm:$0xf]
  %v1572 = vld [vmem:[%s1568 + $0xc] sm:$0xf]
  %s1573 = scalar_lea.vmem %s5, 1
  %v1574 = vld [vmem:[%s1573] sm:$0x1]
  %v1576 = vlaneseq
  %v1577 = vshrl.u32 %v1576, 7
  %v1578 = vsub.s32 0, %v1577
  %v1579 = vrot.slane %v1574, %v1578
  %v1585 = vunpack.c.l.b16 %v1569
  %v1586 = vunpack.c.l.b16 %v1570
  %v1587 = vunpack.c.l.b16 %v1571
  %v1588 = vunpack.c.l.b16 %v1572
  %v1589 = vpack.c.b16 %v1586, %v1585
  %v1590 = vpack.c.b16 %v1588, %v1587
  %v1594 = vsel %vm169, %v1567, 0
  %1596 = vmatprep.subr.bf16.mxu0 0
  %1597 = vmatpush1.bf16.msra.mxu0 %v1589
  %1598 = vmatprep.subr.bf16.mxu0 0
  %1599 = vmatpush1.bf16.msra.mxu0 %v1590
  %1600 = vmatprep.subr.bf16.mxu0 0
  %1601 = vmatpush1.bf16.msra.mxu0 0
  %1602 = vmatprep.subr.bf16.mxu0 0
  %1603 = vmatpush1.bf16.msra.mxu0 0
  %1604 = vmatprep.subr.bf16.mxu0 0
  %1605 = vmatpush1.bf16.msra.mxu0 0
  %1606 = vmatprep.subr.bf16.mxu0 0
  %1607 = vmatpush1.bf16.msra.mxu0 0
  %1608 = vmatprep.subr.bf16.mxu0 0
  %1609 = vmatpush1.bf16.msra.mxu0 0
  %1610 = vmatprep.subr.bf16.mxu0 0
  %1611 = vmatpush1.bf16.msra.mxu0 0
  %1612 = vmatprep.subr.bf16.mxu0 0
  %1613 = vmatpush1.bf16.msra.mxu0 0
  %1614 = vmatprep.subr.bf16.mxu0 0
  %1615 = vmatpush1.bf16.msra.mxu0 0
  %1616 = vmatprep.subr.bf16.mxu0 0
  %1617 = vmatpush1.bf16.msra.mxu0 0
  %1618 = vmatprep.subr.bf16.mxu0 0
  %1619 = vmatpush1.bf16.msra.mxu0 0
  %1620 = vmatprep.subr.bf16.mxu0 0
  %1621 = vmatpush1.bf16.msra.mxu0 0
  %1622 = vmatprep.subr.bf16.mxu0 0
  %1623 = vmatpush1.bf16.msra.mxu0 0
  %1624 = vmatprep.subr.bf16.mxu0 0
  %1625 = vmatpush1.bf16.msra.mxu0 0
  %1626 = vmatprep.subr.bf16.mxu0 0
  %1627 = vmatpush1.bf16.msra.mxu0 0
  %1628 = vmatprep.mubr.bf16.mxu0 0
  %1629 = vmatmul.mubr.bf16.gmra.mrb[0].mxu0 %v1594
  %v1630 = vpop.f32.mrb[0].mxu0
  %v1631 = vadd.f32 %v1579, %v1630
  %v1632 = vpop.f32.mrb[0].mxu0
  %v1633 = vpop.f32.mrb[0].mxu0
  %v1634 = vadd.f32 %v1579, %v1633
  %v1635 = vpop.f32.mrb[0].mxu0
  %1636 = vdwg.mxu0
  %v1637 = vpack.c.bf16 %v1634, %v1631
  %1639 = vrot.lane.b32.xlu0 %v1637, 96
  %v1640 = vpop.permute.xlu0 %1639
  %v1642 = vsel %vm218, %v1637, 0
  %v1645 = vsel %vm218, %v1640, 0
  %1647 = vmatprep.subr.bf16.mxu0 0
  %1648 = vmatpush1.bf16.xpose.msra.mxu0 %v1645
  %1649 = vmatprep.subr.bf16.mxu0 0
  %1650 = vmatpush1.bf16.xpose.msra.mxu0 0
  %1651 = vmatprep.subr.bf16.mxu0 0
  %1652 = vmatpush1.bf16.xpose.msra.mxu0 0
  %1653 = vmatprep.subr.bf16.mxu0 0
  %1654 = vmatpush1.bf16.xpose.msra.mxu0 0
  %1655 = vmatprep.subr.bf16.mxu0 0
  %1656 = vmatpush1.bf16.xpose.msra.mxu0 0
  %1657 = vmatprep.subr.bf16.mxu0 0
  %1658 = vmatpush1.bf16.xpose.msra.mxu0 0
  %1659 = vmatprep.subr.bf16.mxu0 0
  %1660 = vmatpush1.bf16.xpose.msra.mxu0 0
  %1661 = vmatprep.subr.bf16.mxu0 0
  %1662 = vmatpush1.bf16.xpose.msra.mxu0 0
  %1663 = vmatprep.subr.bf16.mxu0 0
  %1664 = vmatpush1.bf16.xpose.msra.mxu0 0
  %1665 = vmatprep.subr.bf16.mxu0 0
  %1666 = vmatpush1.bf16.xpose.msra.mxu0 0
  %1667 = vmatprep.subr.bf16.mxu0 0
  %1668 = vmatpush1.bf16.xpose.msra.mxu0 0
  %1669 = vmatprep.subr.bf16.mxu0 0
  %1670 = vmatpush1.bf16.xpose.msra.mxu0 0
  %1671 = vmatprep.subr.bf16.mxu0 0
  %1672 = vmatpush1.bf16.xpose.msra.mxu0 0
  %1673 = vmatprep.subr.bf16.mxu0 0
  %1674 = vmatpush1.bf16.xpose.msra.mxu0 0
  %1675 = vmatprep.subr.bf16.mxu0 0
  %1676 = vmatpush1.bf16.xpose.msra.mxu0 0
  %1677 = vmatprep.subr.bf16.mxu0 0
  %1678 = vmatpush1.bf16.xpose.msra.mxu0 0
  %1679 = vmatprep.mubr.bf16.mxu0 0
  %1680 = vmatmul.mubr.bf16.gmra.mrb[0].mxu0 %v1642
  %v1681 = vpop.f32.mrb[0].mxu0
  %v1682 = vadd.f32 0.0, %v1681
  %v1683 = vpop.f32.mrb[0].mxu0
  %v1684 = vpop.f32.mrb[0].mxu0
  %v1685 = vpop.f32.mrb[0].mxu0
  %1686 = vdwg.mxu0
  %1687 = vrot.lane.b32.xlu0 %v1637, 120
  %v1688 = vpop.permute.xlu0 %1687
  %1689 = vrot.lane.b32.xlu0 %v1637, 88
  %v1690 = vpop.permute.xlu0 %1689
  %v1692 = vsel %vm218, %v1688, 0
  %v1695 = vsel %vm218, %v1690, 0
  %1697 = vmatprep.subr.bf16.mxu0 0
  %1698 = vmatpush1.bf16.xpose.msra.mxu0 %v1695
  %1699 = vmatprep.subr.bf16.mxu0 0
  %1700 = vmatpush1.bf16.xpose.msra.mxu0 0
  %1701 = vmatprep.subr.bf16.mxu0 0
  %1702 = vmatpush1.bf16.xpose.msra.mxu0 0
  %1703 = vmatprep.subr.bf16.mxu0 0
  %1704 = vmatpush1.bf16.xpose.msra.mxu0 0
  %1705 = vmatprep.subr.bf16.mxu0 0
  %1706 = vmatpush1.bf16.xpose.msra.mxu0 0
  %1707 = vmatprep.subr.bf16.mxu0 0
  %1708 = vmatpush1.bf16.xpose.msra.mxu0 0
  %1709 = vmatprep.subr.bf16.mxu0 0
  %1710 = vmatpush1.bf16.xpose.msra.mxu0 0
  %1711 = vmatprep.subr.bf16.mxu0 0
  %1712 = vmatpush1.bf16.xpose.msra.mxu0 0
  %1713 = vmatprep.subr.bf16.mxu0 0
  %1714 = vmatpush1.bf16.xpose.msra.mxu0 0
  %1715 = vmatprep.subr.bf16.mxu0 0
  %1716 = vmatpush1.bf16.xpose.msra.mxu0 0
  %1717 = vmatprep.subr.bf16.mxu0 0
  %1718 = vmatpush1.bf16.xpose.msra.mxu0 0
  %1719 = vmatprep.subr.bf16.mxu0 0
  %1720 = vmatpush1.bf16.xpose.msra.mxu0 0
  %1721 = vmatprep.subr.bf16.mxu0 0
  %1722 = vmatpush1.bf16.xpose.msra.mxu0 0
  %1723 = vmatprep.subr.bf16.mxu0 0
  %1724 = vmatpush1.bf16.xpose.msra.mxu0 0
  %1725 = vmatprep.subr.bf16.mxu0 0
  %1726 = vmatpush1.bf16.xpose.msra.mxu0 0
  %1727 = vmatprep.subr.bf16.mxu0 0
  %1728 = vmatpush1.bf16.xpose.msra.mxu0 0
  %1729 = vmatprep.mubr.bf16.mxu0 0
  %1730 = vmatmul.mubr.bf16.gmra.mrb[0].mxu0 %v1692
  %v1731 = vpop.f32.mrb[0].mxu0
  %v1732 = vadd.f32 0.0, %v1731
  %v1733 = vpop.f32.mrb[0].mxu0
  %v1734 = vpop.f32.mrb[0].mxu0
  %v1735 = vpop.f32.mrb[0].mxu0
  %1736 = vdwg.mxu0
  %1737 = vrot.lane.b32.xlu0 %v1637, 112
  %v1738 = vpop.permute.xlu0 %1737
  %1739 = vrot.lane.b32.xlu0 %v1637, 80
  %v1740 = vpop.permute.xlu0 %1739
  %v1742 = vsel %vm218, %v1738, 0
  %v1745 = vsel %vm218, %v1740, 0
  %1747 = vmatprep.subr.bf16.mxu0 0
  %1748 = vmatpush1.bf16.xpose.msra.mxu0 %v1745
  %1749 = vmatprep.subr.bf16.mxu0 0
  %1750 = vmatpush1.bf16.xpose.msra.mxu0 0
  %1751 = vmatprep.subr.bf16.mxu0 0
  %1752 = vmatpush1.bf16.xpose.msra.mxu0 0
  %1753 = vmatprep.subr.bf16.mxu0 0
  %1754 = vmatpush1.bf16.xpose.msra.mxu0 0
  %1755 = vmatprep.subr.bf16.mxu0 0
  %1756 = vmatpush1.bf16.xpose.msra.mxu0 0
  %1757 = vmatprep.subr.bf16.mxu0 0
  %1758 = vmatpush1.bf16.xpose.msra.mxu0 0
  %1759 = vmatprep.subr.bf16.mxu0 0
  %1760 = vmatpush1.bf16.xpose.msra.mxu0 0
  %1761 = vmatprep.subr.bf16.mxu0 0
  %1762 = vmatpush1.bf16.xpose.msra.mxu0 0
  %1763 = vmatprep.subr.bf16.mxu0 0
  %1764 = vmatpush1.bf16.xpose.msra.mxu0 0
  %1765 = vmatprep.subr.bf16.mxu0 0
  %1766 = vmatpush1.bf16.xpose.msra.mxu0 0
  %1767 = vmatprep.subr.bf16.mxu0 0
  %1768 = vmatpush1.bf16.xpose.msra.mxu0 0
  %1769 = vmatprep.subr.bf16.mxu0 0
  %1770 = vmatpush1.bf16.xpose.msra.mxu0 0
  %1771 = vmatprep.subr.bf16.mxu0 0
  %1772 = vmatpush1.bf16.xpose.msra.mxu0 0
  %1773 = vmatprep.subr.bf16.mxu0 0
  %1774 = vmatpush1.bf16.xpose.msra.mxu0 0
  %1775 = vmatprep.subr.bf16.mxu0 0
  %1776 = vmatpush1.bf16.xpose.msra.mxu0 0
  %1777 = vmatprep.subr.bf16.mxu0 0
  %1778 = vmatpush1.bf16.xpose.msra.mxu0 0
  %1779 = vmatprep.mubr.bf16.mxu0 0
  %1780 = vmatmul.mubr.bf16.gmra.mrb[0].mxu0 %v1742
  %v1781 = vpop.f32.mrb[0].mxu0
  %v1782 = vadd.f32 0.0, %v1781
  %v1783 = vpop.f32.mrb[0].mxu0
  %v1784 = vpop.f32.mrb[0].mxu0
  %v1785 = vpop.f32.mrb[0].mxu0
  %1786 = vdwg.mxu0
  %1787 = vrot.lane.b32.xlu0 %v1637, 104
  %v1788 = vpop.permute.xlu0 %1787
  %1789 = vrot.lane.b32.xlu0 %v1637, 72
  %v1790 = vpop.permute.xlu0 %1789
  %v1792 = vsel %vm218, %v1788, 0
  %v1795 = vsel %vm218, %v1790, 0
  %1797 = vmatprep.subr.bf16.mxu0 0
  %1798 = vmatpush1.bf16.xpose.msra.mxu0 %v1795
  %1799 = vmatprep.subr.bf16.mxu0 0
  %1800 = vmatpush1.bf16.xpose.msra.mxu0 0
  %1801 = vmatprep.subr.bf16.mxu0 0
  %1802 = vmatpush1.bf16.xpose.msra.mxu0 0
  %1803 = vmatprep.subr.bf16.mxu0 0
  %1804 = vmatpush1.bf16.xpose.msra.mxu0 0
  %1805 = vmatprep.subr.bf16.mxu0 0
  %1806 = vmatpush1.bf16.xpose.msra.mxu0 0
  %1807 = vmatprep.subr.bf16.mxu0 0
  %1808 = vmatpush1.bf16.xpose.msra.mxu0 0
  %1809 = vmatprep.subr.bf16.mxu0 0
  %1810 = vmatpush1.bf16.xpose.msra.mxu0 0
  %1811 = vmatprep.subr.bf16.mxu0 0
  %1812 = vmatpush1.bf16.xpose.msra.mxu0 0
  %1813 = vmatprep.subr.bf16.mxu0 0
  %1814 = vmatpush1.bf16.xpose.msra.mxu0 0
  %1815 = vmatprep.subr.bf16.mxu0 0
  %1816 = vmatpush1.bf16.xpose.msra.mxu0 0
  %1817 = vmatprep.subr.bf16.mxu0 0
  %1818 = vmatpush1.bf16.xpose.msra.mxu0 0
  %1819 = vmatprep.subr.bf16.mxu0 0
  %1820 = vmatpush1.bf16.xpose.msra.mxu0 0
  %1821 = vmatprep.subr.bf16.mxu0 0
  %1822 = vmatpush1.bf16.xpose.msra.mxu0 0
  %1823 = vmatprep.subr.bf16.mxu0 0
  %1824 = vmatpush1.bf16.xpose.msra.mxu0 0
  %1825 = vmatprep.subr.bf16.mxu0 0
  %1826 = vmatpush1.bf16.xpose.msra.mxu0 0
  %1827 = vmatprep.subr.bf16.mxu0 0
  %1828 = vmatpush1.bf16.xpose.msra.mxu0 0
  %1829 = vmatprep.mubr.bf16.mxu0 0
  %1830 = vmatmul.mubr.bf16.gmra.mrb[0].mxu0 %v1792
  %v1831 = vpop.f32.mrb[0].mxu0
  %v1832 = vadd.f32 0.0, %v1831
  %v1833 = vpop.f32.mrb[0].mxu0
  %v1834 = vpop.f32.mrb[0].mxu0
  %v1835 = vpop.f32.mrb[0].mxu0
  %1836 = vdwg.mxu0
  %v1837 = vrot.slane %v1637, 4
  %1838 = vrot.lane.b32.xlu0 %v1837, 96
  %v1839 = vpop.permute.xlu0 %1838
  %v1841 = vsel %vm218, %v1837, 0
  %v1844 = vsel %vm218, %v1839, 0
  %1846 = vmatprep.subr.bf16.mxu0 0
  %1847 = vmatpush1.bf16.xpose.msra.mxu0 %v1844
  %1848 = vmatprep.subr.bf16.mxu0 0
  %1849 = vmatpush1.bf16.xpose.msra.mxu0 0
  %1850 = vmatprep.subr.bf16.mxu0 0
  %1851 = vmatpush1.bf16.xpose.msra.mxu0 0
  %1852 = vmatprep.subr.bf16.mxu0 0
  %1853 = vmatpush1.bf16.xpose.msra.mxu0 0
  %1854 = vmatprep.subr.bf16.mxu0 0
  %1855 = vmatpush1.bf16.xpose.msra.mxu0 0
  %1856 = vmatprep.subr.bf16.mxu0 0
  %1857 = vmatpush1.bf16.xpose.msra.mxu0 0
  %1858 = vmatprep.subr.bf16.mxu0 0
  %1859 = vmatpush1.bf16.xpose.msra.mxu0 0
  %1860 = vmatprep.subr.bf16.mxu0 0
  %1861 = vmatpush1.bf16.xpose.msra.mxu0 0
  %1862 = vmatprep.subr.bf16.mxu0 0
  %1863 = vmatpush1.bf16.xpose.msra.mxu0 0
  %1864 = vmatprep.subr.bf16.mxu0 0
  %1865 = vmatpush1.bf16.xpose.msra.mxu0 0
  %1866 = vmatprep.subr.bf16.mxu0 0
  %1867 = vmatpush1.bf16.xpose.msra.mxu0 0
  %1868 = vmatprep.subr.bf16.mxu0 0
  %1869 = vmatpush1.bf16.xpose.msra.mxu0 0
  %1870 = vmatprep.subr.bf16.mxu0 0
  %1871 = vmatpush1.bf16.xpose.msra.mxu0 0
  %1872 = vmatprep.subr.bf16.mxu0 0
  %1873 = vmatpush1.bf16.xpose.msra.mxu0 0
  %1874 = vmatprep.subr.bf16.mxu0 0
  %1875 = vmatpush1.bf16.xpose.msra.mxu0 0
  %1876 = vmatprep.subr.bf16.mxu0 0
  %1877 = vmatpush1.bf16.xpose.msra.mxu0 0
  %1878 = vmatprep.mubr.bf16.mxu0 0
  %1879 = vmatmul.mubr.bf16.gmra.mrb[0].mxu0 %v1841
  %v1880 = vpop.f32.mrb[0].mxu0
  %v1881 = vadd.f32 0.0, %v1880
  %v1882 = vpop.f32.mrb[0].mxu0
  %v1883 = vpop.f32.mrb[0].mxu0
  %v1884 = vpop.f32.mrb[0].mxu0
  %1885 = vdwg.mxu0
  %1886 = vrot.lane.b32.xlu0 %v1837, 120
  %v1887 = vpop.permute.xlu0 %1886
  %1888 = vrot.lane.b32.xlu0 %v1837, 88
  %v1889 = vpop.permute.xlu0 %1888
  %v1891 = vsel %vm218, %v1887, 0
  %v1894 = vsel %vm218, %v1889, 0
  %1896 = vmatprep.subr.bf16.mxu0 0
  %1897 = vmatpush1.bf16.xpose.msra.mxu0 %v1894
  %1898 = vmatprep.subr.bf16.mxu0 0
  %1899 = vmatpush1.bf16.xpose.msra.mxu0 0
  %1900 = vmatprep.subr.bf16.mxu0 0
  %1901 = vmatpush1.bf16.xpose.msra.mxu0 0
  %1902 = vmatprep.subr.bf16.mxu0 0
  %1903 = vmatpush1.bf16.xpose.msra.mxu0 0
  %1904 = vmatprep.subr.bf16.mxu0 0
  %1905 = vmatpush1.bf16.xpose.msra.mxu0 0
  %1906 = vmatprep.subr.bf16.mxu0 0
  %1907 = vmatpush1.bf16.xpose.msra.mxu0 0
  %1908 = vmatprep.subr.bf16.mxu0 0
  %1909 = vmatpush1.bf16.xpose.msra.mxu0 0
  %1910 = vmatprep.subr.bf16.mxu0 0
  %1911 = vmatpush1.bf16.xpose.msra.mxu0 0
  %1912 = vmatprep.subr.bf16.mxu0 0
  %1913 = vmatpush1.bf16.xpose.msra.mxu0 0
  %1914 = vmatprep.subr.bf16.mxu0 0
  %1915 = vmatpush1.bf16.xpose.msra.mxu0 0
  %1916 = vmatprep.subr.bf16.mxu0 0
  %1917 = vmatpush1.bf16.xpose.msra.mxu0 0
  %1918 = vmatprep.subr.bf16.mxu0 0
  %1919 = vmatpush1.bf16.xpose.msra.mxu0 0
  %1920 = vmatprep.subr.bf16.mxu0 0
  %1921 = vmatpush1.bf16.xpose.msra.mxu0 0
  %1922 = vmatprep.subr.bf16.mxu0 0
  %1923 = vmatpush1.bf16.xpose.msra.mxu0 0
  %1924 = vmatprep.subr.bf16.mxu0 0
  %1925 = vmatpush1.bf16.xpose.msra.mxu0 0
  %1926 = vmatprep.subr.bf16.mxu0 0
  %1927 = vmatpush1.bf16.xpose.msra.mxu0 0
  %1928 = vmatprep.mubr.bf16.mxu0 0
  %1929 = vmatmul.mubr.bf16.gmra.mrb[0].mxu0 %v1891
  %v1930 = vpop.f32.mrb[0].mxu0
  %v1931 = vadd.f32 0.0, %v1930
  %v1932 = vpop.f32.mrb[0].mxu0
  %v1933 = vpop.f32.mrb[0].mxu0
  %v1934 = vpop.f32.mrb[0].mxu0
  %1935 = vdwg.mxu0
  %1936 = vrot.lane.b32.xlu0 %v1837, 112
  %v1937 = vpop.permute.xlu0 %1936
  %1938 = vrot.lane.b32.xlu0 %v1837, 80
  %v1939 = vpop.permute.xlu0 %1938
  %v1941 = vsel %vm218, %v1937, 0
  %v1944 = vsel %vm218, %v1939, 0
  %1946 = vmatprep.subr.bf16.mxu0 0
  %1947 = vmatpush1.bf16.xpose.msra.mxu0 %v1944
  %1948 = vmatprep.subr.bf16.mxu0 0
  %1949 = vmatpush1.bf16.xpose.msra.mxu0 0
  %1950 = vmatprep.subr.bf16.mxu0 0
  %1951 = vmatpush1.bf16.xpose.msra.mxu0 0
  %1952 = vmatprep.subr.bf16.mxu0 0
  %1953 = vmatpush1.bf16.xpose.msra.mxu0 0
  %1954 = vmatprep.subr.bf16.mxu0 0
  %1955 = vmatpush1.bf16.xpose.msra.mxu0 0
  %1956 = vmatprep.subr.bf16.mxu0 0
  %1957 = vmatpush1.bf16.xpose.msra.mxu0 0
  %1958 = vmatprep.subr.bf16.mxu0 0
  %1959 = vmatpush1.bf16.xpose.msra.mxu0 0
  %1960 = vmatprep.subr.bf16.mxu0 0
  %1961 = vmatpush1.bf16.xpose.msra.mxu0 0
  %1962 = vmatprep.subr.bf16.mxu0 0
  %1963 = vmatpush1.bf16.xpose.msra.mxu0 0
  %1964 = vmatprep.subr.bf16.mxu0 0
  %1965 = vmatpush1.bf16.xpose.msra.mxu0 0
  %1966 = vmatprep.subr.bf16.mxu0 0
  %1967 = vmatpush1.bf16.xpose.msra.mxu0 0
  %1968 = vmatprep.subr.bf16.mxu0 0
  %1969 = vmatpush1.bf16.xpose.msra.mxu0 0
  %1970 = vmatprep.subr.bf16.mxu0 0
  %1971 = vmatpush1.bf16.xpose.msra.mxu0 0
  %1972 = vmatprep.subr.bf16.mxu0 0
  %1973 = vmatpush1.bf16.xpose.msra.mxu0 0
  %1974 = vmatprep.subr.bf16.mxu0 0
  %1975 = vmatpush1.bf16.xpose.msra.mxu0 0
  %1976 = vmatprep.subr.bf16.mxu0 0
  %1977 = vmatpush1.bf16.xpose.msra.mxu0 0
  %1978 = vmatprep.mubr.bf16.mxu0 0
  %1979 = vmatmul.mubr.bf16.gmra.mrb[0].mxu0 %v1941
  %v1980 = vpop.f32.mrb[0].mxu0
  %v1981 = vadd.f32 0.0, %v1980
  %v1982 = vpop.f32.mrb[0].mxu0
  %v1983 = vpop.f32.mrb[0].mxu0
  %v1984 = vpop.f32.mrb[0].mxu0
  %1985 = vdwg.mxu0
  %1986 = vrot.lane.b32.xlu0 %v1837, 104
  %v1987 = vpop.permute.xlu0 %1986
  %1988 = vrot.lane.b32.xlu0 %v1837, 72
  %v1989 = vpop.permute.xlu0 %1988
  %v1991 = vsel %vm218, %v1987, 0
  %v1994 = vsel %vm218, %v1989, 0
  %1996 = vmatprep.subr.bf16.mxu0 0
  %1997 = vmatpush1.bf16.xpose.msra.mxu0 %v1994
  %1998 = vmatprep.subr.bf16.mxu0 0
  %1999 = vmatpush1.bf16.xpose.msra.mxu0 0
  %2000 = vmatprep.subr.bf16.mxu0 0
  %2001 = vmatpush1.bf16.xpose.msra.mxu0 0
  %2002 = vmatprep.subr.bf16.mxu0 0
  %2003 = vmatpush1.bf16.xpose.msra.mxu0 0
  %2004 = vmatprep.subr.bf16.mxu0 0
  %2005 = vmatpush1.bf16.xpose.msra.mxu0 0
  %2006 = vmatprep.subr.bf16.mxu0 0
  %2007 = vmatpush1.bf16.xpose.msra.mxu0 0
  %2008 = vmatprep.subr.bf16.mxu0 0
  %2009 = vmatpush1.bf16.xpose.msra.mxu0 0
  %2010 = vmatprep.subr.bf16.mxu0 0
  %2011 = vmatpush1.bf16.xpose.msra.mxu0 0
  %2012 = vmatprep.subr.bf16.mxu0 0
  %2013 = vmatpush1.bf16.xpose.msra.mxu0 0
  %2014 = vmatprep.subr.bf16.mxu0 0
  %2015 = vmatpush1.bf16.xpose.msra.mxu0 0
  %2016 = vmatprep.subr.bf16.mxu0 0
  %2017 = vmatpush1.bf16.xpose.msra.mxu0 0
  %2018 = vmatprep.subr.bf16.mxu0 0
  %2019 = vmatpush1.bf16.xpose.msra.mxu0 0
  %2020 = vmatprep.subr.bf16.mxu0 0
  %2021 = vmatpush1.bf16.xpose.msra.mxu0 0
  %2022 = vmatprep.subr.bf16.mxu0 0
  %2023 = vmatpush1.bf16.xpose.msra.mxu0 0
  %2024 = vmatprep.subr.bf16.mxu0 0
  %2025 = vmatpush1.bf16.xpose.msra.mxu0 0
  %2026 = vmatprep.subr.bf16.mxu0 0
  %2027 = vmatpush1.bf16.xpose.msra.mxu0 0
  %2028 = vmatprep.mubr.bf16.mxu0 0
  %2029 = vmatmul.mubr.bf16.gmra.mrb[0].mxu0 %v1991
  %v2030 = vpop.f32.mrb[0].mxu0
  %v2031 = vadd.f32 0.0, %v2030
  %v2032 = vpop.f32.mrb[0].mxu0
  %v2033 = vpop.f32.mrb[0].mxu0
  %v2034 = vpop.f32.mrb[0].mxu0
  %2035 = vdwg.mxu0
  %v2036 = vsel %vm218, %v1682, -inf
  %2037 = vmax.xlane.f32.xlu0 %v2036
  %v2038 = vpop.xlane.xlu0 %2037
  %v2039 = vsel %vm218, %v1732, -inf
  %2040 = vmax.xlane.f32.xlu0 %v2039
  %v2041 = vpop.xlane.xlu0 %2040
  %v2042 = vsel %vm218, %v1782, -inf
  %2043 = vmax.xlane.f32.xlu0 %v2042
  %v2044 = vpop.xlane.xlu0 %2043
  %v2045 = vsel %vm218, %v1832, -inf
  %2046 = vmax.xlane.f32.xlu0 %v2045
  %v2047 = vpop.xlane.xlu0 %2046
  %v2048 = vsel %vm218, %v1881, -inf
  %2049 = vmax.xlane.f32.xlu0 %v2048
  %v2050 = vpop.xlane.xlu0 %2049
  %v2051 = vsel %vm218, %v1931, -inf
  %2052 = vmax.xlane.f32.xlu0 %v2051
  %v2053 = vpop.xlane.xlu0 %2052
  %v2054 = vsel %vm218, %v1981, -inf
  %2055 = vmax.xlane.f32.xlu0 %v2054
  %v2056 = vpop.xlane.xlu0 %2055
  %v2057 = vsel %vm218, %v2031, -inf
  %2058 = vmax.xlane.f32.xlu0 %v2057
  %v2059 = vpop.xlane.xlu0 %2058
  %v2060 = vsub.f32 %v1682, %v2038
  %v2061 = vsub.f32 %v1732, %v2041
  %v2062 = vsub.f32 %v1782, %v2044
  %v2063 = vsub.f32 %v1832, %v2047
  %v2064 = vsub.f32 %v1881, %v2050
  %v2065 = vsub.f32 %v1931, %v2053
  %v2066 = vsub.f32 %v1981, %v2056
  %v2067 = vsub.f32 %v2031, %v2059
  %v2068 = vmul.f32 %v2060, 1.442695
  %v2069 = vpow.pop %v2068
  %v2070 = vmul.f32 %v2061, 1.442695
  %v2071 = vpow.pop %v2070
  %v2072 = vmul.f32 %v2062, 1.442695
  %v2073 = vpow.pop %v2072
  %v2074 = vmul.f32 %v2063, 1.442695
  %v2075 = vpow.pop %v2074
  %v2076 = vmul.f32 %v2064, 1.442695
  %v2077 = vpow.pop %v2076
  %v2078 = vmul.f32 %v2065, 1.442695
  %v2079 = vpow.pop %v2078
  %v2080 = vmul.f32 %v2066, 1.442695
  %v2081 = vpow.pop %v2080
  %v2082 = vmul.f32 %v2067, 1.442695
  %v2083 = vpow.pop %v2082
  %v2084 = vsel %vm218, %v2069, 0.0
  %2085 = vadd.xlane.f32.xlu0 %v2084
  %v2086 = vpop.xlane.xlu0 %2085
  %v2087 = vsel %vm218, %v2071, 0.0
  %2088 = vadd.xlane.f32.xlu0 %v2087
  %v2089 = vpop.xlane.xlu0 %2088
  %v2090 = vsel %vm218, %v2073, 0.0
  %2091 = vadd.xlane.f32.xlu0 %v2090
  %v2092 = vpop.xlane.xlu0 %2091
  %v2093 = vsel %vm218, %v2075, 0.0
  %2094 = vadd.xlane.f32.xlu0 %v2093
  %v2095 = vpop.xlane.xlu0 %2094
  %v2096 = vsel %vm218, %v2077, 0.0
  %2097 = vadd.xlane.f32.xlu0 %v2096
  %v2098 = vpop.xlane.xlu0 %2097
  %v2099 = vsel %vm218, %v2079, 0.0
  %2100 = vadd.xlane.f32.xlu0 %v2099
  %v2101 = vpop.xlane.xlu0 %2100
  %v2102 = vsel %vm218, %v2081, 0.0
  %2103 = vadd.xlane.f32.xlu0 %v2102
  %v2104 = vpop.xlane.xlu0 %2103
  %v2105 = vsel %vm218, %v2083, 0.0
  %2106 = vadd.xlane.f32.xlu0 %v2105
  %v2107 = vpop.xlane.xlu0 %2106
  %v2108 = vrcp.pop %v2086
  %v2109 = vrcp.pop %v2089
  %v2110 = vrcp.pop %v2092
  %v2111 = vrcp.pop %v2095
  %v2112 = vrcp.pop %v2098
  %v2113 = vrcp.pop %v2101
  %v2114 = vrcp.pop %v2104
  %v2115 = vrcp.pop %v2107
  %v2116 = vmul.f32 %v2069, %v2108
  %v2117 = vmul.f32 %v2071, %v2109
  %v2118 = vmul.f32 %v2073, %v2110
  %v2119 = vmul.f32 %v2075, %v2111
  %v2120 = vmul.f32 %v2077, %v2112
  %v2121 = vmul.f32 %v2079, %v2113
  %v2122 = vmul.f32 %v2081, %v2114
  %v2123 = vmul.f32 %v2083, %v2115
  %v2124 = vpack.c.bf16 %v2117, %v2116
  %v2125 = vpack.c.bf16 %v2119, %v2118
  %v2126 = vpack.c.bf16 %v2121, %v2120
  %v2127 = vpack.c.bf16 %v2123, %v2122
  %s2128 = scalar_lea.vmem %s6, 16
  %v2129 = vld [vmem:[%s2128] sm:$0xf]
  %v2130 = vld [vmem:[%s2128 + $0x4] sm:$0xf]
  %v2131 = vld [vmem:[%s2128 + $0x8] sm:$0xf]
  %v2132 = vld [vmem:[%s2128 + $0xc] sm:$0xf]
  %2133 = vrot.lane.b32.xlu0 %v1637, 64
  %v2134 = vpop.permute.xlu0 %2133
  %v2136 = vsel %vm218, %v2124, 0
  %v2139 = vsel %vm96, %v2134, 0
  %2141 = vmatprep.subr.bf16.mxu0 0
  %2142 = vmatpush1.bf16.msra.mxu0 %v2139
  %2143 = vmatprep.subr.bf16.mxu0 0
  %2144 = vmatpush1.bf16.msra.mxu0 0
  %2145 = vmatprep.subr.bf16.mxu0 0
  %2146 = vmatpush1.bf16.msra.mxu0 0
  %2147 = vmatprep.subr.bf16.mxu0 0
  %2148 = vmatpush1.bf16.msra.mxu0 0
  %2149 = vmatprep.subr.bf16.mxu0 0
  %2150 = vmatpush1.bf16.msra.mxu0 0
  %2151 = vmatprep.subr.bf16.mxu0 0
  %2152 = vmatpush1.bf16.msra.mxu0 0
  %2153 = vmatprep.subr.bf16.mxu0 0
  %2154 = vmatpush1.bf16.msra.mxu0 0
  %2155 = vmatprep.subr.bf16.mxu0 0
  %2156 = vmatpush1.bf16.msra.mxu0 0
  %2157 = vmatprep.subr.bf16.mxu0 0
  %2158 = vmatpush1.bf16.msra.mxu0 0
  %2159 = vmatprep.subr.bf16.mxu0 0
  %2160 = vmatpush1.bf16.msra.mxu0 0
  %2161 = vmatprep.subr.bf16.mxu0 0
  %2162 = vmatpush1.bf16.msra.mxu0 0
  %2163 = vmatprep.subr.bf16.mxu0 0
  %2164 = vmatpush1.bf16.msra.mxu0 0
  %2165 = vmatprep.subr.bf16.mxu0 0
  %2166 = vmatpush1.bf16.msra.mxu0 0
  %2167 = vmatprep.subr.bf16.mxu0 0
  %2168 = vmatpush1.bf16.msra.mxu0 0
  %2169 = vmatprep.subr.bf16.mxu0 0
  %2170 = vmatpush1.bf16.msra.mxu0 0
  %2171 = vmatprep.subr.bf16.mxu0 0
  %2172 = vmatpush1.bf16.msra.mxu0 0
  %2173 = vmatprep.mubr.bf16.mxu0 0
  %2174 = vmatmul.mubr.bf16.gmra.mrb[0].mxu0 %v2136
  %v2175 = vpop.f32.mrb[0].mxu0
  %v2176 = vadd.f32 0.0, %v2175
  %v2177 = vpop.f32.mrb[0].mxu0
  %v2178 = vpop.f32.mrb[0].mxu0
  %v2179 = vpop.f32.mrb[0].mxu0
  %2180 = vdwg.mxu0
  %2181 = vrot.lane.b32.xlu0 %v1837, 64
  %v2182 = vpop.permute.xlu0 %2181
  %v2184 = vsel %vm218, %v2126, 0
  %v2187 = vsel %vm96, %v2182, 0
  %2189 = vmatprep.subr.bf16.mxu0 0
  %2190 = vmatpush1.bf16.msra.mxu0 %v2187
  %2191 = vmatprep.subr.bf16.mxu0 0
  %2192 = vmatpush1.bf16.msra.mxu0 0
  %2193 = vmatprep.subr.bf16.mxu0 0
  %2194 = vmatpush1.bf16.msra.mxu0 0
  %2195 = vmatprep.subr.bf16.mxu0 0
  %2196 = vmatpush1.bf16.msra.mxu0 0
  %2197 = vmatprep.subr.bf16.mxu0 0
  %2198 = vmatpush1.bf16.msra.mxu0 0
  %2199 = vmatprep.subr.bf16.mxu0 0
  %2200 = vmatpush1.bf16.msra.mxu0 0
  %2201 = vmatprep.subr.bf16.mxu0 0
  %2202 = vmatpush1.bf16.msra.mxu0 0
  %2203 = vmatprep.subr.bf16.mxu0 0
  %2204 = vmatpush1.bf16.msra.mxu0 0
  %2205 = vmatprep.subr.bf16.mxu0 0
  %2206 = vmatpush1.bf16.msra.mxu0 0
  %2207 = vmatprep.subr.bf16.mxu0 0
  %2208 = vmatpush1.bf16.msra.mxu0 0
  %2209 = vmatprep.subr.bf16.mxu0 0
  %2210 = vmatpush1.bf16.msra.mxu0 0
  %2211 = vmatprep.subr.bf16.mxu0 0
  %2212 = vmatpush1.bf16.msra.mxu0 0
  %2213 = vmatprep.subr.bf16.mxu0 0
  %2214 = vmatpush1.bf16.msra.mxu0 0
  %2215 = vmatprep.subr.bf16.mxu0 0
  %2216 = vmatpush1.bf16.msra.mxu0 0
  %2217 = vmatprep.subr.bf16.mxu0 0
  %2218 = vmatpush1.bf16.msra.mxu0 0
  %2219 = vmatprep.subr.bf16.mxu0 0
  %2220 = vmatpush1.bf16.msra.mxu0 0
  %2221 = vmatprep.mubr.bf16.mxu0 0
  %2222 = vmatmul.mubr.bf16.gmra.mrb[0].mxu0 %v2184
  %v2223 = vpop.f32.mrb[0].mxu0
  %v2224 = vadd.f32 0.0, %v2223
  %v2225 = vpop.f32.mrb[0].mxu0
  %v2226 = vpop.f32.mrb[0].mxu0
  %v2227 = vpop.f32.mrb[0].mxu0
  %2228 = vdwg.mxu0
  %v2229 = vpack.c.bf16 %v2224, %v2176
  %v2231 = vrot.slane %v2124, 4
  %2232 = vrot.lane.b32.xlu0 %v1637, 56
  %v2233 = vpop.permute.xlu0 %2232
  %v2235 = vsel %vm218, %v2231, 0
  %v2238 = vsel %vm96, %v2233, 0
  %2240 = vmatprep.subr.bf16.mxu0 0
  %2241 = vmatpush1.bf16.msra.mxu0 %v2238
  %2242 = vmatprep.subr.bf16.mxu0 0
  %2243 = vmatpush1.bf16.msra.mxu0 0
  %2244 = vmatprep.subr.bf16.mxu0 0
  %2245 = vmatpush1.bf16.msra.mxu0 0
  %2246 = vmatprep.subr.bf16.mxu0 0
  %2247 = vmatpush1.bf16.msra.mxu0 0
  %2248 = vmatprep.subr.bf16.mxu0 0
  %2249 = vmatpush1.bf16.msra.mxu0 0
  %2250 = vmatprep.subr.bf16.mxu0 0
  %2251 = vmatpush1.bf16.msra.mxu0 0
  %2252 = vmatprep.subr.bf16.mxu0 0
  %2253 = vmatpush1.bf16.msra.mxu0 0
  %2254 = vmatprep.subr.bf16.mxu0 0
  %2255 = vmatpush1.bf16.msra.mxu0 0
  %2256 = vmatprep.subr.bf16.mxu0 0
  %2257 = vmatpush1.bf16.msra.mxu0 0
  %2258 = vmatprep.subr.bf16.mxu0 0
  %2259 = vmatpush1.bf16.msra.mxu0 0
  %2260 = vmatprep.subr.bf16.mxu0 0
  %2261 = vmatpush1.bf16.msra.mxu0 0
  %2262 = vmatprep.subr.bf16.mxu0 0
  %2263 = vmatpush1.bf16.msra.mxu0 0
  %2264 = vmatprep.subr.bf16.mxu0 0
  %2265 = vmatpush1.bf16.msra.mxu0 0
  %2266 = vmatprep.subr.bf16.mxu0 0
  %2267 = vmatpush1.bf16.msra.mxu0 0
  %2268 = vmatprep.subr.bf16.mxu0 0
  %2269 = vmatpush1.bf16.msra.mxu0 0
  %2270 = vmatprep.subr.bf16.mxu0 0
  %2271 = vmatpush1.bf16.msra.mxu0 0
  %2272 = vmatprep.mubr.bf16.mxu0 0
  %2273 = vmatmul.mubr.bf16.gmra.mrb[0].mxu0 %v2235
  %v2274 = vpop.f32.mrb[0].mxu0
  %v2275 = vadd.f32 0.0, %v2274
  %v2276 = vpop.f32.mrb[0].mxu0
  %v2277 = vpop.f32.mrb[0].mxu0
  %v2278 = vpop.f32.mrb[0].mxu0
  %2279 = vdwg.mxu0
  %v2281 = vrot.slane %v2126, 4
  %2282 = vrot.lane.b32.xlu0 %v1837, 56
  %v2283 = vpop.permute.xlu0 %2282
  %v2285 = vsel %vm218, %v2281, 0
  %v2288 = vsel %vm96, %v2283, 0
  %2290 = vmatprep.subr.bf16.mxu0 0
  %2291 = vmatpush1.bf16.msra.mxu0 %v2288
  %2292 = vmatprep.subr.bf16.mxu0 0
  %2293 = vmatpush1.bf16.msra.mxu0 0
  %2294 = vmatprep.subr.bf16.mxu0 0
  %2295 = vmatpush1.bf16.msra.mxu0 0
  %2296 = vmatprep.subr.bf16.mxu0 0
  %2297 = vmatpush1.bf16.msra.mxu0 0
  %2298 = vmatprep.subr.bf16.mxu0 0
  %2299 = vmatpush1.bf16.msra.mxu0 0
  %2300 = vmatprep.subr.bf16.mxu0 0
  %2301 = vmatpush1.bf16.msra.mxu0 0
  %2302 = vmatprep.subr.bf16.mxu0 0
  %2303 = vmatpush1.bf16.msra.mxu0 0
  %2304 = vmatprep.subr.bf16.mxu0 0
  %2305 = vmatpush1.bf16.msra.mxu0 0
  %2306 = vmatprep.subr.bf16.mxu0 0
  %2307 = vmatpush1.bf16.msra.mxu0 0
  %2308 = vmatprep.subr.bf16.mxu0 0
  %2309 = vmatpush1.bf16.msra.mxu0 0
  %2310 = vmatprep.subr.bf16.mxu0 0
  %2311 = vmatpush1.bf16.msra.mxu0 0
  %2312 = vmatprep.subr.bf16.mxu0 0
  %2313 = vmatpush1.bf16.msra.mxu0 0
  %2314 = vmatprep.subr.bf16.mxu0 0
  %2315 = vmatpush1.bf16.msra.mxu0 0
  %2316 = vmatprep.subr.bf16.mxu0 0
  %2317 = vmatpush1.bf16.msra.mxu0 0
  %2318 = vmatprep.subr.bf16.mxu0 0
  %2319 = vmatpush1.bf16.msra.mxu0 0
  %2320 = vmatprep.subr.bf16.mxu0 0
  %2321 = vmatpush1.bf16.msra.mxu0 0
  %2322 = vmatprep.mubr.bf16.mxu0 0
  %2323 = vmatmul.mubr.bf16.gmra.mrb[0].mxu0 %v2285
  %v2324 = vpop.f32.mrb[0].mxu0
  %v2325 = vadd.f32 0.0, %v2324
  %v2326 = vpop.f32.mrb[0].mxu0
  %v2327 = vpop.f32.mrb[0].mxu0
  %v2328 = vpop.f32.mrb[0].mxu0
  %2329 = vdwg.mxu0
  %v2330 = vpack.c.bf16 %v2325, %v2275
  %v2332 = vsel %vm218, %v2330, 0
  %v2335 = vsel %vm96, %v2130, 0
  %2337 = vmatprep.subr.bf16.mxu0 0
  %2338 = vmatpush1.bf16.msra.mxu0 %v2335
  %2339 = vmatprep.subr.bf16.mxu0 0
  %2340 = vmatpush1.bf16.msra.mxu0 0
  %2341 = vmatprep.subr.bf16.mxu0 0
  %2342 = vmatpush1.bf16.msra.mxu0 0
  %2343 = vmatprep.subr.bf16.mxu0 0
  %2344 = vmatpush1.bf16.msra.mxu0 0
  %2345 = vmatprep.subr.bf16.mxu0 0
  %2346 = vmatpush1.bf16.msra.mxu0 0
  %2347 = vmatprep.subr.bf16.mxu0 0
  %2348 = vmatpush1.bf16.msra.mxu0 0
  %2349 = vmatprep.subr.bf16.mxu0 0
  %2350 = vmatpush1.bf16.msra.mxu0 0
  %2351 = vmatprep.subr.bf16.mxu0 0
  %2352 = vmatpush1.bf16.msra.mxu0 0
  %2353 = vmatprep.subr.bf16.mxu0 0
  %2354 = vmatpush1.bf16.msra.mxu0 0
  %2355 = vmatprep.subr.bf16.mxu0 0
  %2356 = vmatpush1.bf16.msra.mxu0 0
  %2357 = vmatprep.subr.bf16.mxu0 0
  %2358 = vmatpush1.bf16.msra.mxu0 0
  %2359 = vmatprep.subr.bf16.mxu0 0
  %2360 = vmatpush1.bf16.msra.mxu0 0
  %2361 = vmatprep.subr.bf16.mxu0 0
  %2362 = vmatpush1.bf16.msra.mxu0 0
  %2363 = vmatprep.subr.bf16.mxu0 0
  %2364 = vmatpush1.bf16.msra.mxu0 0
  %2365 = vmatprep.subr.bf16.mxu0 0
  %2366 = vmatpush1.bf16.msra.mxu0 0
  %2367 = vmatprep.subr.bf16.mxu0 0
  %2368 = vmatpush1.bf16.msra.mxu0 0
  %2369 = vmatprep.mubr.bf16.mxu0 0
  %2370 = vmatmul.mubr.bf16.gmra.mrb[0].mxu0 %v2332
  %v2371 = vpop.f32.mrb[0].mxu0
  %v2372 = vadd.f32 0.0, %v2371
  %v2373 = vpop.f32.mrb[0].mxu0
  %v2374 = vpop.f32.mrb[0].mxu0
  %v2375 = vadd.f32 0.0, %v2374
  %v2376 = vpop.f32.mrb[0].mxu0
  %2377 = vdwg.mxu0
  %v2379 = vsel %vm218, %v2229, 0
  %v2382 = vsel %vm96, %v2129, 0
  %2384 = vmatprep.subr.bf16.mxu0 0
  %2385 = vmatpush1.bf16.msra.mxu0 %v2382
  %2386 = vmatprep.subr.bf16.mxu0 0
  %2387 = vmatpush1.bf16.msra.mxu0 0
  %2388 = vmatprep.subr.bf16.mxu0 0
  %2389 = vmatpush1.bf16.msra.mxu0 0
  %2390 = vmatprep.subr.bf16.mxu0 0
  %2391 = vmatpush1.bf16.msra.mxu0 0
  %2392 = vmatprep.subr.bf16.mxu0 0
  %2393 = vmatpush1.bf16.msra.mxu0 0
  %2394 = vmatprep.subr.bf16.mxu0 0
  %2395 = vmatpush1.bf16.msra.mxu0 0
  %2396 = vmatprep.subr.bf16.mxu0 0
  %2397 = vmatpush1.bf16.msra.mxu0 0
  %2398 = vmatprep.subr.bf16.mxu0 0
  %2399 = vmatpush1.bf16.msra.mxu0 0
  %2400 = vmatprep.subr.bf16.mxu0 0
  %2401 = vmatpush1.bf16.msra.mxu0 0
  %2402 = vmatprep.subr.bf16.mxu0 0
  %2403 = vmatpush1.bf16.msra.mxu0 0
  %2404 = vmatprep.subr.bf16.mxu0 0
  %2405 = vmatpush1.bf16.msra.mxu0 0
  %2406 = vmatprep.subr.bf16.mxu0 0
  %2407 = vmatpush1.bf16.msra.mxu0 0
  %2408 = vmatprep.subr.bf16.mxu0 0
  %2409 = vmatpush1.bf16.msra.mxu0 0
  %2410 = vmatprep.subr.bf16.mxu0 0
  %2411 = vmatpush1.bf16.msra.mxu0 0
  %2412 = vmatprep.subr.bf16.mxu0 0
  %2413 = vmatpush1.bf16.msra.mxu0 0
  %2414 = vmatprep.subr.bf16.mxu0 0
  %2415 = vmatpush1.bf16.msra.mxu0 0
  %2416 = vmatprep.mubr.bf16.mxu0 0
  %2417 = vmatmul.mubr.bf16.gmra.mrb[0].mxu0 %v2379
  %v2418 = vpop.f32.mrb[0].mxu0
  %v2419 = vadd.f32 %v2372, %v2418
  %v2420 = vpop.f32.mrb[0].mxu0
  %v2421 = vpop.f32.mrb[0].mxu0
  %v2422 = vadd.f32 %v2375, %v2421
  %v2423 = vpop.f32.mrb[0].mxu0
  %2424 = vdwg.mxu0
  %2425 = vrot.lane.b32.xlu0 %v1637, 48
  %v2426 = vpop.permute.xlu0 %2425
  %v2428 = vsel %vm218, %v2125, 0
  %v2431 = vsel %vm96, %v2426, 0
  %2433 = vmatprep.subr.bf16.mxu0 0
  %2434 = vmatpush1.bf16.msra.mxu0 %v2431
  %2435 = vmatprep.subr.bf16.mxu0 0
  %2436 = vmatpush1.bf16.msra.mxu0 0
  %2437 = vmatprep.subr.bf16.mxu0 0
  %2438 = vmatpush1.bf16.msra.mxu0 0
  %2439 = vmatprep.subr.bf16.mxu0 0
  %2440 = vmatpush1.bf16.msra.mxu0 0
  %2441 = vmatprep.subr.bf16.mxu0 0
  %2442 = vmatpush1.bf16.msra.mxu0 0
  %2443 = vmatprep.subr.bf16.mxu0 0
  %2444 = vmatpush1.bf16.msra.mxu0 0
  %2445 = vmatprep.subr.bf16.mxu0 0
  %2446 = vmatpush1.bf16.msra.mxu0 0
  %2447 = vmatprep.subr.bf16.mxu0 0
  %2448 = vmatpush1.bf16.msra.mxu0 0
  %2449 = vmatprep.subr.bf16.mxu0 0
  %2450 = vmatpush1.bf16.msra.mxu0 0
  %2451 = vmatprep.subr.bf16.mxu0 0
  %2452 = vmatpush1.bf16.msra.mxu0 0
  %2453 = vmatprep.subr.bf16.mxu0 0
  %2454 = vmatpush1.bf16.msra.mxu0 0
  %2455 = vmatprep.subr.bf16.mxu0 0
  %2456 = vmatpush1.bf16.msra.mxu0 0
  %2457 = vmatprep.subr.bf16.mxu0 0
  %2458 = vmatpush1.bf16.msra.mxu0 0
  %2459 = vmatprep.subr.bf16.mxu0 0
  %2460 = vmatpush1.bf16.msra.mxu0 0
  %2461 = vmatprep.subr.bf16.mxu0 0
  %2462 = vmatpush1.bf16.msra.mxu0 0
  %2463 = vmatprep.subr.bf16.mxu0 0
  %2464 = vmatpush1.bf16.msra.mxu0 0
  %2465 = vmatprep.mubr.bf16.mxu0 0
  %2466 = vmatmul.mubr.bf16.gmra.mrb[0].mxu0 %v2428
  %v2467 = vpop.f32.mrb[0].mxu0
  %v2468 = vadd.f32 0.0, %v2467
  %v2469 = vpop.f32.mrb[0].mxu0
  %v2470 = vpop.f32.mrb[0].mxu0
  %v2471 = vpop.f32.mrb[0].mxu0
  %2472 = vdwg.mxu0
  %2473 = vrot.lane.b32.xlu0 %v1837, 48
  %v2474 = vpop.permute.xlu0 %2473
  %v2476 = vsel %vm218, %v2127, 0
  %v2479 = vsel %vm96, %v2474, 0
  %2481 = vmatprep.subr.bf16.mxu0 0
  %2482 = vmatpush1.bf16.msra.mxu0 %v2479
  %2483 = vmatprep.subr.bf16.mxu0 0
  %2484 = vmatpush1.bf16.msra.mxu0 0
  %2485 = vmatprep.subr.bf16.mxu0 0
  %2486 = vmatpush1.bf16.msra.mxu0 0
  %2487 = vmatprep.subr.bf16.mxu0 0
  %2488 = vmatpush1.bf16.msra.mxu0 0
  %2489 = vmatprep.subr.bf16.mxu0 0
  %2490 = vmatpush1.bf16.msra.mxu0 0
  %2491 = vmatprep.subr.bf16.mxu0 0
  %2492 = vmatpush1.bf16.msra.mxu0 0
  %2493 = vmatprep.subr.bf16.mxu0 0
  %2494 = vmatpush1.bf16.msra.mxu0 0
  %2495 = vmatprep.subr.bf16.mxu0 0
  %2496 = vmatpush1.bf16.msra.mxu0 0
  %2497 = vmatprep.subr.bf16.mxu0 0
  %2498 = vmatpush1.bf16.msra.mxu0 0
  %2499 = vmatprep.subr.bf16.mxu0 0
  %2500 = vmatpush1.bf16.msra.mxu0 0
  %2501 = vmatprep.subr.bf16.mxu0 0
  %2502 = vmatpush1.bf16.msra.mxu0 0
  %2503 = vmatprep.subr.bf16.mxu0 0
  %2504 = vmatpush1.bf16.msra.mxu0 0
  %2505 = vmatprep.subr.bf16.mxu0 0
  %2506 = vmatpush1.bf16.msra.mxu0 0
  %2507 = vmatprep.subr.bf16.mxu0 0
  %2508 = vmatpush1.bf16.msra.mxu0 0
  %2509 = vmatprep.subr.bf16.mxu0 0
  %2510 = vmatpush1.bf16.msra.mxu0 0
  %2511 = vmatprep.subr.bf16.mxu0 0
  %2512 = vmatpush1.bf16.msra.mxu0 0
  %2513 = vmatprep.mubr.bf16.mxu0 0
  %2514 = vmatmul.mubr.bf16.gmra.mrb[0].mxu0 %v2476
  %v2515 = vpop.f32.mrb[0].mxu0
  %v2516 = vadd.f32 0.0, %v2515
  %v2517 = vpop.f32.mrb[0].mxu0
  %v2518 = vpop.f32.mrb[0].mxu0
  %v2519 = vpop.f32.mrb[0].mxu0
  %2520 = vdwg.mxu0
  %v2521 = vpack.c.bf16 %v2516, %v2468
  %v2523 = vsel %vm218, %v2521, 0
  %v2526 = vsel %vm96, %v2131, 0
  %2528 = vmatprep.subr.bf16.mxu0 0
  %2529 = vmatpush1.bf16.msra.mxu0 %v2526
  %2530 = vmatprep.subr.bf16.mxu0 0
  %2531 = vmatpush1.bf16.msra.mxu0 0
  %2532 = vmatprep.subr.bf16.mxu0 0
  %2533 = vmatpush1.bf16.msra.mxu0 0
  %2534 = vmatprep.subr.bf16.mxu0 0
  %2535 = vmatpush1.bf16.msra.mxu0 0
  %2536 = vmatprep.subr.bf16.mxu0 0
  %2537 = vmatpush1.bf16.msra.mxu0 0
  %2538 = vmatprep.subr.bf16.mxu0 0
  %2539 = vmatpush1.bf16.msra.mxu0 0
  %2540 = vmatprep.subr.bf16.mxu0 0
  %2541 = vmatpush1.bf16.msra.mxu0 0
  %2542 = vmatprep.subr.bf16.mxu0 0
  %2543 = vmatpush1.bf16.msra.mxu0 0
  %2544 = vmatprep.subr.bf16.mxu0 0
  %2545 = vmatpush1.bf16.msra.mxu0 0
  %2546 = vmatprep.subr.bf16.mxu0 0
  %2547 = vmatpush1.bf16.msra.mxu0 0
  %2548 = vmatprep.subr.bf16.mxu0 0
  %2549 = vmatpush1.bf16.msra.mxu0 0
  %2550 = vmatprep.subr.bf16.mxu0 0
  %2551 = vmatpush1.bf16.msra.mxu0 0
  %2552 = vmatprep.subr.bf16.mxu0 0
  %2553 = vmatpush1.bf16.msra.mxu0 0
  %2554 = vmatprep.subr.bf16.mxu0 0
  %2555 = vmatpush1.bf16.msra.mxu0 0
  %2556 = vmatprep.subr.bf16.mxu0 0
  %2557 = vmatpush1.bf16.msra.mxu0 0
  %2558 = vmatprep.subr.bf16.mxu0 0
  %2559 = vmatpush1.bf16.msra.mxu0 0
  %2560 = vmatprep.mubr.bf16.mxu0 0
  %2561 = vmatmul.mubr.bf16.gmra.mrb[0].mxu0 %v2523
  %v2562 = vpop.f32.mrb[0].mxu0
  %v2563 = vadd.f32 0.0, %v2562
  %v2564 = vpop.f32.mrb[0].mxu0
  %v2565 = vpop.f32.mrb[0].mxu0
  %v2566 = vadd.f32 0.0, %v2565
  %v2567 = vpop.f32.mrb[0].mxu0
  %2568 = vdwg.mxu0
  %v2569 = vadd.f32 %v2419, %v2563
  %v2570 = vadd.f32 %v2422, %v2566
  %v2572 = vrot.slane %v2125, 4
  %2573 = vrot.lane.b32.xlu0 %v1637, 40
  %v2574 = vpop.permute.xlu0 %2573
  %v2576 = vsel %vm218, %v2572, 0
  %v2579 = vsel %vm96, %v2574, 0
  %2581 = vmatprep.subr.bf16.mxu0 0
  %2582 = vmatpush1.bf16.msra.mxu0 %v2579
  %2583 = vmatprep.subr.bf16.mxu0 0
  %2584 = vmatpush1.bf16.msra.mxu0 0
  %2585 = vmatprep.subr.bf16.mxu0 0
  %2586 = vmatpush1.bf16.msra.mxu0 0
  %2587 = vmatprep.subr.bf16.mxu0 0
  %2588 = vmatpush1.bf16.msra.mxu0 0
  %2589 = vmatprep.subr.bf16.mxu0 0
  %2590 = vmatpush1.bf16.msra.mxu0 0
  %2591 = vmatprep.subr.bf16.mxu0 0
  %2592 = vmatpush1.bf16.msra.mxu0 0
  %2593 = vmatprep.subr.bf16.mxu0 0
  %2594 = vmatpush1.bf16.msra.mxu0 0
  %2595 = vmatprep.subr.bf16.mxu0 0
  %2596 = vmatpush1.bf16.msra.mxu0 0
  %2597 = vmatprep.subr.bf16.mxu0 0
  %2598 = vmatpush1.bf16.msra.mxu0 0
  %2599 = vmatprep.subr.bf16.mxu0 0
  %2600 = vmatpush1.bf16.msra.mxu0 0
  %2601 = vmatprep.subr.bf16.mxu0 0
  %2602 = vmatpush1.bf16.msra.mxu0 0
  %2603 = vmatprep.subr.bf16.mxu0 0
  %2604 = vmatpush1.bf16.msra.mxu0 0
  %2605 = vmatprep.subr.bf16.mxu0 0
  %2606 = vmatpush1.bf16.msra.mxu0 0
  %2607 = vmatprep.subr.bf16.mxu0 0
  %2608 = vmatpush1.bf16.msra.mxu0 0
  %2609 = vmatprep.subr.bf16.mxu0 0
  %2610 = vmatpush1.bf16.msra.mxu0 0
  %2611 = vmatprep.subr.bf16.mxu0 0
  %2612 = vmatpush1.bf16.msra.mxu0 0
  %2613 = vmatprep.mubr.bf16.mxu0 0
  %2614 = vmatmul.mubr.bf16.gmra.mrb[0].mxu0 %v2576
  %v2615 = vpop.f32.mrb[0].mxu0
  %v2616 = vadd.f32 0.0, %v2615
  %v2617 = vpop.f32.mrb[0].mxu0
  %v2618 = vpop.f32.mrb[0].mxu0
  %v2619 = vpop.f32.mrb[0].mxu0
  %2620 = vdwg.mxu0
  %v2622 = vrot.slane %v2127, 4
  %2623 = vrot.lane.b32.xlu0 %v1837, 40
  %v2624 = vpop.permute.xlu0 %2623
  %v2626 = vsel %vm218, %v2622, 0
  %v2629 = vsel %vm96, %v2624, 0
  %2631 = vmatprep.subr.bf16.mxu0 0
  %2632 = vmatpush1.bf16.msra.mxu0 %v2629
  %2633 = vmatprep.subr.bf16.mxu0 0
  %2634 = vmatpush1.bf16.msra.mxu0 0
  %2635 = vmatprep.subr.bf16.mxu0 0
  %2636 = vmatpush1.bf16.msra.mxu0 0
  %2637 = vmatprep.subr.bf16.mxu0 0
  %2638 = vmatpush1.bf16.msra.mxu0 0
  %2639 = vmatprep.subr.bf16.mxu0 0
  %2640 = vmatpush1.bf16.msra.mxu0 0
  %2641 = vmatprep.subr.bf16.mxu0 0
  %2642 = vmatpush1.bf16.msra.mxu0 0
  %2643 = vmatprep.subr.bf16.mxu0 0
  %2644 = vmatpush1.bf16.msra.mxu0 0
  %2645 = vmatprep.subr.bf16.mxu0 0
  %2646 = vmatpush1.bf16.msra.mxu0 0
  %2647 = vmatprep.subr.bf16.mxu0 0
  %2648 = vmatpush1.bf16.msra.mxu0 0
  %2649 = vmatprep.subr.bf16.mxu0 0
  %2650 = vmatpush1.bf16.msra.mxu0 0
  %2651 = vmatprep.subr.bf16.mxu0 0
  %2652 = vmatpush1.bf16.msra.mxu0 0
  %2653 = vmatprep.subr.bf16.mxu0 0
  %2654 = vmatpush1.bf16.msra.mxu0 0
  %2655 = vmatprep.subr.bf16.mxu0 0
  %2656 = vmatpush1.bf16.msra.mxu0 0
  %2657 = vmatprep.subr.bf16.mxu0 0
  %2658 = vmatpush1.bf16.msra.mxu0 0
  %2659 = vmatprep.subr.bf16.mxu0 0
  %2660 = vmatpush1.bf16.msra.mxu0 0
  %2661 = vmatprep.subr.bf16.mxu0 0
  %2662 = vmatpush1.bf16.msra.mxu0 0
  %2663 = vmatprep.mubr.bf16.mxu0 0
  %2664 = vmatmul.mubr.bf16.gmra.mrb[0].mxu0 %v2626
  %v2665 = vpop.f32.mrb[0].mxu0
  %v2666 = vadd.f32 0.0, %v2665
  %v2667 = vpop.f32.mrb[0].mxu0
  %v2668 = vpop.f32.mrb[0].mxu0
  %v2669 = vpop.f32.mrb[0].mxu0
  %2670 = vdwg.mxu0
  %v2671 = vpack.c.bf16 %v2666, %v2616
  %v2673 = vsel %vm218, %v2671, 0
  %v2676 = vsel %vm96, %v2132, 0
  %2678 = vmatprep.subr.bf16.mxu0 0
  %2679 = vmatpush1.bf16.msra.mxu0 %v2676
  %2680 = vmatprep.subr.bf16.mxu0 0
  %2681 = vmatpush1.bf16.msra.mxu0 0
  %2682 = vmatprep.subr.bf16.mxu0 0
  %2683 = vmatpush1.bf16.msra.mxu0 0
  %2684 = vmatprep.subr.bf16.mxu0 0
  %2685 = vmatpush1.bf16.msra.mxu0 0
  %2686 = vmatprep.subr.bf16.mxu0 0
  %2687 = vmatpush1.bf16.msra.mxu0 0
  %2688 = vmatprep.subr.bf16.mxu0 0
  %2689 = vmatpush1.bf16.msra.mxu0 0
  %2690 = vmatprep.subr.bf16.mxu0 0
  %2691 = vmatpush1.bf16.msra.mxu0 0
  %2692 = vmatprep.subr.bf16.mxu0 0
  %2693 = vmatpush1.bf16.msra.mxu0 0
  %2694 = vmatprep.subr.bf16.mxu0 0
  %2695 = vmatpush1.bf16.msra.mxu0 0
  %2696 = vmatprep.subr.bf16.mxu0 0
  %2697 = vmatpush1.bf16.msra.mxu0 0
  %2698 = vmatprep.subr.bf16.mxu0 0
  %2699 = vmatpush1.bf16.msra.mxu0 0
  %2700 = vmatprep.subr.bf16.mxu0 0
  %2701 = vmatpush1.bf16.msra.mxu0 0
  %2702 = vmatprep.subr.bf16.mxu0 0
  %2703 = vmatpush1.bf16.msra.mxu0 0
  %2704 = vmatprep.subr.bf16.mxu0 0
  %2705 = vmatpush1.bf16.msra.mxu0 0
  %2706 = vmatprep.subr.bf16.mxu0 0
  %2707 = vmatpush1.bf16.msra.mxu0 0
  %2708 = vmatprep.subr.bf16.mxu0 0
  %2709 = vmatpush1.bf16.msra.mxu0 0
  %2710 = vmatprep.mubr.bf16.mxu0 0
  %2711 = vmatmul.mubr.bf16.gmra.mrb[0].mxu0 %v2673
  %v2712 = vpop.f32.mrb[0].mxu0
  %v2713 = vadd.f32 0.0, %v2712
  %v2714 = vpop.f32.mrb[0].mxu0
  %v2715 = vpop.f32.mrb[0].mxu0
  %v2716 = vadd.f32 0.0, %v2715
  %v2717 = vpop.f32.mrb[0].mxu0
  %2718 = vdwg.mxu0
  %v2719 = vadd.f32 %v2569, %v2713
  %v2720 = vadd.f32 %v2570, %v2716
  %s2721 = scalar_lea.vmem %s7, 1
  %v2722 = vld [vmem:[%s2721] sm:$0x1]
  %v2724 = vlaneseq
  %v2725 = vshrl.u32 %v2724, 7
  %v2726 = vsub.s32 0, %v2725
  %v2727 = vrot.slane %v2722, %v2726
  %v2729 = vadd.f32 %v2719, %v2727
  %v2730 = vadd.f32 %v2720, %v2727
  %v2731 = vadd.f32 %v1565, %v2729
  %v2732 = vadd.f32 %v1566, %v2730
  %s2733 = scalar_lea.vmem %s8, 1
  %v2734 = vld [vmem:[%s2733] sm:$0x1]
  %s2735 = scalar_lea.vmem %s9, 1
  %v2736 = vld [vmem:[%s2735] sm:$0x1]
  %v2737 = vsel %vm169, %v2731, 0.0
  %2738 = vadd.xlane.f32.xlu0 %v2737
  %v2739 = vpop.xlane.xlu0 %2738
  %v2740 = vsel %vm169, %v2732, 0.0
  %2741 = vadd.xlane.f32.xlu0 %v2740
  %v2742 = vpop.xlane.xlu0 %2741
  %v2743 = vmul.f32 %v2739, %v1317
  %v2744 = vmul.f32 %v2742, %v1317
  %v2745 = vmul.f32 %v2731, %v2731
  %v2746 = vmul.f32 %v2732, %v2732
  %v2747 = vsel %vm169, %v2745, 0.0
  %2748 = vadd.xlane.f32.xlu0 %v2747
  %v2749 = vpop.xlane.xlu0 %2748
  %v2750 = vsel %vm169, %v2746, 0.0
  %2751 = vadd.xlane.f32.xlu0 %v2750
  %v2752 = vpop.xlane.xlu0 %2751
  %v2753 = vmul.f32 %v2749, %v1317
  %v2754 = vmul.f32 %v2752, %v1317
  %v2755 = vmul.f32 %v2743, %v2743
  %v2756 = vmul.f32 %v2744, %v2744
  %v2757 = vsub.f32 %v2753, %v2755
  %v2758 = vsub.f32 %v2754, %v2756
  %v2759 = vmax.f32 %v2757, 0.0
  %v2760 = vmax.f32 %v2758, 0.0
  %v2761 = vsub.f32 %v2731, %v2743
  %v2762 = vsub.f32 %v2732, %v2744
  %v2763 = vadd.f32 %v2759, 1e-05
  %v2764 = vadd.f32 %v2760, 1e-05
  %v2765 = vrsqrt.pop %v2763
  %v2766 = vrsqrt.pop %v2764
  %v2767 = vmul.f32 %v2761, %v2765
  %v2768 = vmul.f32 %v2762, %v2766
  %v2770 = vlaneseq
  %v2771 = vshrl.u32 %v2770, 7
  %v2772 = vsub.s32 0, %v2771
  %v2773 = vrot.slane %v2734, %v2772
  %v2775 = vmul.f32 %v2767, %v2773
  %v2776 = vmul.f32 %v2768, %v2773
  %v2778 = vlaneseq
  %v2779 = vshrl.u32 %v2778, 7
  %v2780 = vsub.s32 0, %v2779
  %v2781 = vrot.slane %v2736, %v2780
  %v2783 = vadd.f32 %v2775, %v2781
  %v2784 = vadd.f32 %v2776, %v2781
  %v2785 = vpack.c.bf16 %v2784, %v2783
  %s2786 = scalar_lea.vmem %s10, 16
  %v2787 = vld [vmem:[%s2786] sm:$0xf]
  %v2788 = vld [vmem:[%s2786 + $0x4] sm:$0xf]
  %v2789 = vld [vmem:[%s2786 + $0x8] sm:$0xf]
  %v2790 = vld [vmem:[%s2786 + $0xc] sm:$0xf]
  %s2791 = scalar_lea.vmem %s11, 1
  %v2792 = vld [vmem:[%s2791] sm:$0x1]
  %v2794 = vlaneseq
  %v2795 = vshrl.u32 %v2794, 7
  %v2796 = vsub.s32 0, %v2795
  %v2797 = vrot.slane %v2792, %v2796
  %v2803 = vunpack.c.l.b16 %v2787
  %v2804 = vunpack.c.l.b16 %v2788
  %v2805 = vunpack.c.l.b16 %v2789
  %v2806 = vunpack.c.l.b16 %v2790
  %v2807 = vpack.c.b16 %v2804, %v2803
  %v2808 = vpack.c.b16 %v2806, %v2805
  %v2812 = vsel %vm169, %v2785, 0
  %2814 = vmatprep.subr.bf16.mxu0 0
  %2815 = vmatpush1.bf16.msra.mxu0 %v2807
  %2816 = vmatprep.subr.bf16.mxu0 0
  %2817 = vmatpush1.bf16.msra.mxu0 %v2808
  %2818 = vmatprep.subr.bf16.mxu0 0
  %2819 = vmatpush1.bf16.msra.mxu0 0
  %2820 = vmatprep.subr.bf16.mxu0 0
  %2821 = vmatpush1.bf16.msra.mxu0 0
  %2822 = vmatprep.subr.bf16.mxu0 0
  %2823 = vmatpush1.bf16.msra.mxu0 0
  %2824 = vmatprep.subr.bf16.mxu0 0
  %2825 = vmatpush1.bf16.msra.mxu0 0
  %2826 = vmatprep.subr.bf16.mxu0 0
  %2827 = vmatpush1.bf16.msra.mxu0 0
  %2828 = vmatprep.subr.bf16.mxu0 0
  %2829 = vmatpush1.bf16.msra.mxu0 0
  %2830 = vmatprep.subr.bf16.mxu0 0
  %2831 = vmatpush1.bf16.msra.mxu0 0
  %2832 = vmatprep.subr.bf16.mxu0 0
  %2833 = vmatpush1.bf16.msra.mxu0 0
  %2834 = vmatprep.subr.bf16.mxu0 0
  %2835 = vmatpush1.bf16.msra.mxu0 0
  %2836 = vmatprep.subr.bf16.mxu0 0
  %2837 = vmatpush1.bf16.msra.mxu0 0
  %2838 = vmatprep.subr.bf16.mxu0 0
  %2839 = vmatpush1.bf16.msra.mxu0 0
  %2840 = vmatprep.subr.bf16.mxu0 0
  %2841 = vmatpush1.bf16.msra.mxu0 0
  %2842 = vmatprep.subr.bf16.mxu0 0
  %2843 = vmatpush1.bf16.msra.mxu0 0
  %2844 = vmatprep.subr.bf16.mxu0 0
  %2845 = vmatpush1.bf16.msra.mxu0 0
  %2846 = vmatprep.mubr.bf16.mxu0 0
  %2847 = vmatmul.mubr.bf16.gmra.mrb[0].mxu0 %v2812
  %v2848 = vpop.f32.mrb[0].mxu0
  %v2849 = vadd.f32 %v2797, %v2848
  %v2850 = vpop.f32.mrb[0].mxu0
  %v2851 = vpop.f32.mrb[0].mxu0
  %v2852 = vadd.f32 %v2797, %v2851
  %v2853 = vpop.f32.mrb[0].mxu0
  %2854 = vdwg.mxu0
  %v2855 = vmax.f32 %v2849, 0.0
  %v2856 = vmax.f32 %v2852, 0.0
  %v2857 = vpack.c.bf16 %v2856, %v2855
  %s2858 = scalar_lea.vmem %s12, 32
  %v2859 = vld [vmem:[%s2858] sm:$0xf]
  %v2860 = vld [vmem:[%s2858 + $0x4] sm:$0xf]
  %v2861 = vld [vmem:[%s2858 + $0x8] sm:$0xf]
  %v2862 = vld [vmem:[%s2858 + $0xc] sm:$0xf]
  %v2863 = vld [vmem:[%s2858 + $0x10] sm:$0xf]
  %v2864 = vld [vmem:[%s2858 + $0x14] sm:$0xf]
  %v2865 = vld [vmem:[%s2858 + $0x18] sm:$0xf]
  %v2866 = vld [vmem:[%s2858 + $0x1c] sm:$0xf]
  %s2867 = scalar_lea.vmem %s13, 1
  %v2868 = vld [vmem:[%s2867] sm:$0x1]
  %v2870 = vlaneseq
  %v2871 = vshrl.u32 %v2870, 7
  %v2872 = vsub.s32 0, %v2871
  %v2873 = vrot.slane %v2868, %v2872
  %v2883 = vunpack.c.l.b16 %v2859
  %v2884 = vunpack.c.l.b16 %v2860
  %v2885 = vunpack.c.l.b16 %v2861
  %v2886 = vunpack.c.l.b16 %v2862
  %v2887 = vunpack.c.l.b16 %v2863
  %v2888 = vunpack.c.l.b16 %v2864
  %v2889 = vunpack.c.l.b16 %v2865
  %v2890 = vunpack.c.l.b16 %v2866
  %v2891 = vpack.c.b16 %v2884, %v2883
  %v2892 = vpack.c.b16 %v2886, %v2885
  %v2893 = vpack.c.b16 %v2888, %v2887
  %v2894 = vpack.c.b16 %v2890, %v2889
  %v2900 = vsel %vm1470, %v2857, 0
  %2902 = vmatprep.subr.bf16.mxu0 0
  %2903 = vmatpush1.bf16.msra.mxu0 %v2891
  %2904 = vmatprep.subr.bf16.mxu0 0
  %2905 = vmatpush1.bf16.msra.mxu0 %v2892
  %2906 = vmatprep.subr.bf16.mxu0 0
  %2907 = vmatpush1.bf16.msra.mxu0 %v2893
  %2908 = vmatprep.subr.bf16.mxu0 0
  %2909 = vmatpush1.bf16.msra.mxu0 %v2894
  %2910 = vmatprep.subr.bf16.mxu0 0
  %2911 = vmatpush1.bf16.msra.mxu0 0
  %2912 = vmatprep.subr.bf16.mxu0 0
  %2913 = vmatpush1.bf16.msra.mxu0 0
  %2914 = vmatprep.subr.bf16.mxu0 0
  %2915 = vmatpush1.bf16.msra.mxu0 0
  %2916 = vmatprep.subr.bf16.mxu0 0
  %2917 = vmatpush1.bf16.msra.mxu0 0
  %2918 = vmatprep.subr.bf16.mxu0 0
  %2919 = vmatpush1.bf16.msra.mxu0 0
  %2920 = vmatprep.subr.bf16.mxu0 0
  %2921 = vmatpush1.bf16.msra.mxu0 0
  %2922 = vmatprep.subr.bf16.mxu0 0
  %2923 = vmatpush1.bf16.msra.mxu0 0
  %2924 = vmatprep.subr.bf16.mxu0 0
  %2925 = vmatpush1.bf16.msra.mxu0 0
  %2926 = vmatprep.subr.bf16.mxu0 0
  %2927 = vmatpush1.bf16.msra.mxu0 0
  %2928 = vmatprep.subr.bf16.mxu0 0
  %2929 = vmatpush1.bf16.msra.mxu0 0
  %2930 = vmatprep.subr.bf16.mxu0 0
  %2931 = vmatpush1.bf16.msra.mxu0 0
  %2932 = vmatprep.subr.bf16.mxu0 0
  %2933 = vmatpush1.bf16.msra.mxu0 0
  %2934 = vmatprep.mubr.bf16.mxu0 0
  %2935 = vmatmul.mubr.bf16.gmra.mrb[0].mxu0 %v2900
  %v2936 = vpop.f32.mrb[0].mxu0
  %v2937 = vadd.f32 %v2873, %v2936
  %v2938 = vpop.f32.mrb[0].mxu0
  %v2939 = vpop.f32.mrb[0].mxu0
  %v2940 = vadd.f32 %v2873, %v2939
  %v2941 = vpop.f32.mrb[0].mxu0
  %2942 = vdwg.mxu0
  %v2943 = vadd.f32 %v2783, %v2937
  %v2944 = vadd.f32 %v2784, %v2940
  %s2945 = scalar_lea.vmem %s14, 1
  %v2946 = vld [vmem:[%s2945] sm:$0x1]
  %s2947 = scalar_lea.vmem %s15, 1
  %v2948 = vld [vmem:[%s2947] sm:$0x1]
  %v2949 = vsel %vm169, %v2943, 0.0
  %2950 = vadd.xlane.f32.xlu0 %v2949
  %v2951 = vpop.xlane.xlu0 %2950
  %v2952 = vsel %vm169, %v2944, 0.0
  %2953 = vadd.xlane.f32.xlu0 %v2952
  %v2954 = vpop.xlane.xlu0 %2953
  %v2955 = vmul.f32 %v2951, %v1317
  %v2956 = vmul.f32 %v2954, %v1317
  %v2957 = vmul.f32 %v2943, %v2943
  %v2958 = vmul.f32 %v2944, %v2944
  %v2959 = vsel %vm169, %v2957, 0.0
  %2960 = vadd.xlane.f32.xlu0 %v2959
  %v2961 = vpop.xlane.xlu0 %2960
  %v2962 = vsel %vm169, %v2958, 0.0
  %2963 = vadd.xlane.f32.xlu0 %v2962
  %v2964 = vpop.xlane.xlu0 %2963
  %v2965 = vmul.f32 %v2961, %v1317
  %v2966 = vmul.f32 %v2964, %v1317
  %v2967 = vmul.f32 %v2955, %v2955
  %v2968 = vmul.f32 %v2956, %v2956
  %v2969 = vsub.f32 %v2965, %v2967
  %v2970 = vsub.f32 %v2966, %v2968
  %v2971 = vmax.f32 %v2969, 0.0
  %v2972 = vmax.f32 %v2970, 0.0
  %v2973 = vsub.f32 %v2943, %v2955
  %v2974 = vsub.f32 %v2944, %v2956
  %v2975 = vadd.f32 %v2971, 1e-05
  %v2976 = vadd.f32 %v2972, 1e-05
  %v2977 = vrsqrt.pop %v2975
  %v2978 = vrsqrt.pop %v2976
  %v2979 = vmul.f32 %v2973, %v2977
  %v2980 = vmul.f32 %v2974, %v2978
  %v2982 = vlaneseq
  %v2983 = vshrl.u32 %v2982, 7
  %v2984 = vsub.s32 0, %v2983
  %v2985 = vrot.slane %v2946, %v2984
  %v2987 = vmul.f32 %v2979, %v2985
  %v2988 = vmul.f32 %v2980, %v2985
  %v2990 = vlaneseq
  %v2991 = vshrl.u32 %v2990, 7
  %v2992 = vsub.s32 0, %v2991
  %v2993 = vrot.slane %v2948, %v2992
  %v2995 = vadd.f32 %v2987, %v2993
  %v2996 = vadd.f32 %v2988, %v2993
  %v2997 = vpack.c.bf16 %v2996, %v2995
  %v2998 = vld [vmem:[%s16] sm:$0xf]
  %v2999 = vld [vmem:[%s16 + $0x4] sm:$0xf]
  %v3000 = vld [vmem:[%s16 + $0x8] sm:$0xf]
  %v3001 = vld [vmem:[%s16 + $0xc] sm:$0xf]
  %v3002 = vld [vmem:[%s17] sm:$0x1]
  %v3004 = vlaneseq
  %v3005 = vshrl.u32 %v3004, 7
  %v3006 = vsub.s32 0, %v3005
  %v3007 = vrot.slane %v3002, %v3006
  %v3013 = vunpack.c.l.b16 %v2998
  %v3014 = vunpack.c.l.b16 %v2999
  %v3015 = vunpack.c.l.b16 %v3000
  %v3016 = vunpack.c.l.b16 %v3001
  %v3017 = vpack.c.b16 %v3014, %v3013
  %v3018 = vpack.c.b16 %v3016, %v3015
  %v3022 = vsel %vm169, %v2997, 0
  %3024 = vmatprep.subr.bf16.mxu0 0
  %3025 = vmatpush1.bf16.msra.mxu0 %v3017
  %3026 = vmatprep.subr.bf16.mxu0 0
  %3027 = vmatpush1.bf16.msra.mxu0 %v3018
  %3028 = vmatprep.subr.bf16.mxu0 0
  %3029 = vmatpush1.bf16.msra.mxu0 0
  %3030 = vmatprep.subr.bf16.mxu0 0
  %3031 = vmatpush1.bf16.msra.mxu0 0
  %3032 = vmatprep.subr.bf16.mxu0 0
  %3033 = vmatpush1.bf16.msra.mxu0 0
  %3034 = vmatprep.subr.bf16.mxu0 0
  %3035 = vmatpush1.bf16.msra.mxu0 0
  %3036 = vmatprep.subr.bf16.mxu0 0
  %3037 = vmatpush1.bf16.msra.mxu0 0
  %3038 = vmatprep.subr.bf16.mxu0 0
  %3039 = vmatpush1.bf16.msra.mxu0 0
  %3040 = vmatprep.subr.bf16.mxu0 0
  %3041 = vmatpush1.bf16.msra.mxu0 0
  %3042 = vmatprep.subr.bf16.mxu0 0
  %3043 = vmatpush1.bf16.msra.mxu0 0
  %3044 = vmatprep.subr.bf16.mxu0 0
  %3045 = vmatpush1.bf16.msra.mxu0 0
  %3046 = vmatprep.subr.bf16.mxu0 0
  %3047 = vmatpush1.bf16.msra.mxu0 0
  %3048 = vmatprep.subr.bf16.mxu0 0
  %3049 = vmatpush1.bf16.msra.mxu0 0
  %3050 = vmatprep.subr.bf16.mxu0 0
  %3051 = vmatpush1.bf16.msra.mxu0 0
  %3052 = vmatprep.subr.bf16.mxu0 0
  %3053 = vmatpush1.bf16.msra.mxu0 0
  %3054 = vmatprep.subr.bf16.mxu0 0
  %3055 = vmatpush1.bf16.msra.mxu0 0
  %3056 = vmatprep.mubr.bf16.mxu0 0
  %3057 = vmatmul.mubr.bf16.gmra.mrb[0].mxu0 %v3022
  %v3058 = vpop.f32.mrb[0].mxu0
  %v3059 = vadd.f32 %v3007, %v3058
  %v3060 = vpop.f32.mrb[0].mxu0
  %v3061 = vpop.f32.mrb[0].mxu0
  %v3062 = vadd.f32 %v3007, %v3061
  %v3063 = vpop.f32.mrb[0].mxu0
  %3064 = vdwg.mxu0
  %v3065 = vpack.c.bf16 %v3062, %v3059
  %v3066 = vld [vmem:[%s18] sm:$0xf]
  %v3067 = vld [vmem:[%s19] sm:$0x1]
  %v3069 = vlaneseq
  %v3070 = vshrl.u32 %v3069, 7
  %v3071 = vsub.s32 0, %v3070
  %v3072 = vrot.slane %v3067, %v3071
  %3074 = vxpose.xlu0.c.b16.start [1/8] %v3065, 128
  %3075 = vxpose.xlu0.c.b16.cont [2/8] 0, 128
  %3076 = vxpose.xlu0.c.b16.cont [3/8] 0, 128
  %3077 = vxpose.xlu0.c.b16.cont [4/8] 0, 128
  %3078 = vxpose.xlu0.c.b16.cont [5/8] 0, 128
  %3079 = vxpose.xlu0.c.b16.cont [6/8] 0, 128
  %3080 = vxpose.xlu0.c.b16.cont [7/8] 0, 128
  %3081 = vxpose.xlu0.c.b16.end [8/8] 0, 128
  %v3082 = vpop.trf.xlu0
  %v3083 = vpop.trf.xlu0
  %v3084 = vpop.trf.xlu0
  %v3085 = vpop.trf.xlu0
  %v3086 = vpop.trf.xlu0
  %v3087 = vpop.trf.xlu0
  %v3088 = vpop.trf.xlu0
  %v3089 = vpop.trf.xlu0
  %v3091 = vsel %vm218, %v3082, 0
  %v3094 = vsel %vm96, %v3066, 0
  %3096 = vmatprep.subr.bf16.mxu0 0
  %3097 = vmatpush1.bf16.msra.mxu0 %v3094
  %3098 = vmatprep.subr.bf16.mxu0 0
  %3099 = vmatpush1.bf16.msra.mxu0 0
  %3100 = vmatprep.subr.bf16.mxu0 0
  %3101 = vmatpush1.bf16.msra.mxu0 0
  %3102 = vmatprep.subr.bf16.mxu0 0
  %3103 = vmatpush1.bf16.msra.mxu0 0
  %3104 = vmatprep.subr.bf16.mxu0 0
  %3105 = vmatpush1.bf16.msra.mxu0 0
  %3106 = vmatprep.subr.bf16.mxu0 0
  %3107 = vmatpush1.bf16.msra.mxu0 0
  %3108 = vmatprep.subr.bf16.mxu0 0
  %3109 = vmatpush1.bf16.msra.mxu0 0
  %3110 = vmatprep.subr.bf16.mxu0 0
  %3111 = vmatpush1.bf16.msra.mxu0 0
  %3112 = vmatprep.subr.bf16.mxu0 0
  %3113 = vmatpush1.bf16.msra.mxu0 0
  %3114 = vmatprep.subr.bf16.mxu0 0
  %3115 = vmatpush1.bf16.msra.mxu0 0
  %3116 = vmatprep.subr.bf16.mxu0 0
  %3117 = vmatpush1.bf16.msra.mxu0 0
  %3118 = vmatprep.subr.bf16.mxu0 0
  %3119 = vmatpush1.bf16.msra.mxu0 0
  %3120 = vmatprep.subr.bf16.mxu0 0
  %3121 = vmatpush1.bf16.msra.mxu0 0
  %3122 = vmatprep.subr.bf16.mxu0 0
  %3123 = vmatpush1.bf16.msra.mxu0 0
  %3124 = vmatprep.subr.bf16.mxu0 0
  %3125 = vmatpush1.bf16.msra.mxu0 0
  %3126 = vmatprep.subr.bf16.mxu0 0
  %3127 = vmatpush1.bf16.msra.mxu0 0
  %3128 = vmatprep.mubr.bf16.mxu0 0
  %3129 = vmatmul.mubr.bf16.gmra.mrb[0].mxu0 %v3091
  %v3130 = vpop.f32.mrb[0].mxu0
  %v3131 = vadd.f32 %v3072, %v3130
  %v3132 = vpop.f32.mrb[0].mxu0
  %v3133 = vpop.f32.mrb[0].mxu0
  %v3134 = vadd.f32 %v3072, %v3133
  %v3135 = vpop.f32.mrb[0].mxu0
  %3136 = vdwg.mxu0
  %vm3137 = vcmask 31744
  %3138 = vst.msk [vmem:[%s20] sm:$0xff] %vm3137, %v3131
  %vm3139 = vcmask 27648
  %3140 = vst.msk [vmem:[%s20 + $0x8] sm:$0xf] %vm3139, %v3134
  %v3141 = vld [vmem:[%s18] sm:$0xf]
  %v3142 = vld [vmem:[%s19] sm:$0x1]
  %v3144 = vlaneseq
  %v3145 = vshrl.u32 %v3144, 7
  %v3146 = vsub.s32 0, %v3145
  %v3147 = vrot.slane %v3142, %v3146
  %v3150 = vrot.slane %v3065, 4
  %3152 = vxpose.xlu0.c.b16.start [1/8] %v3150, 128
  %3153 = vxpose.xlu0.c.b16.cont [2/8] 0, 128
  %3154 = vxpose.xlu0.c.b16.cont [3/8] 0, 128
  %3155 = vxpose.xlu0.c.b16.cont [4/8] 0, 128
  %3156 = vxpose.xlu0.c.b16.cont [5/8] 0, 128
  %3157 = vxpose.xlu0.c.b16.cont [6/8] 0, 128
  %3158 = vxpose.xlu0.c.b16.cont [7/8] 0, 128
  %3159 = vxpose.xlu0.c.b16.end [8/8] 0, 128
  %v3160 = vpop.trf.xlu0
  %v3161 = vpop.trf.xlu0
  %v3162 = vpop.trf.xlu0
  %v3163 = vpop.trf.xlu0
  %v3164 = vpop.trf.xlu0
  %v3165 = vpop.trf.xlu0
  %v3166 = vpop.trf.xlu0
  %v3167 = vpop.trf.xlu0
  %v3169 = vsel %vm218, %v3160, 0
  %v3172 = vsel %vm96, %v3141, 0
  %3174 = vmatprep.subr.bf16.mxu0 0
  %3175 = vmatpush1.bf16.msra.mxu0 %v3172
  %3176 = vmatprep.subr.bf16.mxu0 0
  %3177 = vmatpush1.bf16.msra.mxu0 0
  %3178 = vmatprep.subr.bf16.mxu0 0
  %3179 = vmatpush1.bf16.msra.mxu0 0
  %3180 = vmatprep.subr.bf16.mxu0 0
  %3181 = vmatpush1.bf16.msra.mxu0 0
  %3182 = vmatprep.subr.bf16.mxu0 0
  %3183 = vmatpush1.bf16.msra.mxu0 0
  %3184 = vmatprep.subr.bf16.mxu0 0
  %3185 = vmatpush1.bf16.msra.mxu0 0
  %3186 = vmatprep.subr.bf16.mxu0 0
  %3187 = vmatpush1.bf16.msra.mxu0 0
  %3188 = vmatprep.subr.bf16.mxu0 0
  %3189 = vmatpush1.bf16.msra.mxu0 0
  %3190 = vmatprep.subr.bf16.mxu0 0
  %3191 = vmatpush1.bf16.msra.mxu0 0
  %3192 = vmatprep.subr.bf16.mxu0 0
  %3193 = vmatpush1.bf16.msra.mxu0 0
  %3194 = vmatprep.subr.bf16.mxu0 0
  %3195 = vmatpush1.bf16.msra.mxu0 0
  %3196 = vmatprep.subr.bf16.mxu0 0
  %3197 = vmatpush1.bf16.msra.mxu0 0
  %3198 = vmatprep.subr.bf16.mxu0 0
  %3199 = vmatpush1.bf16.msra.mxu0 0
  %3200 = vmatprep.subr.bf16.mxu0 0
  %3201 = vmatpush1.bf16.msra.mxu0 0
  %3202 = vmatprep.subr.bf16.mxu0 0
  %3203 = vmatpush1.bf16.msra.mxu0 0
  %3204 = vmatprep.subr.bf16.mxu0 0
  %3205 = vmatpush1.bf16.msra.mxu0 0
  %3206 = vmatprep.mubr.bf16.mxu0 0
  %3207 = vmatmul.mubr.bf16.gmra.mrb[0].mxu0 %v3169
  %v3208 = vpop.f32.mrb[0].mxu0
  %v3209 = vadd.f32 %v3147, %v3208
  %v3210 = vpop.f32.mrb[0].mxu0
  %v3211 = vpop.f32.mrb[0].mxu0
  %v3212 = vadd.f32 %v3147, %v3211
  %v3213 = vpop.f32.mrb[0].mxu0
  %3214 = vdwg.mxu0
  %s3215 = scalar_lea.vmem %s20, 16
  %3216 = vst.msk [vmem:[%s3215] sm:$0xff] %vm3137, %v3209
  %3217 = vst.msk [vmem:[%s3215 + $0x8] sm:$0xf] %vm3139, %v3212
  // Predicated region
  $region82: #{my_transformer_forward.1} parent=0 // pred_check
    _
  $region83: #{my_transformer_forward.1} parent=0 // pred_check_branch
    %3219 = sbr.rel (0) target = $region85
  $region84: #{my_transformer_forward.1} parent=0 // pred_region
    _
  $region85: #{my_transformer_forward.1} parent=0 // pred_fallthru
    _
  // Predicated region
  $region86: #{my_transformer_forward.1} parent=0 // pred_check
    _
  $region87: #{my_transformer_forward.1} parent=0 // pred_check_branch
    %3221 = sbr.rel (0) target = $region89
  $region88: #{my_transformer_forward.1} parent=0 // pred_region
    _
  $region89: #{my_transformer_forward.1} parent=0 // pred_fallthru
    _

</llo_original>
